<compile_context>
chip_gen: v7x
topology: tpu7x:2x2x1
jax: 0.10.0
libtpu: 0.0.40
codegen_flags: <defaults>
</compile_context>

<pallas_src>
import functools

import jax
import jax.numpy as jnp
from jax import lax
from jax.experimental import pallas as pl
from jax.experimental.pallas import tpu as pltpu


def _lanes(x):
    return ((x + 127) // 128) * 128


def _encoder_kernel(t_chunk, n_blk, h_dim,
                    last_ref,                          # SMEM (1,) i32: last active chunk
                    data_ref,                          # (t_chunk*N_blk, D) bf16
                    lengths_ref,                       # (N_blk, 1) i32
                    wih_ref,                           # (D, 3H) bf16 (gate order r|z|n)
                    whh_r_ref, whh_z_ref, whh_n_ref,   # (H, H) f32
                    bx_ref,                            # (1, 3H) f32 (r,z: b_ih+b_hh; n: b_in)
                    b_hn_ref,                          # (1, H) f32
                    w1_ref, b1_ref,                    # (H, U) f32 / (1, U) f32
                    w2_ref, b2_ref,                    # (U, 2H) f32 / (1, 2H) f32
                    out_ref,                           # (N_blk, 2H) f32
                    h_scr,                             # (N_blk, H) f32
                    gxr_scr, gxz_scr, gxn_scr):        # (t_chunk*N_blk, H) f32
    c = pl.program_id(1)

    @pl.when(c == 0)
    def _init():
        h_scr[...] = jnp.zeros_like(h_scr)

    # Skip fully-masked tail chunks (all sequences already ended).
    @pl.when(c <= last_ref[0])
    def _active():
        # ---- Fused, hoisted input projection: one MXU matmul per chunk;
        # the r/z/n lane split happens once, off the serial critical path.
        gx = jnp.dot(data_ref[...], wih_ref[...],
                     preferred_element_type=jnp.float32) + bx_ref[...]
        gxr_scr[...] = gx[:, 0:h_dim]
        gxz_scr[...] = gx[:, h_dim:2 * h_dim]
        gxn_scr[...] = gx[:, 2 * h_dim:3 * h_dim]

        whh_r = whh_r_ref[...]
        whh_z = whh_z_ref[...]
        whh_n = whh_n_ref[...]
        lengths = lengths_ref[...]                               # (N_blk, 1) i32
        b_hn = jnp.broadcast_to(b_hn_ref[...], (n_blk, h_dim))   # hoisted broadcast
        t_base = c * t_chunk

        def gru_step(t, h):
            row = pl.multiple_of(t * n_blk, n_blk)
            gxr = gxr_scr[pl.ds(row, n_blk), :]
            gxz = gxz_scr[pl.ds(row, n_blk), :]
            gxn = gxn_scr[pl.ds(row, n_blk), :]
            gh_r = jnp.dot(h, whh_r, preferred_element_type=jnp.float32)
            gh_z = jnp.dot(h, whh_z, preferred_element_type=jnp.float32)
            gh_n = jnp.dot(h, whh_n, preferred_element_type=jnp.float32)
            # sigmoid via a single tanh EUP pass: sigma(x) = 0.5*(tanh(x/2)+1)
            r = 0.5 * (jnp.tanh(0.5 * (gxr + gh_r)) + 1.0)
            z = 0.5 * (jnp.tanh(0.5 * (gxz + gh_z)) + 1.0)
            n_cand = jnp.tanh(gxn + r * (gh_n + b_hn))
            h_new = (1.0 - z) * n_cand + z * h
            # packed-sequence semantics: only update while global t < lengths[n]
            mask = (t_base + t) < lengths
            return jnp.where(mask, h_new, h)

        unroll = int(min(t_chunk, 16))
        h_scr[...] = lax.fori_loop(0, t_chunk, gru_step, h_scr[...],
                                   unroll=unroll)

    # ---- hidden_to_z0 MLP on the last grid step; single lane-dense (N_blk, 2H)
    # output, mean/logvar split happens in the wrapper.
    @pl.when(c == pl.num_programs(1) - 1)
    def _finish():
        h_fin = h_scr[...]
        hid1 = jnp.tanh(jnp.dot(h_fin, w1_ref[...],
                                preferred_element_type=jnp.float32) + b1_ref[...])
        out_ref[...] = jnp.dot(hid1, w2_ref[...],
                               preferred_element_type=jnp.float32) + b2_ref[...]


def encoder_z0_rnn_forward(data, time_steps, lengths, params, *, t_chunk=None):
    """data [N, T, D] f32, time_steps [N, T] (unused), lengths [N] i32."""
    del time_steps  # unused by the reference forward as well
    N, T, D = data.shape
    H = params["w_hh_t"].shape[0]
    U = params["w1_t"].shape[1]

    # ---- Batch blocking: pad to a multiple of 8 sublanes; block the batch so
    # large batches get a "parallel" grid axis (2nd TensorCore on v7x).
    N_pad8 = ((N + 7) // 8) * 8
    N_blk = min(N_pad8, 64)
    num_nb = -(-N_pad8 // N_blk)
    N_pad = num_nb * N_blk

    # ---- Time-chunk sized so double-buffered data + gx scratch ~ 12 MiB
    # (conservative toward v7x's 64 MiB physical VMEM; plenty on v5e/v6e).
    if t_chunk is None:
        per_step = N_blk * (2 * _lanes(D) * 2 + 3 * _lanes(H) * 4)
        t_chunk = int(max(1, min(T, (12 << 20) // max(per_step, 1))))
    num_chunks = -(-T // t_chunk)
    T_pad = num_chunks * t_chunk

    # ---- Data layout: time-major, batch-blocked, flattened to a 2-D
    # sublane-dense (t*N_blk, D) stream per batch block, bf16 for the MXU.
    data_tm = jnp.transpose(data, (1, 0, 2))                     # (T, N, D)
    data_tm = jnp.pad(data_tm, ((0, T_pad - T), (0, N_pad - N), (0, 0)))
    data_tm = data_tm.astype(jnp.bfloat16)
    data_flat = (data_tm.reshape(T_pad, num_nb, N_blk, D)
                 .transpose(1, 0, 2, 3)
                 .reshape(num_nb, T_pad * N_blk, D))

    lengths_i32 = lengths.astype(jnp.int32)
    lengths_p = jnp.pad(lengths_i32, (0, N_pad - N)).reshape(num_nb, N_blk, 1)

    # Last active time-chunk index (scalar prefetch) -> skip dead tail chunks.
    max_len = jnp.max(lengths_i32)
    last_chunk = jnp.clip((max_len + t_chunk - 1) // t_chunk - 1,
                          0, num_chunks - 1).reshape(1).astype(jnp.int32)

    # ---- GRU weights: fused (D, 3H) input projection in bf16; recurrent
    # (H, H) per-gate weights kept in f32 (tiny, better long-T accuracy);
    # r/z recurrent biases folded into the input-projection bias.
    bf = jnp.bfloat16
    wih = params["w_ih_t"].astype(bf)                            # (D, 3H)
    whh = params["w_hh_t"]                                       # (H, 3H) f32
    whh_r, whh_z, whh_n = whh[:, 0:H], whh[:, H:2 * H], whh[:, 2 * H:3 * H]
    bih, bhh = params["b_ih"], params["b_hh"]                    # (1, 3H) f32
    bx = jnp.concatenate([bih[:, 0:2 * H] + bhh[:, 0:2 * H], bih[:, 2 * H:]],
                         axis=1)                                 # (1, 3H)
    b_hn = bhh[:, 2 * H:3 * H]                                   # (1, H)
    w1, b1 = params["w1_t"], params["b1"]                        # f32
    w2, b2 = params["w2_t"], params["b2"]                        # f32

    def full_spec(shape):
        return pl.BlockSpec(shape, lambda nb, c, last: (0,) * len(shape))

    in_specs = [
        # data: clamp the chunk index to the last active chunk so dead tail
        # chunks revisit the same block (no new DMA).
        pl.BlockSpec((None, t_chunk * N_blk, D),
                     lambda nb, c, last: (nb, jnp.minimum(c, last[0]), 0)),
        pl.BlockSpec((None, N_blk, 1), lambda nb, c, last: (nb, 0, 0)),
        full_spec((D, 3 * H)),                                    # W_ih fused
        full_spec((H, H)), full_spec((H, H)), full_spec((H, H)),  # W_hh r/z/n
        full_spec((1, 3 * H)),                                    # bx
        full_spec((1, H)),                                        # b_hn
        full_spec((H, U)), full_spec((1, U)),                     # w1, b1
        full_spec((U, 2 * H)), full_spec((1, 2 * H)),             # w2, b2
    ]
    out_specs = pl.BlockSpec((None, N_blk, 2 * H), lambda nb, c, last: (nb, 0, 0))
    scratch_shapes = [
        pltpu.VMEM((N_blk, H), jnp.float32),                      # h accumulator
        pltpu.VMEM((t_chunk * N_blk, H), jnp.float32),            # gx_r
        pltpu.VMEM((t_chunk * N_blk, H), jnp.float32),            # gx_z
        pltpu.VMEM((t_chunk * N_blk, H), jnp.float32),            # gx_n
    ]

    # Explicit VMEM budget (lane-padded), with 2x margin, capped at 40 MiB
    # (v7x-safe; well within v5e/v6e 128 MiB).
    data_blk_b = t_chunk * N_blk * _lanes(D) * 2
    gx_b = 3 * t_chunk * N_blk * _lanes(H) * 4
    weights_b = (D * _lanes(3 * H) * 2 + 3 * H * _lanes(H) * 4
                 + H * _lanes(U) * 4 + U * _lanes(2 * H) * 4
                 + (_lanes(3 * H) + _lanes(H) + _lanes(U) + _lanes(2 * H)) * 4)
    h_b = N_blk * _lanes(H) * 4
    out_b = N_blk * _lanes(2 * H) * 4
    len_b = N_blk * 128 * 4
    est = 2 * data_blk_b + gx_b + 2 * weights_b + h_b + 2 * out_b + 2 * len_b
    vmem_limit = int(min(max(2 * est, 8 << 20), 40 << 20))

    grid_spec = pltpu.PrefetchScalarGridSpec(
        num_scalar_prefetch=1,
        grid=(num_nb, num_chunks),
        in_specs=in_specs,
        out_specs=out_specs,
        scratch_shapes=scratch_shapes,
    )

    out = pl.pallas_call(
        functools.partial(_encoder_kernel, t_chunk, N_blk, H),
        out_shape=jax.ShapeDtypeStruct((num_nb, N_blk, 2 * H), jnp.float32),
        grid_spec=grid_spec,
        compiler_params=pltpu.CompilerParams(
            dimension_semantics=("parallel", "arbitrary"),
            vmem_limit_bytes=vmem_limit),
    )(last_chunk, data_flat, lengths_p,
      wih, whh_r, whh_z, whh_n, bx, b_hn, w1, b1, w2, b2)

    out = out.reshape(N_pad, 2 * H)[:N]    # trim batch padding (free XLA slice)
    return out[:, :H], out[:, H:]


def _reference_forward(data, lengths, params):
    """Pure-JAX f32 reference with identical semantics, for validation."""
    N, T, D = data.shape
    H = params["w_hh_t"].shape[0]
    h = jnp.zeros((N, H), jnp.float32)
    lengths_2d = lengths.astype(jnp.int32).reshape(N, 1)
    for t in range(T):
        x_t = data[:, t, :]
        gx = x_t @ params["w_ih_t"] + params["b_ih"]
        gh = h @ params["w_hh_t"] + params["b_hh"]
        r = jax.nn.sigmoid(gx[:, :H] + gh[:, :H])
        z = jax.nn.sigmoid(gx[:, H:2 * H] + gh[:, H:2 * H])
        n = jnp.tanh(gx[:, 2 * H:] + r * gh[:, 2 * H:])
        h_new = (1.0 - z) * n + z * h
        h = jnp.where(t < lengths_2d, h_new, h)
    hid1 = jnp.tanh(h @ params["w1_t"] + params["b1"])
    ml = hid1 @ params["w2_t"] + params["b2"]
    return ml[:, :H], ml[:, H:]


def make_params(key, input_dim, latent_dim, hidden_to_z0_units=20):
    """Deterministic synthetic parameters matching the PyTorch module shapes."""
    D, H, U = input_dim, latent_dim, hidden_to_z0_units
    ks = jax.random.split(key, 8)
    s = 0.1
    return {
        # GRU weights (PyTorch stores (3H, D) / (3H, H); we keep transposed,
        # gate column order r, z, n)
        "w_ih_t": s * jax.random.normal(ks[0], (D, 3 * H), jnp.float32),
        "w_hh_t": s * jax.random.normal(ks[1], (H, 3 * H), jnp.float32),
        "b_ih":   s * jax.random.normal(ks[2], (1, 3 * H), jnp.float32),
        "b_hh":   s * jax.random.normal(ks[3], (1, 3 * H), jnp.float32),
        # hidden_to_z0: Linear(H, U) -> Tanh -> Linear(U, 2H)
        "w1_t":   s * jax.random.normal(ks[4], (H, U), jnp.float32),
        "b1":     s * jax.random.normal(ks[5], (1, U), jnp.float32),
        "w2_t":   s * jax.random.normal(ks[6], (U, 2 * H), jnp.float32),
        "b2":     s * jax.random.normal(ks[7], (1, 2 * H), jnp.float32),
    }


if __name__ == "__main__":
    N, T, D = 2, 8, 16           # batch, seq-len, input_dim
    LATENT = 32                  # latent_dim
    UNITS = 20                   # hidden_to_z0_units

    key = jax.random.PRNGKey(0)
    k_data, k_params = jax.random.split(key)

    data = jax.random.normal(k_data, (N, T, D), jnp.float32)
    time_steps = jnp.tile(jnp.arange(T, dtype=jnp.float32)[None, :], (N, 1))  # unused
    lengths = jnp.array([8, 5], dtype=jnp.int32)      # per-sequence valid lengths

    params = make_params(k_params, D, LATENT, UNITS)

    mean, logvar = encoder_z0_rnn_forward(data, time_steps, lengths, params)
    jax.block_until_ready((mean, logvar))

    ref_mean, ref_logvar = _reference_forward(data, lengths, params)
    assert mean.shape == (N, LATENT) and logvar.shape == (N, LATENT)
    # bf16 input-projection operands (f32 accumulation) -> slightly looser tol.
    assert jnp.allclose(mean, ref_mean, atol=2e-2, rtol=2e-2)
    assert jnp.allclose(logvar, ref_logvar, atol=2e-2, rtol=2e-2)

    print("KERNEL_OK")
</pallas_src>

<mosaic_0001>
module attributes {stable_mosaic.version = 11 : i64} {
  func.func @_encoder_kernel(%arg0: i32, %arg1: i32, %arg2: memref<1xi32, #tpu.memory_space<smem>>, %arg3: memref<1x64x16xbf16, #tpu.memory_space<vmem>>, %arg4: memref<1x8x1xi32, #tpu.memory_space<vmem>>, %arg5: memref<16x96xbf16, #tpu.memory_space<vmem>>, %arg6: memref<32x32xf32, #tpu.memory_space<vmem>>, %arg7: memref<32x32xf32, #tpu.memory_space<vmem>>, %arg8: memref<32x32xf32, #tpu.memory_space<vmem>>, %arg9: memref<1x96xf32, #tpu.memory_space<vmem>>, %arg10: memref<1x32xf32, #tpu.memory_space<vmem>>, %arg11: memref<32x20xf32, #tpu.memory_space<vmem>>, %arg12: memref<1x20xf32, #tpu.memory_space<vmem>>, %arg13: memref<20x64xf32, #tpu.memory_space<vmem>>, %arg14: memref<1x64xf32, #tpu.memory_space<vmem>>, %arg15: memref<1x8x64xf32, #tpu.memory_space<vmem>>, %arg16: memref<8x32xf32, #tpu.memory_space<vmem>>, %arg17: memref<64x32xf32, #tpu.memory_space<vmem>>, %arg18: memref<64x32xf32, #tpu.memory_space<vmem>>, %arg19: memref<64x32xf32, #tpu.memory_space<vmem>>) attributes {dimension_semantics = [#tpu.dimension_semantics<parallel>, #tpu.dimension_semantics<arbitrary>], iteration_bounds = array<i64: 1, 1>, scalar_prefetch = 1 : i64, scratch_operands = 4 : i64, tpu.core_type = #tpu.core_type<tc>, window_params = [{transform_indices = @transform_0, window_bounds = array<i64: 1, 64, 16>}, {transform_indices = @transform_1, window_bounds = array<i64: 1, 8, 1>}, {pipeline_mode = #tpu.pipeline_mode<synchronous>, transform_indices = @transform_2, window_bounds = array<i64: 16, 96>}, {pipeline_mode = #tpu.pipeline_mode<synchronous>, transform_indices = @transform_3, window_bounds = array<i64: 32, 32>}, {pipeline_mode = #tpu.pipeline_mode<synchronous>, transform_indices = @transform_4, window_bounds = array<i64: 32, 32>}, {pipeline_mode = #tpu.pipeline_mode<synchronous>, transform_indices = @transform_5, window_bounds = array<i64: 32, 32>}, {pipeline_mode = #tpu.pipeline_mode<synchronous>, transform_indices = @transform_6, window_bounds = array<i64: 1, 96>}, {pipeline_mode = #tpu.pipeline_mode<synchronous>, transform_indices = @transform_7, window_bounds = array<i64: 1, 32>}, {pipeline_mode = #tpu.pipeline_mode<synchronous>, transform_indices = @transform_8, window_bounds = array<i64: 32, 20>}, {pipeline_mode = #tpu.pipeline_mode<synchronous>, transform_indices = @transform_9, window_bounds = array<i64: 1, 20>}, {pipeline_mode = #tpu.pipeline_mode<synchronous>, transform_indices = @transform_10, window_bounds = array<i64: 20, 64>}, {pipeline_mode = #tpu.pipeline_mode<synchronous>, transform_indices = @transform_11, window_bounds = array<i64: 1, 64>}, {transform_indices = @transform_12, window_bounds = array<i64: 1, 8, 64>}]} {
    %c0_i32 = arith.constant 0 : i32
    %0 = arith.cmpi eq, %arg1, %c0_i32 : i32
    %1 = arith.extui %0 : i1 to i32
    %c0_i32_0 = arith.constant 0 : i32
    %2 = arith.cmpi ne, %1, %c0_i32_0 : i32
    scf.if %2 {
      %cst = arith.constant 0.000000e+00 : f32
      %10 = vector.broadcast %cst : f32 to vector<8x32xf32>
      %c0_4 = arith.constant 0 : index
      %c0_5 = arith.constant 0 : index
      %11 = vector.load %arg16[%c0_4, %c0_5] : memref<8x32xf32, #tpu.memory_space<vmem>>, vector<8x32xf32>
      tpu.vector_store %arg16[%c0_4, %c0_5], %10 {strides = array<i32>} : memref<8x32xf32, #tpu.memory_space<vmem>>, vector<8x32xf32>,
    } else {
    }
    %c0 = arith.constant 0 : index
    %3 = memref.load %arg2[%c0] : memref<1xi32, #tpu.memory_space<smem>>
    %4 = arith.cmpi sle, %arg1, %3 : i32
    %5 = arith.extui %4 : i1 to i32
    %c0_i32_1 = arith.constant 0 : i32
    %6 = arith.cmpi ne, %5, %c0_i32_1 : i32
    scf.if %6 {
      %c0_4 = arith.constant 0 : index
      %c0_5 = arith.constant 0 : index
      %c0_6 = arith.constant 0 : index
      %10 = vector.load %arg3[%c0_4, %c0_5, %c0_6] : memref<1x64x16xbf16, #tpu.memory_space<vmem>>, vector<1x64x16xbf16>
      %11 = vector.shape_cast %10 : vector<1x64x16xbf16> to vector<64x16xbf16>
      %c0_7 = arith.constant 0 : index
      %c0_8 = arith.constant 0 : index
      %12 = vector.load %arg5[%c0_7, %c0_8] : memref<16x96xbf16, #tpu.memory_space<vmem>>, vector<16x96xbf16>
      %cst = arith.constant dense<0.000000e+00> : vector<64x96xf32>
      %13 = tpu.matmul %11, %12, %cst {dimension_numbers = #tpu.dot_dimension_numbers<[1], [0], [0], [1], [0, 0, 1, 1], [], []>} : vector<64x16xbf16>, vector<16x96xbf16>, vector<64x96xf32> -> vector<64x96xf32>
      %c0_9 = arith.constant 0 : index
      %c0_10 = arith.constant 0 : index
      %14 = vector.load %arg9[%c0_9, %c0_10] : memref<1x96xf32, #tpu.memory_space<vmem>>, vector<1x96xf32>
      %15 = vector.broadcast %14 : vector<1x96xf32> to vector<64x96xf32>
      %16 = arith.addf %13, %15 : vector<64x96xf32>
      %17 = vector.extract_strided_slice %16 {offsets = [0, 0], sizes = [64, 32], strides = [1, 1]} : vector<64x96xf32> to vector<64x32xf32>
      %c0_11 = arith.constant 0 : index
      %c0_12 = arith.constant 0 : index
      %18 = vector.load %arg17[%c0_11, %c0_12] : memref<64x32xf32, #tpu.memory_space<vmem>>, vector<64x32xf32>
      tpu.vector_store %arg17[%c0_11, %c0_12], %17 {strides = array<i32>} : memref<64x32xf32, #tpu.memory_space<vmem>>, vector<64x32xf32>,
      %19 = vector.extract_strided_slice %16 {offsets = [0, 32], sizes = [64, 32], strides = [1, 1]} : vector<64x96xf32> to vector<64x32xf32>
      %c0_13 = arith.constant 0 : index
      %c0_14 = arith.constant 0 : index
      %20 = vector.load %arg18[%c0_13, %c0_14] : memref<64x32xf32, #tpu.memory_space<vmem>>, vector<64x32xf32>
      tpu.vector_store %arg18[%c0_13, %c0_14], %19 {strides = array<i32>} : memref<64x32xf32, #tpu.memory_space<vmem>>, vector<64x32xf32>,
      %21 = vector.extract_strided_slice %16 {offsets = [0, 64], sizes = [64, 32], strides = [1, 1]} : vector<64x96xf32> to vector<64x32xf32>
      %c0_15 = arith.constant 0 : index
      %c0_16 = arith.constant 0 : index
      %22 = vector.load %arg19[%c0_15, %c0_16] : memref<64x32xf32, #tpu.memory_space<vmem>>, vector<64x32xf32>
      tpu.vector_store %arg19[%c0_15, %c0_16], %21 {strides = array<i32>} : memref<64x32xf32, #tpu.memory_space<vmem>>, vector<64x32xf32>,
      %c0_17 = arith.constant 0 : index
      %c0_18 = arith.constant 0 : index
      %23 = vector.load %arg6[%c0_17, %c0_18] : memref<32x32xf32, #tpu.memory_space<vmem>>, vector<32x32xf32>
      %c0_19 = arith.constant 0 : index
      %c0_20 = arith.constant 0 : index
      %24 = vector.load %arg7[%c0_19, %c0_20] : memref<32x32xf32, #tpu.memory_space<vmem>>, vector<32x32xf32>
      %c0_21 = arith.constant 0 : index
      %c0_22 = arith.constant 0 : index
      %25 = vector.load %arg8[%c0_21, %c0_22] : memref<32x32xf32, #tpu.memory_space<vmem>>, vector<32x32xf32>
      %c0_23 = arith.constant 0 : index
      %c0_24 = arith.constant 0 : index
      %c0_25 = arith.constant 0 : index
      %26 = vector.load %arg4[%c0_23, %c0_24, %c0_25] : memref<1x8x1xi32, #tpu.memory_space<vmem>>, vector<1x8x1xi32>
      %27 = vector.shape_cast %26 : vector<1x8x1xi32> to vector<8x1xi32>
      %c0_26 = arith.constant 0 : index
      %c0_27 = arith.constant 0 : index
      %28 = vector.load %arg10[%c0_26, %c0_27] : memref<1x32xf32, #tpu.memory_space<vmem>>, vector<1x32xf32>
      %29 = vector.shape_cast %28 : vector<1x32xf32> to vector<1x32xf32>
      %30 = vector.broadcast %29 : vector<1x32xf32> to vector<8x32xf32>
      %c8_i32 = arith.constant 8 : i32
      %31 = arith.muli %arg1, %c8_i32 : i32
      %c0_28 = arith.constant 0 : index
      %c0_29 = arith.constant 0 : index
      %32 = vector.load %arg16[%c0_28, %c0_29] : memref<8x32xf32, #tpu.memory_space<vmem>>, vector<8x32xf32>
      %c0_i32_30 = arith.constant 0 : i32
      %c8_i32_31 = arith.constant 8 : i32
      %33 = arith.muli %c0_i32_30, %c8_i32_31 : i32
      %34 = tpu.assume_multiple %33, 8 : i32
      %35 = arith.index_cast %34 : i32 to index
      %c0_32 = arith.constant 0 : index
      %36 = vector.load %arg17[%35, %c0_32] : memref<64x32xf32, #tpu.memory_space<vmem>>, vector<8x32xf32>
      %37 = arith.index_cast %34 : i32 to index
      %c0_33 = arith.constant 0 : index
      %38 = vector.load %arg18[%37, %c0_33] : memref<64x32xf32, #tpu.memory_space<vmem>>, vector<8x32xf32>
      %39 = arith.index_cast %34 : i32 to index
      %c0_34 = arith.constant 0 : index
      %40 = vector.load %arg19[%39, %c0_34] : memref<64x32xf32, #tpu.memory_space<vmem>>, vector<8x32xf32>
      %cst_35 = arith.constant dense<0.000000e+00> : vector<8x32xf32>
      %41 = tpu.matmul %32, %23, %cst_35 {dimension_numbers = #tpu.dot_dimension_numbers<[1], [0], [0], [1], [0, 0, 1, 1], [], []>} : vector<8x32xf32>, vector<32x32xf32>, vector<8x32xf32> -> vector<8x32xf32>
      %cst_36 = arith.constant dense<0.000000e+00> : vector<8x32xf32>
      %42 = tpu.matmul %32, %24, %cst_36 {dimension_numbers = #tpu.dot_dimension_numbers<[1], [0], [0], [1], [0, 0, 1, 1], [], []>} : vector<8x32xf32>, vector<32x32xf32>, vector<8x32xf32> -> vector<8x32xf32>
      %cst_37 = arith.constant dense<0.000000e+00> : vector<8x32xf32>
      %43 = tpu.matmul %32, %25, %cst_37 {dimension_numbers = #tpu.dot_dimension_numbers<[1], [0], [0], [1], [0, 0, 1, 1], [], []>} : vector<8x32xf32>, vector<32x32xf32>, vector<8x32xf32> -> vector<8x32xf32>
      %44 = arith.addf %36, %41 : vector<8x32xf32>
      %cst_38 = arith.constant 5.000000e-01 : f32
      %45 = vector.broadcast %cst_38 : f32 to vector<8x32xf32>
      %46 = arith.mulf %45, %44 : vector<8x32xf32>
      %47 = math.tanh %46 : vector<8x32xf32>
      %cst_39 = arith.constant 1.000000e+00 : f32
      %48 = vector.broadcast %cst_39 : f32 to vector<8x32xf32>
      %49 = arith.addf %47, %48 : vector<8x32xf32>
      %cst_40 = arith.constant 5.000000e-01 : f32
      %50 = vector.broadcast %cst_40 : f32 to vector<8x32xf32>
      %51 = arith.mulf %50, %49 : vector<8x32xf32>
      %52 = arith.addf %38, %42 : vector<8x32xf32>
      %cst_41 = arith.constant 5.000000e-01 : f32
      %53 = vector.broadcast %cst_41 : f32 to vector<8x32xf32>
      %54 = arith.mulf %53, %52 : vector<8x32xf32>
      %55 = math.tanh %54 : vector<8x32xf32>
      %cst_42 = arith.constant 1.000000e+00 : f32
      %56 = vector.broadcast %cst_42 : f32 to vector<8x32xf32>
      %57 = arith.addf %55, %56 : vector<8x32xf32>
      %cst_43 = arith.constant 5.000000e-01 : f32
      %58 = vector.broadcast %cst_43 : f32 to vector<8x32xf32>
      %59 = arith.mulf %58, %57 : vector<8x32xf32>
      %60 = arith.addf %43, %30 : vector<8x32xf32>
      %61 = arith.mulf %51, %60 : vector<8x32xf32>
      %62 = arith.addf %40, %61 : vector<8x32xf32>
      %63 = math.tanh %62 : vector<8x32xf32>
      %cst_44 = arith.constant 1.000000e+00 : f32
      %64 = vector.broadcast %cst_44 : f32 to vector<8x32xf32>
      %65 = arith.subf %64, %59 : vector<8x32xf32>
      %66 = arith.mulf %65, %63 : vector<8x32xf32>
      %67 = arith.mulf %59, %32 : vector<8x32xf32>
      %68 = arith.addf %66, %67 : vector<8x32xf32>
      %69 = arith.addi %31, %c0_i32_30 : i32
      %70 = vector.broadcast %69 : i32 to vector<8x1xi32>
      %71 = arith.cmpi slt, %70, %27 : vector<8x1xi32>
      %72 = vector.shape_cast %71 : vector<8x1xi1> to vector<8x1xi1>
      %73 = vector.broadcast %72 : vector<8x1xi1> to vector<8x32xi1>
      %74 = arith.select %73, %68, %32 : vector<8x32xi1>, vector<8x32xf32>
      %c1_i32 = arith.constant 1 : i32
      %c8_i32_45 = arith.constant 8 : i32
      %75 = arith.muli %c1_i32, %c8_i32_45 : i32
      %76 = tpu.assume_multiple %75, 8 : i32
      %77 = arith.index_cast %76 : i32 to index
      %c0_46 = arith.constant 0 : index
      %78 = vector.load %arg17[%77, %c0_46] : memref<64x32xf32, #tpu.memory_space<vmem>>, vector<8x32xf32>
      %79 = arith.index_cast %76 : i32 to index
      %c0_47 = arith.constant 0 : index
      %80 = vector.load %arg18[%79, %c0_47] : memref<64x32xf32, #tpu.memory_space<vmem>>, vector<8x32xf32>
      %81 = arith.index_cast %76 : i32 to index
      %c0_48 = arith.constant 0 : index
      %82 = vector.load %arg19[%81, %c0_48] : memref<64x32xf32, #tpu.memory_space<vmem>>, vector<8x32xf32>
      %cst_49 = arith.constant dense<0.000000e+00> : vector<8x32xf32>
      %83 = tpu.matmul %74, %23, %cst_49 {dimension_numbers = #tpu.dot_dimension_numbers<[1], [0], [0], [1], [0, 0, 1, 1], [], []>} : vector<8x32xf32>, vector<32x32xf32>, vector<8x32xf32> -> vector<8x32xf32>
      %cst_50 = arith.constant dense<0.000000e+00> : vector<8x32xf32>
      %84 = tpu.matmul %74, %24, %cst_50 {dimension_numbers = #tpu.dot_dimension_numbers<[1], [0], [0], [1], [0, 0, 1, 1], [], []>} : vector<8x32xf32>, vector<32x32xf32>, vector<8x32xf32> -> vector<8x32xf32>
      %cst_51 = arith.constant dense<0.000000e+00> : vector<8x32xf32>
      %85 = tpu.matmul %74, %25, %cst_51 {dimension_numbers = #tpu.dot_dimension_numbers<[1], [0], [0], [1], [0, 0, 1, 1], [], []>} : vector<8x32xf32>, vector<32x32xf32>, vector<8x32xf32> -> vector<8x32xf32>
      %86 = arith.addf %78, %83 : vector<8x32xf32>
      %cst_52 = arith.constant 5.000000e-01 : f32
      %87 = vector.broadcast %cst_52 : f32 to vector<8x32xf32>
      %88 = arith.mulf %87, %86 : vector<8x32xf32>
      %89 = math.tanh %88 : vector<8x32xf32>
      %cst_53 = arith.constant 1.000000e+00 : f32
      %90 = vector.broadcast %cst_53 : f32 to vector<8x32xf32>
      %91 = arith.addf %89, %90 : vector<8x32xf32>
      %cst_54 = arith.constant 5.000000e-01 : f32
      %92 = vector.broadcast %cst_54 : f32 to vector<8x32xf32>
      %93 = arith.mulf %92, %91 : vector<8x32xf32>
      %94 = arith.addf %80, %84 : vector<8x32xf32>
      %cst_55 = arith.constant 5.000000e-01 : f32
      %95 = vector.broadcast %cst_55 : f32 to vector<8x32xf32>
      %96 = arith.mulf %95, %94 : vector<8x32xf32>
      %97 = math.tanh %96 : vector<8x32xf32>
      %cst_56 = arith.constant 1.000000e+00 : f32
      %98 = vector.broadcast %cst_56 : f32 to vector<8x32xf32>
      %99 = arith.addf %97, %98 : vector<8x32xf32>
      %cst_57 = arith.constant 5.000000e-01 : f32
      %100 = vector.broadcast %cst_57 : f32 to vector<8x32xf32>
      %101 = arith.mulf %100, %99 : vector<8x32xf32>
      %102 = arith.addf %85, %30 : vector<8x32xf32>
      %103 = arith.mulf %93, %102 : vector<8x32xf32>
      %104 = arith.addf %82, %103 : vector<8x32xf32>
      %105 = math.tanh %104 : vector<8x32xf32>
      %cst_58 = arith.constant 1.000000e+00 : f32
      %106 = vector.broadcast %cst_58 : f32 to vector<8x32xf32>
      %107 = arith.subf %106, %101 : vector<8x32xf32>
      %108 = arith.mulf %107, %105 : vector<8x32xf32>
      %109 = arith.mulf %101, %74 : vector<8x32xf32>
      %110 = arith.addf %108, %109 : vector<8x32xf32>
      %111 = arith.addi %31, %c1_i32 : i32
      %112 = vector.broadcast %111 : i32 to vector<8x1xi32>
      %113 = arith.cmpi slt, %112, %27 : vector<8x1xi32>
      %114 = vector.shape_cast %113 : vector<8x1xi1> to vector<8x1xi1>
      %115 = vector.broadcast %114 : vector<8x1xi1> to vector<8x32xi1>
      %116 = arith.select %115, %110, %74 : vector<8x32xi1>, vector<8x32xf32>
      %c2_i32 = arith.constant 2 : i32
      %c8_i32_59 = arith.constant 8 : i32
      %117 = arith.muli %c2_i32, %c8_i32_59 : i32
      %118 = tpu.assume_multiple %117, 8 : i32
      %119 = arith.index_cast %118 : i32 to index
      %c0_60 = arith.constant 0 : index
      %120 = vector.load %arg17[%119, %c0_60] : memref<64x32xf32, #tpu.memory_space<vmem>>, vector<8x32xf32>
      %121 = arith.index_cast %118 : i32 to index
      %c0_61 = arith.constant 0 : index
      %122 = vector.load %arg18[%121, %c0_61] : memref<64x32xf32, #tpu.memory_space<vmem>>, vector<8x32xf32>
      %123 = arith.index_cast %118 : i32 to index
      %c0_62 = arith.constant 0 : index
      %124 = vector.load %arg19[%123, %c0_62] : memref<64x32xf32, #tpu.memory_space<vmem>>, vector<8x32xf32>
      %cst_63 = arith.constant dense<0.000000e+00> : vector<8x32xf32>
      %125 = tpu.matmul %116, %23, %cst_63 {dimension_numbers = #tpu.dot_dimension_numbers<[1], [0], [0], [1], [0, 0, 1, 1], [], []>} : vector<8x32xf32>, vector<32x32xf32>, vector<8x32xf32> -> vector<8x32xf32>
      %cst_64 = arith.constant dense<0.000000e+00> : vector<8x32xf32>
      %126 = tpu.matmul %116, %24, %cst_64 {dimension_numbers = #tpu.dot_dimension_numbers<[1], [0], [0], [1], [0, 0, 1, 1], [], []>} : vector<8x32xf32>, vector<32x32xf32>, vector<8x32xf32> -> vector<8x32xf32>
      %cst_65 = arith.constant dense<0.000000e+00> : vector<8x32xf32>
      %127 = tpu.matmul %116, %25, %cst_65 {dimension_numbers = #tpu.dot_dimension_numbers<[1], [0], [0], [1], [0, 0, 1, 1], [], []>} : vector<8x32xf32>, vector<32x32xf32>, vector<8x32xf32> -> vector<8x32xf32>
      %128 = arith.addf %120, %125 : vector<8x32xf32>
      %cst_66 = arith.constant 5.000000e-01 : f32
      %129 = vector.broadcast %cst_66 : f32 to vector<8x32xf32>
      %130 = arith.mulf %129, %128 : vector<8x32xf32>
      %131 = math.tanh %130 : vector<8x32xf32>
      %cst_67 = arith.constant 1.000000e+00 : f32
      %132 = vector.broadcast %cst_67 : f32 to vector<8x32xf32>
      %133 = arith.addf %131, %132 : vector<8x32xf32>
      %cst_68 = arith.constant 5.000000e-01 : f32
      %134 = vector.broadcast %cst_68 : f32 to vector<8x32xf32>
      %135 = arith.mulf %134, %133 : vector<8x32xf32>
      %136 = arith.addf %122, %126 : vector<8x32xf32>
      %cst_69 = arith.constant 5.000000e-01 : f32
      %137 = vector.broadcast %cst_69 : f32 to vector<8x32xf32>
      %138 = arith.mulf %137, %136 : vector<8x32xf32>
      %139 = math.tanh %138 : vector<8x32xf32>
      %cst_70 = arith.constant 1.000000e+00 : f32
      %140 = vector.broadcast %cst_70 : f32 to vector<8x32xf32>
      %141 = arith.addf %139, %140 : vector<8x32xf32>
      %cst_71 = arith.constant 5.000000e-01 : f32
      %142 = vector.broadcast %cst_71 : f32 to vector<8x32xf32>
      %143 = arith.mulf %142, %141 : vector<8x32xf32>
      %144 = arith.addf %127, %30 : vector<8x32xf32>
      %145 = arith.mulf %135, %144 : vector<8x32xf32>
      %146 = arith.addf %124, %145 : vector<8x32xf32>
      %147 = math.tanh %146 : vector<8x32xf32>
      %cst_72 = arith.constant 1.000000e+00 : f32
      %148 = vector.broadcast %cst_72 : f32 to vector<8x32xf32>
      %149 = arith.subf %148, %143 : vector<8x32xf32>
      %150 = arith.mulf %149, %147 : vector<8x32xf32>
      %151 = arith.mulf %143, %116 : vector<8x32xf32>
      %152 = arith.addf %150, %151 : vector<8x32xf32>
      %153 = arith.addi %31, %c2_i32 : i32
      %154 = vector.broadcast %153 : i32 to vector<8x1xi32>
      %155 = arith.cmpi slt, %154, %27 : vector<8x1xi32>
      %156 = vector.shape_cast %155 : vector<8x1xi1> to vector<8x1xi1>
      %157 = vector.broadcast %156 : vector<8x1xi1> to vector<8x32xi1>
      %158 = arith.select %157, %152, %116 : vector<8x32xi1>, vector<8x32xf32>
      %c3_i32 = arith.constant 3 : i32
      %c8_i32_73 = arith.constant 8 : i32
      %159 = arith.muli %c3_i32, %c8_i32_73 : i32
      %160 = tpu.assume_multiple %159, 8 : i32
      %161 = arith.index_cast %160 : i32 to index
      %c0_74 = arith.constant 0 : index
      %162 = vector.load %arg17[%161, %c0_74] : memref<64x32xf32, #tpu.memory_space<vmem>>, vector<8x32xf32>
      %163 = arith.index_cast %160 : i32 to index
      %c0_75 = arith.constant 0 : index
      %164 = vector.load %arg18[%163, %c0_75] : memref<64x32xf32, #tpu.memory_space<vmem>>, vector<8x32xf32>
      %165 = arith.index_cast %160 : i32 to index
      %c0_76 = arith.constant 0 : index
      %166 = vector.load %arg19[%165, %c0_76] : memref<64x32xf32, #tpu.memory_space<vmem>>, vector<8x32xf32>
      %cst_77 = arith.constant dense<0.000000e+00> : vector<8x32xf32>
      %167 = tpu.matmul %158, %23, %cst_77 {dimension_numbers = #tpu.dot_dimension_numbers<[1], [0], [0], [1], [0, 0, 1, 1], [], []>} : vector<8x32xf32>, vector<32x32xf32>, vector<8x32xf32> -> vector<8x32xf32>
      %cst_78 = arith.constant dense<0.000000e+00> : vector<8x32xf32>
      %168 = tpu.matmul %158, %24, %cst_78 {dimension_numbers = #tpu.dot_dimension_numbers<[1], [0], [0], [1], [0, 0, 1, 1], [], []>} : vector<8x32xf32>, vector<32x32xf32>, vector<8x32xf32> -> vector<8x32xf32>
      %cst_79 = arith.constant dense<0.000000e+00> : vector<8x32xf32>
      %169 = tpu.matmul %158, %25, %cst_79 {dimension_numbers = #tpu.dot_dimension_numbers<[1], [0], [0], [1], [0, 0, 1, 1], [], []>} : vector<8x32xf32>, vector<32x32xf32>, vector<8x32xf32> -> vector<8x32xf32>
      %170 = arith.addf %162, %167 : vector<8x32xf32>
      %cst_80 = arith.constant 5.000000e-01 : f32
      %171 = vector.broadcast %cst_80 : f32 to vector<8x32xf32>
      %172 = arith.mulf %171, %170 : vector<8x32xf32>
      %173 = math.tanh %172 : vector<8x32xf32>
      %cst_81 = arith.constant 1.000000e+00 : f32
      %174 = vector.broadcast %cst_81 : f32 to vector<8x32xf32>
      %175 = arith.addf %173, %174 : vector<8x32xf32>
      %cst_82 = arith.constant 5.000000e-01 : f32
      %176 = vector.broadcast %cst_82 : f32 to vector<8x32xf32>
      %177 = arith.mulf %176, %175 : vector<8x32xf32>
      %178 = arith.addf %164, %168 : vector<8x32xf32>
      %cst_83 = arith.constant 5.000000e-01 : f32
      %179 = vector.broadcast %cst_83 : f32 to vector<8x32xf32>
      %180 = arith.mulf %179, %178 : vector<8x32xf32>
      %181 = math.tanh %180 : vector<8x32xf32>
      %cst_84 = arith.constant 1.000000e+00 : f32
      %182 = vector.broadcast %cst_84 : f32 to vector<8x32xf32>
      %183 = arith.addf %181, %182 : vector<8x32xf32>
      %cst_85 = arith.constant 5.000000e-01 : f32
      %184 = vector.broadcast %cst_85 : f32 to vector<8x32xf32>
      %185 = arith.mulf %184, %183 : vector<8x32xf32>
      %186 = arith.addf %169, %30 : vector<8x32xf32>
      %187 = arith.mulf %177, %186 : vector<8x32xf32>
      %188 = arith.addf %166, %187 : vector<8x32xf32>
      %189 = math.tanh %188 : vector<8x32xf32>
      %cst_86 = arith.constant 1.000000e+00 : f32
      %190 = vector.broadcast %cst_86 : f32 to vector<8x32xf32>
      %191 = arith.subf %190, %185 : vector<8x32xf32>
      %192 = arith.mulf %191, %189 : vector<8x32xf32>
      %193 = arith.mulf %185, %158 : vector<8x32xf32>
      %194 = arith.addf %192, %193 : vector<8x32xf32>
      %195 = arith.addi %31, %c3_i32 : i32
      %196 = vector.broadcast %195 : i32 to vector<8x1xi32>
      %197 = arith.cmpi slt, %196, %27 : vector<8x1xi32>
      %198 = vector.shape_cast %197 : vector<8x1xi1> to vector<8x1xi1>
      %199 = vector.broadcast %198 : vector<8x1xi1> to vector<8x32xi1>
      %200 = arith.select %199, %194, %158 : vector<8x32xi1>, vector<8x32xf32>
      %c4_i32 = arith.constant 4 : i32
      %c8_i32_87 = arith.constant 8 : i32
      %201 = arith.muli %c4_i32, %c8_i32_87 : i32
      %202 = tpu.assume_multiple %201, 8 : i32
      %203 = arith.index_cast %202 : i32 to index
      %c0_88 = arith.constant 0 : index
      %204 = vector.load %arg17[%203, %c0_88] : memref<64x32xf32, #tpu.memory_space<vmem>>, vector<8x32xf32>
      %205 = arith.index_cast %202 : i32 to index
      %c0_89 = arith.constant 0 : index
      %206 = vector.load %arg18[%205, %c0_89] : memref<64x32xf32, #tpu.memory_space<vmem>>, vector<8x32xf32>
      %207 = arith.index_cast %202 : i32 to index
      %c0_90 = arith.constant 0 : index
      %208 = vector.load %arg19[%207, %c0_90] : memref<64x32xf32, #tpu.memory_space<vmem>>, vector<8x32xf32>
      %cst_91 = arith.constant dense<0.000000e+00> : vector<8x32xf32>
      %209 = tpu.matmul %200, %23, %cst_91 {dimension_numbers = #tpu.dot_dimension_numbers<[1], [0], [0], [1], [0, 0, 1, 1], [], []>} : vector<8x32xf32>, vector<32x32xf32>, vector<8x32xf32> -> vector<8x32xf32>
      %cst_92 = arith.constant dense<0.000000e+00> : vector<8x32xf32>
      %210 = tpu.matmul %200, %24, %cst_92 {dimension_numbers = #tpu.dot_dimension_numbers<[1], [0], [0], [1], [0, 0, 1, 1], [], []>} : vector<8x32xf32>, vector<32x32xf32>, vector<8x32xf32> -> vector<8x32xf32>
      %cst_93 = arith.constant dense<0.000000e+00> : vector<8x32xf32>
      %211 = tpu.matmul %200, %25, %cst_93 {dimension_numbers = #tpu.dot_dimension_numbers<[1], [0], [0], [1], [0, 0, 1, 1], [], []>} : vector<8x32xf32>, vector<32x32xf32>, vector<8x32xf32> -> vector<8x32xf32>
      %212 = arith.addf %204, %209 : vector<8x32xf32>
      %cst_94 = arith.constant 5.000000e-01 : f32
      %213 = vector.broadcast %cst_94 : f32 to vector<8x32xf32>
      %214 = arith.mulf %213, %212 : vector<8x32xf32>
      %215 = math.tanh %214 : vector<8x32xf32>
      %cst_95 = arith.constant 1.000000e+00 : f32
      %216 = vector.broadcast %cst_95 : f32 to vector<8x32xf32>
      %217 = arith.addf %215, %216 : vector<8x32xf32>
      %cst_96 = arith.constant 5.000000e-01 : f32
      %218 = vector.broadcast %cst_96 : f32 to vector<8x32xf32>
      %219 = arith.mulf %218, %217 : vector<8x32xf32>
      %220 = arith.addf %206, %210 : vector<8x32xf32>
      %cst_97 = arith.constant 5.000000e-01 : f32
      %221 = vector.broadcast %cst_97 : f32 to vector<8x32xf32>
      %222 = arith.mulf %221, %220 : vector<8x32xf32>
      %223 = math.tanh %222 : vector<8x32xf32>
      %cst_98 = arith.constant 1.000000e+00 : f32
      %224 = vector.broadcast %cst_98 : f32 to vector<8x32xf32>
      %225 = arith.addf %223, %224 : vector<8x32xf32>
      %cst_99 = arith.constant 5.000000e-01 : f32
      %226 = vector.broadcast %cst_99 : f32 to vector<8x32xf32>
      %227 = arith.mulf %226, %225 : vector<8x32xf32>
      %228 = arith.addf %211, %30 : vector<8x32xf32>
      %229 = arith.mulf %219, %228 : vector<8x32xf32>
      %230 = arith.addf %208, %229 : vector<8x32xf32>
      %231 = math.tanh %230 : vector<8x32xf32>
      %cst_100 = arith.constant 1.000000e+00 : f32
      %232 = vector.broadcast %cst_100 : f32 to vector<8x32xf32>
      %233 = arith.subf %232, %227 : vector<8x32xf32>
      %234 = arith.mulf %233, %231 : vector<8x32xf32>
      %235 = arith.mulf %227, %200 : vector<8x32xf32>
      %236 = arith.addf %234, %235 : vector<8x32xf32>
      %237 = arith.addi %31, %c4_i32 : i32
      %238 = vector.broadcast %237 : i32 to vector<8x1xi32>
      %239 = arith.cmpi slt, %238, %27 : vector<8x1xi32>
      %240 = vector.shape_cast %239 : vector<8x1xi1> to vector<8x1xi1>
      %241 = vector.broadcast %240 : vector<8x1xi1> to vector<8x32xi1>
      %242 = arith.select %241, %236, %200 : vector<8x32xi1>, vector<8x32xf32>
      %c5_i32 = arith.constant 5 : i32
      %c8_i32_101 = arith.constant 8 : i32
      %243 = arith.muli %c5_i32, %c8_i32_101 : i32
      %244 = tpu.assume_multiple %243, 8 : i32
      %245 = arith.index_cast %244 : i32 to index
      %c0_102 = arith.constant 0 : index
      %246 = vector.load %arg17[%245, %c0_102] : memref<64x32xf32, #tpu.memory_space<vmem>>, vector<8x32xf32>
      %247 = arith.index_cast %244 : i32 to index
      %c0_103 = arith.constant 0 : index
      %248 = vector.load %arg18[%247, %c0_103] : memref<64x32xf32, #tpu.memory_space<vmem>>, vector<8x32xf32>
      %249 = arith.index_cast %244 : i32 to index
      %c0_104 = arith.constant 0 : index
      %250 = vector.load %arg19[%249, %c0_104] : memref<64x32xf32, #tpu.memory_space<vmem>>, vector<8x32xf32>
      %cst_105 = arith.constant dense<0.000000e+00> : vector<8x32xf32>
      %251 = tpu.matmul %242, %23, %cst_105 {dimension_numbers = #tpu.dot_dimension_numbers<[1], [0], [0], [1], [0, 0, 1, 1], [], []>} : vector<8x32xf32>, vector<32x32xf32>, vector<8x32xf32> -> vector<8x32xf32>
      %cst_106 = arith.constant dense<0.000000e+00> : vector<8x32xf32>
      %252 = tpu.matmul %242, %24, %cst_106 {dimension_numbers = #tpu.dot_dimension_numbers<[1], [0], [0], [1], [0, 0, 1, 1], [], []>} : vector<8x32xf32>, vector<32x32xf32>, vector<8x32xf32> -> vector<8x32xf32>
      %cst_107 = arith.constant dense<0.000000e+00> : vector<8x32xf32>
      %253 = tpu.matmul %242, %25, %cst_107 {dimension_numbers = #tpu.dot_dimension_numbers<[1], [0], [0], [1], [0, 0, 1, 1], [], []>} : vector<8x32xf32>, vector<32x32xf32>, vector<8x32xf32> -> vector<8x32xf32>
      %254 = arith.addf %246, %251 : vector<8x32xf32>
      %cst_108 = arith.constant 5.000000e-01 : f32
      %255 = vector.broadcast %cst_108 : f32 to vector<8x32xf32>
      %256 = arith.mulf %255, %254 : vector<8x32xf32>
      %257 = math.tanh %256 : vector<8x32xf32>
      %cst_109 = arith.constant 1.000000e+00 : f32
      %258 = vector.broadcast %cst_109 : f32 to vector<8x32xf32>
      %259 = arith.addf %257, %258 : vector<8x32xf32>
      %cst_110 = arith.constant 5.000000e-01 : f32
      %260 = vector.broadcast %cst_110 : f32 to vector<8x32xf32>
      %261 = arith.mulf %260, %259 : vector<8x32xf32>
      %262 = arith.addf %248, %252 : vector<8x32xf32>
      %cst_111 = arith.constant 5.000000e-01 : f32
      %263 = vector.broadcast %cst_111 : f32 to vector<8x32xf32>
      %264 = arith.mulf %263, %262 : vector<8x32xf32>
      %265 = math.tanh %264 : vector<8x32xf32>
      %cst_112 = arith.constant 1.000000e+00 : f32
      %266 = vector.broadcast %cst_112 : f32 to vector<8x32xf32>
      %267 = arith.addf %265, %266 : vector<8x32xf32>
      %cst_113 = arith.constant 5.000000e-01 : f32
      %268 = vector.broadcast %cst_113 : f32 to vector<8x32xf32>
      %269 = arith.mulf %268, %267 : vector<8x32xf32>
      %270 = arith.addf %253, %30 : vector<8x32xf32>
      %271 = arith.mulf %261, %270 : vector<8x32xf32>
      %272 = arith.addf %250, %271 : vector<8x32xf32>
      %273 = math.tanh %272 : vector<8x32xf32>
      %cst_114 = arith.constant 1.000000e+00 : f32
      %274 = vector.broadcast %cst_114 : f32 to vector<8x32xf32>
      %275 = arith.subf %274, %269 : vector<8x32xf32>
      %276 = arith.mulf %275, %273 : vector<8x32xf32>
      %277 = arith.mulf %269, %242 : vector<8x32xf32>
      %278 = arith.addf %276, %277 : vector<8x32xf32>
      %279 = arith.addi %31, %c5_i32 : i32
      %280 = vector.broadcast %279 : i32 to vector<8x1xi32>
      %281 = arith.cmpi slt, %280, %27 : vector<8x1xi32>
      %282 = vector.shape_cast %281 : vector<8x1xi1> to vector<8x1xi1>
      %283 = vector.broadcast %282 : vector<8x1xi1> to vector<8x32xi1>
      %284 = arith.select %283, %278, %242 : vector<8x32xi1>, vector<8x32xf32>
      %c6_i32 = arith.constant 6 : i32
      %c8_i32_115 = arith.constant 8 : i32
      %285 = arith.muli %c6_i32, %c8_i32_115 : i32
      %286 = tpu.assume_multiple %285, 8 : i32
      %287 = arith.index_cast %286 : i32 to index
      %c0_116 = arith.constant 0 : index
      %288 = vector.load %arg17[%287, %c0_116] : memref<64x32xf32, #tpu.memory_space<vmem>>, vector<8x32xf32>
      %289 = arith.index_cast %286 : i32 to index
      %c0_117 = arith.constant 0 : index
      %290 = vector.load %arg18[%289, %c0_117] : memref<64x32xf32, #tpu.memory_space<vmem>>, vector<8x32xf32>
      %291 = arith.index_cast %286 : i32 to index
      %c0_118 = arith.constant 0 : index
      %292 = vector.load %arg19[%291, %c0_118] : memref<64x32xf32, #tpu.memory_space<vmem>>, vector<8x32xf32>
      %cst_119 = arith.constant dense<0.000000e+00> : vector<8x32xf32>
      %293 = tpu.matmul %284, %23, %cst_119 {dimension_numbers = #tpu.dot_dimension_numbers<[1], [0], [0], [1], [0, 0, 1, 1], [], []>} : vector<8x32xf32>, vector<32x32xf32>, vector<8x32xf32> -> vector<8x32xf32>
      %cst_120 = arith.constant dense<0.000000e+00> : vector<8x32xf32>
      %294 = tpu.matmul %284, %24, %cst_120 {dimension_numbers = #tpu.dot_dimension_numbers<[1], [0], [0], [1], [0, 0, 1, 1], [], []>} : vector<8x32xf32>, vector<32x32xf32>, vector<8x32xf32> -> vector<8x32xf32>
      %cst_121 = arith.constant dense<0.000000e+00> : vector<8x32xf32>
      %295 = tpu.matmul %284, %25, %cst_121 {dimension_numbers = #tpu.dot_dimension_numbers<[1], [0], [0], [1], [0, 0, 1, 1], [], []>} : vector<8x32xf32>, vector<32x32xf32>, vector<8x32xf32> -> vector<8x32xf32>
      %296 = arith.addf %288, %293 : vector<8x32xf32>
      %cst_122 = arith.constant 5.000000e-01 : f32
      %297 = vector.broadcast %cst_122 : f32 to vector<8x32xf32>
      %298 = arith.mulf %297, %296 : vector<8x32xf32>
      %299 = math.tanh %298 : vector<8x32xf32>
      %cst_123 = arith.constant 1.000000e+00 : f32
      %300 = vector.broadcast %cst_123 : f32 to vector<8x32xf32>
      %301 = arith.addf %299, %300 : vector<8x32xf32>
      %cst_124 = arith.constant 5.000000e-01 : f32
      %302 = vector.broadcast %cst_124 : f32 to vector<8x32xf32>
      %303 = arith.mulf %302, %301 : vector<8x32xf32>
      %304 = arith.addf %290, %294 : vector<8x32xf32>
      %cst_125 = arith.constant 5.000000e-01 : f32
      %305 = vector.broadcast %cst_125 : f32 to vector<8x32xf32>
      %306 = arith.mulf %305, %304 : vector<8x32xf32>
      %307 = math.tanh %306 : vector<8x32xf32>
      %cst_126 = arith.constant 1.000000e+00 : f32
      %308 = vector.broadcast %cst_126 : f32 to vector<8x32xf32>
      %309 = arith.addf %307, %308 : vector<8x32xf32>
      %cst_127 = arith.constant 5.000000e-01 : f32
      %310 = vector.broadcast %cst_127 : f32 to vector<8x32xf32>
      %311 = arith.mulf %310, %309 : vector<8x32xf32>
      %312 = arith.addf %295, %30 : vector<8x32xf32>
      %313 = arith.mulf %303, %312 : vector<8x32xf32>
      %314 = arith.addf %292, %313 : vector<8x32xf32>
      %315 = math.tanh %314 : vector<8x32xf32>
      %cst_128 = arith.constant 1.000000e+00 : f32
      %316 = vector.broadcast %cst_128 : f32 to vector<8x32xf32>
      %317 = arith.subf %316, %311 : vector<8x32xf32>
      %318 = arith.mulf %317, %315 : vector<8x32xf32>
      %319 = arith.mulf %311, %284 : vector<8x32xf32>
      %320 = arith.addf %318, %319 : vector<8x32xf32>
      %321 = arith.addi %31, %c6_i32 : i32
      %322 = vector.broadcast %321 : i32 to vector<8x1xi32>
      %323 = arith.cmpi slt, %322, %27 : vector<8x1xi32>
      %324 = vector.shape_cast %323 : vector<8x1xi1> to vector<8x1xi1>
      %325 = vector.broadcast %324 : vector<8x1xi1> to vector<8x32xi1>
      %326 = arith.select %325, %320, %284 : vector<8x32xi1>, vector<8x32xf32>
      %c7_i32 = arith.constant 7 : i32
      %c8_i32_129 = arith.constant 8 : i32
      %327 = arith.muli %c7_i32, %c8_i32_129 : i32
      %328 = tpu.assume_multiple %327, 8 : i32
      %329 = arith.index_cast %328 : i32 to index
      %c0_130 = arith.constant 0 : index
      %330 = vector.load %arg17[%329, %c0_130] : memref<64x32xf32, #tpu.memory_space<vmem>>, vector<8x32xf32>
      %331 = arith.index_cast %328 : i32 to index
      %c0_131 = arith.constant 0 : index
      %332 = vector.load %arg18[%331, %c0_131] : memref<64x32xf32, #tpu.memory_space<vmem>>, vector<8x32xf32>
      %333 = arith.index_cast %328 : i32 to index
      %c0_132 = arith.constant 0 : index
      %334 = vector.load %arg19[%333, %c0_132] : memref<64x32xf32, #tpu.memory_space<vmem>>, vector<8x32xf32>
      %cst_133 = arith.constant dense<0.000000e+00> : vector<8x32xf32>
      %335 = tpu.matmul %326, %23, %cst_133 {dimension_numbers = #tpu.dot_dimension_numbers<[1], [0], [0], [1], [0, 0, 1, 1], [], []>} : vector<8x32xf32>, vector<32x32xf32>, vector<8x32xf32> -> vector<8x32xf32>
      %cst_134 = arith.constant dense<0.000000e+00> : vector<8x32xf32>
      %336 = tpu.matmul %326, %24, %cst_134 {dimension_numbers = #tpu.dot_dimension_numbers<[1], [0], [0], [1], [0, 0, 1, 1], [], []>} : vector<8x32xf32>, vector<32x32xf32>, vector<8x32xf32> -> vector<8x32xf32>
      %cst_135 = arith.constant dense<0.000000e+00> : vector<8x32xf32>
      %337 = tpu.matmul %326, %25, %cst_135 {dimension_numbers = #tpu.dot_dimension_numbers<[1], [0], [0], [1], [0, 0, 1, 1], [], []>} : vector<8x32xf32>, vector<32x32xf32>, vector<8x32xf32> -> vector<8x32xf32>
      %338 = arith.addf %330, %335 : vector<8x32xf32>
      %cst_136 = arith.constant 5.000000e-01 : f32
      %339 = vector.broadcast %cst_136 : f32 to vector<8x32xf32>
      %340 = arith.mulf %339, %338 : vector<8x32xf32>
      %341 = math.tanh %340 : vector<8x32xf32>
      %cst_137 = arith.constant 1.000000e+00 : f32
      %342 = vector.broadcast %cst_137 : f32 to vector<8x32xf32>
      %343 = arith.addf %341, %342 : vector<8x32xf32>
      %cst_138 = arith.constant 5.000000e-01 : f32
      %344 = vector.broadcast %cst_138 : f32 to vector<8x32xf32>
      %345 = arith.mulf %344, %343 : vector<8x32xf32>
      %346 = arith.addf %332, %336 : vector<8x32xf32>
      %cst_139 = arith.constant 5.000000e-01 : f32
      %347 = vector.broadcast %cst_139 : f32 to vector<8x32xf32>
      %348 = arith.mulf %347, %346 : vector<8x32xf32>
      %349 = math.tanh %348 : vector<8x32xf32>
      %cst_140 = arith.constant 1.000000e+00 : f32
      %350 = vector.broadcast %cst_140 : f32 to vector<8x32xf32>
      %351 = arith.addf %349, %350 : vector<8x32xf32>
      %cst_141 = arith.constant 5.000000e-01 : f32
      %352 = vector.broadcast %cst_141 : f32 to vector<8x32xf32>
      %353 = arith.mulf %352, %351 : vector<8x32xf32>
      %354 = arith.addf %337, %30 : vector<8x32xf32>
      %355 = arith.mulf %345, %354 : vector<8x32xf32>
      %356 = arith.addf %334, %355 : vector<8x32xf32>
      %357 = math.tanh %356 : vector<8x32xf32>
      %cst_142 = arith.constant 1.000000e+00 : f32
      %358 = vector.broadcast %cst_142 : f32 to vector<8x32xf32>
      %359 = arith.subf %358, %353 : vector<8x32xf32>
      %360 = arith.mulf %359, %357 : vector<8x32xf32>
      %361 = arith.mulf %353, %326 : vector<8x32xf32>
      %362 = arith.addf %360, %361 : vector<8x32xf32>
      %363 = arith.addi %31, %c7_i32 : i32
      %364 = vector.broadcast %363 : i32 to vector<8x1xi32>
      %365 = arith.cmpi slt, %364, %27 : vector<8x1xi32>
      %366 = vector.shape_cast %365 : vector<8x1xi1> to vector<8x1xi1>
      %367 = vector.broadcast %366 : vector<8x1xi1> to vector<8x32xi1>
      %368 = arith.select %367, %362, %326 : vector<8x32xi1>, vector<8x32xf32>
      %c8_i32_143 = arith.constant 8 : i32
      %c0_144 = arith.constant 0 : index
      %c0_145 = arith.constant 0 : index
      %369 = vector.load %arg16[%c0_144, %c0_145] : memref<8x32xf32, #tpu.memory_space<vmem>>, vector<8x32xf32>
      tpu.vector_store %arg16[%c0_144, %c0_145], %368 {strides = array<i32>} : memref<8x32xf32, #tpu.memory_space<vmem>>, vector<8x32xf32>,
    } else {
    }
    %c0_i32_2 = arith.constant 0 : i32
    %7 = arith.cmpi eq, %arg1, %c0_i32_2 : i32
    %8 = arith.extui %7 : i1 to i32
    %c0_i32_3 = arith.constant 0 : i32
    %9 = arith.cmpi ne, %8, %c0_i32_3 : i32
    scf.if %9 {
      %c0_4 = arith.constant 0 : index
      %c0_5 = arith.constant 0 : index
      %10 = vector.load %arg16[%c0_4, %c0_5] : memref<8x32xf32, #tpu.memory_space<vmem>>, vector<8x32xf32>
      %c0_6 = arith.constant 0 : index
      %c0_7 = arith.constant 0 : index
      %11 = vector.load %arg11[%c0_6, %c0_7] : memref<32x20xf32, #tpu.memory_space<vmem>>, vector<32x20xf32>
      %cst = arith.constant dense<0.000000e+00> : vector<8x20xf32>
      %12 = tpu.matmul %10, %11, %cst {dimension_numbers = #tpu.dot_dimension_numbers<[1], [0], [0], [1], [0, 0, 1, 1], [], []>} : vector<8x32xf32>, vector<32x20xf32>, vector<8x20xf32> -> vector<8x20xf32>
      %c0_8 = arith.constant 0 : index
      %c0_9 = arith.constant 0 : index
      %13 = vector.load %arg12[%c0_8, %c0_9] : memref<1x20xf32, #tpu.memory_space<vmem>>, vector<1x20xf32>
      %14 = vector.broadcast %13 : vector<1x20xf32> to vector<8x20xf32>
      %15 = arith.addf %12, %14 : vector<8x20xf32>
      %16 = math.tanh %15 : vector<8x20xf32>
      %c0_10 = arith.constant 0 : index
      %c0_11 = arith.constant 0 : index
      %17 = vector.load %arg13[%c0_10, %c0_11] : memref<20x64xf32, #tpu.memory_space<vmem>>, vector<20x64xf32>
      %cst_12 = arith.constant dense<0.000000e+00> : vector<8x64xf32>
      %18 = tpu.matmul %16, %17, %cst_12 {dimension_numbers = #tpu.dot_dimension_numbers<[1], [0], [0], [1], [0, 0, 1, 1], [], []>} : vector<8x20xf32>, vector<20x64xf32>, vector<8x64xf32> -> vector<8x64xf32>
      %c0_13 = arith.constant 0 : index
      %c0_14 = arith.constant 0 : index
      %19 = vector.load %arg14[%c0_13, %c0_14] : memref<1x64xf32, #tpu.memory_space<vmem>>, vector<1x64xf32>
      %20 = vector.broadcast %19 : vector<1x64xf32> to vector<8x64xf32>
      %21 = arith.addf %18, %20 : vector<8x64xf32>
      %c0_15 = arith.constant 0 : index
      %c0_16 = arith.constant 0 : index
      %c0_17 = arith.constant 0 : index
      %22 = vector.load %arg15[%c0_15, %c0_16, %c0_17] : memref<1x8x64xf32, #tpu.memory_space<vmem>>, vector<1x8x64xf32>
      %23 = vector.shape_cast %22 : vector<1x8x64xf32> to vector<8x64xf32>
      %24 = vector.shape_cast %21 : vector<8x64xf32> to vector<1x8x64xf32>
      tpu.vector_store %arg15[%c0_15, %c0_16, %c0_17], %24 {strides = array<i32>} : memref<1x8x64xf32, #tpu.memory_space<vmem>>, vector<1x8x64xf32>,
    } else {
    }
    return
  }
  func.func @transform_0(%arg0: i32, %arg1: i32, %arg2: memref<1xi32, #tpu.memory_space<smem>>) -> (i32, i32, i32) {
    %c0 = arith.constant 0 : index
    %0 = memref.load %arg2[%c0] : memref<1xi32, #tpu.memory_space<smem>>
    %1 = arith.minsi %arg1, %0 : i32
    %c0_i32 = arith.constant 0 : i32
    %c0_i32_0 = arith.constant 0 : i32
    return %arg0, %1, %c0_i32 : i32, i32, i32
  }
  func.func @transform_1(%arg0: i32, %arg1: i32, %arg2: memref<1xi32, #tpu.memory_space<smem>>) -> (i32, i32, i32) {
    %c0_i32 = arith.constant 0 : i32
    %c0_i32_0 = arith.constant 0 : i32
    %c0_i32_1 = arith.constant 0 : i32
    return %arg0, %c0_i32, %c0_i32_0 : i32, i32, i32
  }
  func.func @transform_2(%arg0: i32, %arg1: i32, %arg2: memref<1xi32, #tpu.memory_space<smem>>) -> (i32, i32) {
    %c0_i32 = arith.constant 0 : i32
    %c0_i32_0 = arith.constant 0 : i32
    %c0_i32_1 = arith.constant 0 : i32
    return %c0_i32, %c0_i32_0 : i32, i32
  }
  func.func @transform_3(%arg0: i32, %arg1: i32, %arg2: memref<1xi32, #tpu.memory_space<smem>>) -> (i32, i32) {
    %c0_i32 = arith.constant 0 : i32
    %c0_i32_0 = arith.constant 0 : i32
    %c0_i32_1 = arith.constant 0 : i32
    return %c0_i32, %c0_i32_0 : i32, i32
  }
  func.func @transform_4(%arg0: i32, %arg1: i32, %arg2: memref<1xi32, #tpu.memory_space<smem>>) -> (i32, i32) {
    %c0_i32 = arith.constant 0 : i32
    %c0_i32_0 = arith.constant 0 : i32
    %c0_i32_1 = arith.constant 0 : i32
    return %c0_i32, %c0_i32_0 : i32, i32
  }
  func.func @transform_5(%arg0: i32, %arg1: i32, %arg2: memref<1xi32, #tpu.memory_space<smem>>) -> (i32, i32) {
    %c0_i32 = arith.constant 0 : i32
    %c0_i32_0 = arith.constant 0 : i32
    %c0_i32_1 = arith.constant 0 : i32
    return %c0_i32, %c0_i32_0 : i32, i32
  }
  func.func @transform_6(%arg0: i32, %arg1: i32, %arg2: memref<1xi32, #tpu.memory_space<smem>>) -> (i32, i32) {
    %c0_i32 = arith.constant 0 : i32
    %c0_i32_0 = arith.constant 0 : i32
    %c0_i32_1 = arith.constant 0 : i32
    return %c0_i32, %c0_i32_0 : i32, i32
  }
  func.func @transform_7(%arg0: i32, %arg1: i32, %arg2: memref<1xi32, #tpu.memory_space<smem>>) -> (i32, i32) {
    %c0_i32 = arith.constant 0 : i32
    %c0_i32_0 = arith.constant 0 : i32
    %c0_i32_1 = arith.constant 0 : i32
    return %c0_i32, %c0_i32_0 : i32, i32
  }
  func.func @transform_8(%arg0: i32, %arg1: i32, %arg2: memref<1xi32, #tpu.memory_space<smem>>) -> (i32, i32) {
    %c0_i32 = arith.constant 0 : i32
    %c0_i32_0 = arith.constant 0 : i32
    %c0_i32_1 = arith.constant 0 : i32
    return %c0_i32, %c0_i32_0 : i32, i32
  }
  func.func @transform_9(%arg0: i32, %arg1: i32, %arg2: memref<1xi32, #tpu.memory_space<smem>>) -> (i32, i32) {
    %c0_i32 = arith.constant 0 : i32
    %c0_i32_0 = arith.constant 0 : i32
    %c0_i32_1 = arith.constant 0 : i32
    return %c0_i32, %c0_i32_0 : i32, i32
  }
  func.func @transform_10(%arg0: i32, %arg1: i32, %arg2: memref<1xi32, #tpu.memory_space<smem>>) -> (i32, i32) {
    %c0_i32 = arith.constant 0 : i32
    %c0_i32_0 = arith.constant 0 : i32
    %c0_i32_1 = arith.constant 0 : i32
    return %c0_i32, %c0_i32_0 : i32, i32
  }
  func.func @transform_11(%arg0: i32, %arg1: i32, %arg2: memref<1xi32, #tpu.memory_space<smem>>) -> (i32, i32) {
    %c0_i32 = arith.constant 0 : i32
    %c0_i32_0 = arith.constant 0 : i32
    %c0_i32_1 = arith.constant 0 : i32
    return %c0_i32, %c0_i32_0 : i32, i32
  }
  func.func @transform_12(%arg0: i32, %arg1: i32, %arg2: memref<1xi32, #tpu.memory_space<smem>>) -> (i32, i32, i32) {
    %c0_i32 = arith.constant 0 : i32
    %c0_i32_0 = arith.constant 0 : i32
    %c0_i32_1 = arith.constant 0 : i32
    return %arg0, %c0_i32, %c0_i32_0 : i32, i32, i32
  }
}

</mosaic_0001>

<llo_original>
// kernel: tpu_custom_call.1
$region0: #{tpu_custom_call.1}
  #allocation0 [shape = 'u32[]', space=smem, size = 0x4, offset = 0x4, fixed_abs, tag = 'smem constant byte address 0x4 - core index']
  #allocation1 [shape = 'u32[144,128]{1,0:T(1,128)}', space=vmem, size = 0x12000, scoped, tag = 'internal scratch']
  #allocation2 [shape = 'f32[8,32]{1,0:T(8,128)}', space=vmem, size = 0x1000, scoped, tag = 'scratch operand']
  #allocation3 [shape = 'f32[64,32]{1,0:T(8,128)}', space=vmem, size = 0x8000, scoped, tag = 'scratch operand']
  #allocation4 [shape = 'f32[64,32]{1,0:T(8,128)}', space=vmem, size = 0x8000, scoped, tag = 'scratch operand']
  #allocation5 [shape = 'f32[64,32]{1,0:T(8,128)}', space=vmem, size = 0x8000, scoped, tag = 'scratch operand']
  #allocation6 [shape = 's32[1]{0}', space=sflag, size = 0x4, scoped, tag = 'scoped memory for tpu_custom_call.1']
  #allocation7 [shape = 's32[1]{0:T(128)S(6)}', space=smem, size = 0x200, scoped, tag = 'prefetched SMEM operand 0']
  %s0 = inlined_call_operand.<no memory space> [shape: s32[1], index: 0, kind: input, shape index: {}]
  %s1 = inlined_call_operand.vmem [shape: bf16[1,64,16], index: 1, kind: input, shape index: {}]
  %s2 = inlined_call_operand.vmem [shape: s32[1,8,1], index: 2, kind: input, shape index: {}]
  %s3 = inlined_call_operand.hbm [shape: bf16[16,96], index: 3, kind: input, shape index: {}]
  %s4 = inlined_call_operand.vmem [shape: f32[32,32], index: 4, kind: input, shape index: {}]
  %s5 = inlined_call_operand.vmem [shape: f32[32,32], index: 5, kind: input, shape index: {}]
  %s6 = inlined_call_operand.vmem [shape: f32[32,32], index: 6, kind: input, shape index: {}]
  %s7 = inlined_call_operand.vmem [shape: f32[1,96], index: 7, kind: input, shape index: {}]
  %s8 = inlined_call_operand.vmem [shape: f32[1,32], index: 8, kind: input, shape index: {}]
  %s9 = inlined_call_operand.vmem [shape: f32[32,20], index: 9, kind: input, shape index: {}]
  %s10 = inlined_call_operand.hbm [shape: f32[1,20], index: 10, kind: input, shape index: {}]
  %s11 = inlined_call_operand.vmem [shape: f32[20,64], index: 11, kind: input, shape index: {}]
  %s12 = inlined_call_operand.vmem [shape: f32[1,64], index: 12, kind: input, shape index: {}]
  %s13 = inlined_call_operand.hbm [shape: f32[1,8,64], index: 13, kind: output, shape index: {}]
  %s14 = sld [smem:[#allocation0]]
  $region78: #{tpu_custom_call.1} parent=0
    _
  %s16 = ssub.s32 1, %s14
  %s17 = scalar_select 0, %s16, %s14
  %18 = sst [smem:[#allocation7]] %s0
  $region1: #{tpu_custom_call.1} parent=0
    #allocation8 [shape = 'u8[4096]{0}', space=vmem, size = 0x1000, scoped, tag = 'input window, operand 3, single buffered']
    #allocation9 [shape = 's32[1]{0}', space=sflag, size = 0x4, scoped, tag = 'scoped memory for tpu_custom_call.1']
    #allocation10 [shape = 's32[1]{0}', space=sflag, size = 0x4, scoped, tag = 'scoped memory for tpu_custom_call.1']
    #allocation11 [shape = 'u8[512]{0}', space=vmem, size = 0x400, scoped, tag = 'input window, operand 10, single buffered']
    #allocation12 [shape = 's32[1]{0}', space=sflag, size = 0x4, scoped, tag = 'scoped memory for tpu_custom_call.1']
    #allocation13 [shape = 'u8[4096]{0}', space=vmem, size = 0x1000, scoped, tag = 'output window, operand 0, single buffered']
    %19 = vsyncpa [#allocation9], 0
    %20 = vsyncpa [#allocation12], 0
    %21 = vsyncpa [#allocation10], 0
    // Predicated region
    $region2: #{tpu_custom_call.1} parent=1 // pred_check
      _
    $region3: #{tpu_custom_call.1} parent=1 // pred_check_branch
      %23 = sbr.rel (0) target = $region5
    $region4: #{tpu_custom_call.1} parent=1 // pred_region
      %s24 = sld [smem:[#allocation7]]
      %p25 = scmp.lt.s32.totalorder 0, %s24
      %s26 = scalar_select %p25, 0, %s24
      %s27 = smul.u32 8, %s26
      %p28 = scmp.lt.s32.totalorder %s27, 7
      %s29 = scalar_select %p28, %s27, 7
      %s30 = smul.addr %s29, 4
      %s31 = scalar_lea.vmem %s1, %s30
      %s32 = sld [smem:[#allocation7]]
      %p33 = scmp.lt.s32.totalorder 0, %s32
      %s34 = scalar_select %p33, 0, %s32
      %s35 = smul.u32 8, %s34
    $region5: #{tpu_custom_call.1} parent=1 // pred_fallthru
      _
    // Predicated region
    $region6: #{tpu_custom_call.1} parent=1 // pred_check
      _
    $region7: #{tpu_custom_call.1} parent=1 // pred_check_branch
      %37 = sbr.rel (0) target = $region9
    $region8: #{tpu_custom_call.1} parent=1 // pred_region
      _
    $region9: #{tpu_custom_call.1} parent=1 // pred_fallthru
      _
    // Predicated region
    $region10: #{tpu_custom_call.1} parent=1 // pred_check
      _
    $region11: #{tpu_custom_call.1} parent=1 // pred_check_branch
      %39 = sbr.rel (0) target = $region13
    $region12: #{tpu_custom_call.1} parent=1 // pred_region
      %s41 = ssub.s32 128, 128
      %42 = vsyncadd [#allocation9], %s41
      %s43 = sshll.u32 [#allocation8], 4
      %s44 = int_to_ptr.vmem [resolvable:$true] %s43
      %49 = dma.hbm_to_vmem [thread:$0]  %s3, 128, %s44, [#allocation9], 64, 64, 4
    $region13: #{tpu_custom_call.1} parent=1 // pred_fallthru
      _
    // Predicated region
    $region14: #{tpu_custom_call.1} parent=1 // pred_check
      _
    $region15: #{tpu_custom_call.1} parent=1 // pred_check_branch
      %51 = sbr.rel (0) target = $region17
    $region16: #{tpu_custom_call.1} parent=1 // pred_region
      _
    $region17: #{tpu_custom_call.1} parent=1 // pred_fallthru
      _
    // Predicated region
    $region18: #{tpu_custom_call.1} parent=1 // pred_check
      _
    $region19: #{tpu_custom_call.1} parent=1 // pred_check_branch
      %53 = sbr.rel (0) target = $region21
    $region20: #{tpu_custom_call.1} parent=1 // pred_region
      _
    $region21: #{tpu_custom_call.1} parent=1 // pred_fallthru
      _
    // Predicated region
    $region22: #{tpu_custom_call.1} parent=1 // pred_check
      _
    $region23: #{tpu_custom_call.1} parent=1 // pred_check_branch
      %55 = sbr.rel (0) target = $region25
    $region24: #{tpu_custom_call.1} parent=1 // pred_region
      _
    $region25: #{tpu_custom_call.1} parent=1 // pred_fallthru
      _
    // Predicated region
    $region26: #{tpu_custom_call.1} parent=1 // pred_check
      _
    $region27: #{tpu_custom_call.1} parent=1 // pred_check_branch
      %57 = sbr.rel (0) target = $region29
    $region28: #{tpu_custom_call.1} parent=1 // pred_region
      _
    $region29: #{tpu_custom_call.1} parent=1 // pred_fallthru
      _
    // Predicated region
    $region30: #{tpu_custom_call.1} parent=1 // pred_check
      _
    $region31: #{tpu_custom_call.1} parent=1 // pred_check_branch
      %59 = sbr.rel (0) target = $region33
    $region32: #{tpu_custom_call.1} parent=1 // pred_region
      _
    $region33: #{tpu_custom_call.1} parent=1 // pred_fallthru
      _
    // Predicated region
    $region34: #{tpu_custom_call.1} parent=1 // pred_check
      _
    $region35: #{tpu_custom_call.1} parent=1 // pred_check_branch
      %61 = sbr.rel (0) target = $region37
    $region36: #{tpu_custom_call.1} parent=1 // pred_region
      _
    $region37: #{tpu_custom_call.1} parent=1 // pred_fallthru
      _
    // Predicated region
    $region38: #{tpu_custom_call.1} parent=1 // pred_check
      _
    $region39: #{tpu_custom_call.1} parent=1 // pred_check_branch
      %63 = sbr.rel (0) target = $region41
    $region40: #{tpu_custom_call.1} parent=1 // pred_region
      %s65 = ssub.s32 16, 16
      %66 = vsyncadd [#allocation12], %s65
      %s68 = sshll.u32 [#allocation11], 4
      %s69 = int_to_ptr.vmem [resolvable:$true] %s68
      %71 = dma.hbm_to_vmem [thread:$0]  %s10, 16, %s69, [#allocation12]
    $region41: #{tpu_custom_call.1} parent=1 // pred_fallthru
      _
    // Predicated region
    $region42: #{tpu_custom_call.1} parent=1 // pred_check
      _
    $region43: #{tpu_custom_call.1} parent=1 // pred_check_branch
      %73 = sbr.rel (0) target = $region45
    $region44: #{tpu_custom_call.1} parent=1 // pred_region
      _
    $region45: #{tpu_custom_call.1} parent=1 // pred_fallthru
      _
    // Predicated region
    $region46: #{tpu_custom_call.1} parent=1 // pred_check
      _
    $region47: #{tpu_custom_call.1} parent=1 // pred_check_branch
      %75 = sbr.rel (0) target = $region49
    $region48: #{tpu_custom_call.1} parent=1 // pred_region
      _
    $region49: #{tpu_custom_call.1} parent=1 // pred_fallthru
      _
    // Predicated region
    $region50: #{tpu_custom_call.1} parent=1 // pred_check
      _
    $region51: #{tpu_custom_call.1} parent=1 // pred_check_branch
      %77 = sbr.rel (0) target = $region53
    $region52: #{tpu_custom_call.1} parent=1 // pred_region
      %78 = dma.done [#allocation9], 128
    $region53: #{tpu_custom_call.1} parent=1 // pred_fallthru
      _
    // Predicated region
    $region54: #{tpu_custom_call.1} parent=1 // pred_check
      _
    $region55: #{tpu_custom_call.1} parent=1 // pred_check_branch
      %80 = sbr.rel (0) target = $region57
    $region56: #{tpu_custom_call.1} parent=1 // pred_region
      %81 = dma.done [#allocation12], 16
    $region57: #{tpu_custom_call.1} parent=1 // pred_fallthru
      _
    %s82 = sld [smem:[#allocation7]]
    %p83 = scmp.lt.s32.totalorder 0, %s82
    %s84 = scalar_select %p83, 0, %s82
    %s85 = smul.u32 8, %s84
    %p86 = scmp.lt.s32.totalorder %s85, 7
    %s87 = scalar_select %p86, %s85, 7
    %s88 = smul.addr %s87, 4
    %s89 = scalar_lea.vmem %s1, %s88
    %s90 = sld [smem:[#allocation7]]
    %p91 = scmp.lt.s32.totalorder 0, %s90
    %s92 = scalar_select %p91, 0, %s90
    %s93 = smul.u32 8, %s92
    %p94 = scmp.lt.s32.totalorder %s93, 7
    %s95 = scalar_select %p94, %s93, 7
    %s96 = smul.addr %s95, 4
    %s97 = scalar_lea.vmem %s1, %s96
    %s98 = sld [smem:[#allocation7]]
    %p99 = scmp.lt.s32.totalorder 0, %s98
    %s100 = scalar_select %p99, 0, %s98
    %s101 = smul.u32 8, %s100
    %p103 = scmp.eq.s32.totalorder 0, 0
    // Predicated region
    $region58: #{tpu_custom_call.1} parent=1 // pred_check
      %p104 = pneg %p103
    $region59: #{tpu_custom_call.1} parent=1 // pred_check_branch
      %106 = sbr.rel (%p104) target = $region61
    $region60: #{tpu_custom_call.1} parent=1 // pred_region
      %vm107 = vcmask 261120
      %108 = vst.msk [vmem:[#allocation2] sm:$0xff] %vm107, 0.0
    $region61: #{tpu_custom_call.1} parent=1 // pred_fallthru
      _
    %s109 = sld [smem:[#allocation7]]
    %p110 = scmp.le.s32.totalorder 0, %s109
    // Predicated region
    $region62: #{tpu_custom_call.1} parent=1 // pred_check
      %p111 = pneg %p110
    $region63: #{tpu_custom_call.1} parent=1 // pred_check_branch
      %113 = sbr.rel (%p111) target = $region65
    $region64: #{tpu_custom_call.1} parent=1 // pred_region
      %v114 = vld [vmem:[%s97] sm:$0xf]
      %v115 = vld [vmem:[%s97 + $0x4] sm:$0xf]
      %v116 = vld [vmem:[%s97 + $0x8] sm:$0xf]
      %v117 = vld [vmem:[%s97 + $0xc] sm:$0xf]
      %v118 = vld [vmem:[%s97 + $0x10] sm:$0xf]
      %v119 = vld [vmem:[%s97 + $0x14] sm:$0xf]
      %v120 = vld [vmem:[%s97 + $0x18] sm:$0xf]
      %v121 = vld [vmem:[%s97 + $0x1c] sm:$0xf]
      %v122 = vld [vmem:[#allocation8] sm:$0xf]
      %v123 = vld [vmem:[#allocation8 + $0x4] sm:$0xf]
      %v124 = vld [vmem:[%s7] sm:$0x1]
      %v126 = vlaneseq
      %v127 = vshrl.u32 %v126, 7
      %v128 = vsub.s32 0, %v127
      %v129 = vrot.slane %v124, %v128
      %v139 = vunpack.c.l.b16 %v114
      %v140 = vunpack.c.l.b16 %v115
      %v141 = vunpack.c.l.b16 %v116
      %v142 = vunpack.c.l.b16 %v117
      %v143 = vunpack.c.l.b16 %v118
      %v144 = vunpack.c.l.b16 %v119
      %v145 = vunpack.c.l.b16 %v120
      %v146 = vunpack.c.l.b16 %v121
      %v147 = vpack.c.b16 %v140, %v139
      %v148 = vpack.c.b16 %v142, %v141
      %v149 = vpack.c.b16 %v144, %v143
      %v150 = vpack.c.b16 %v146, %v145
      %v153 = vunpack.c.l.b16 %v122
      %v154 = vunpack.c.l.b16 %v123
      %v155 = vpack.c.b16 %v154, %v153
      %vm157 = vcmask 130048
      %v159 = vsel %vm157, %v147, 0
      %v162 = vsel %vm157, %v148, 0
      %v165 = vsel %vm157, %v149, 0
      %v168 = vsel %vm157, %v150, 0
      %170 = vmatprep.subr.bf16.mxu0 0
      %171 = vmatpush1.bf16.msra.mxu0 %v155
      %172 = vmatprep.subr.bf16.mxu0 0
      %173 = vmatpush1.bf16.msra.mxu0 0
      %174 = vmatprep.subr.bf16.mxu0 0
      %175 = vmatpush1.bf16.msra.mxu0 0
      %176 = vmatprep.subr.bf16.mxu0 0
      %177 = vmatpush1.bf16.msra.mxu0 0
      %178 = vmatprep.subr.bf16.mxu0 0
      %179 = vmatpush1.bf16.msra.mxu0 0
      %180 = vmatprep.subr.bf16.mxu0 0
      %181 = vmatpush1.bf16.msra.mxu0 0
      %182 = vmatprep.subr.bf16.mxu0 0
      %183 = vmatpush1.bf16.msra.mxu0 0
      %184 = vmatprep.subr.bf16.mxu0 0
      %185 = vmatpush1.bf16.msra.mxu0 0
      %186 = vmatprep.subr.bf16.mxu0 0
      %187 = vmatpush1.bf16.msra.mxu0 0
      %188 = vmatprep.subr.bf16.mxu0 0
      %189 = vmatpush1.bf16.msra.mxu0 0
      %190 = vmatprep.subr.bf16.mxu0 0
      %191 = vmatpush1.bf16.msra.mxu0 0
      %192 = vmatprep.subr.bf16.mxu0 0
      %193 = vmatpush1.bf16.msra.mxu0 0
      %194 = vmatprep.subr.bf16.mxu0 0
      %195 = vmatpush1.bf16.msra.mxu0 0
      %196 = vmatprep.subr.bf16.mxu0 0
      %197 = vmatpush1.bf16.msra.mxu0 0
      %198 = vmatprep.subr.bf16.mxu0 0
      %199 = vmatpush1.bf16.msra.mxu0 0
      %200 = vmatprep.subr.bf16.mxu0 0
      %201 = vmatpush1.bf16.msra.mxu0 0
      %202 = vmatprep.mubr.bf16.mxu0 0
      %203 = vmatmul.mubr.bf16.gmra.mrb[0].mxu0 %v159
      %v204 = vpop.f32.mrb[0].mxu0
      %v205 = vadd.f32 %v129, %v204
      %v206 = vpop.f32.mrb[0].mxu0
      %v207 = vpop.f32.mrb[0].mxu0
      %v208 = vadd.f32 %v129, %v207
      %v209 = vpop.f32.mrb[0].mxu0
      %210 = vmatprep.mubr.bf16.mxu0 0
      %211 = vmatmul.mubr.bf16.gmra.mrb[0].mxu0 %v162
      %v212 = vpop.f32.mrb[0].mxu0
      %v213 = vadd.f32 %v129, %v212
      %v214 = vpop.f32.mrb[0].mxu0
      %v215 = vpop.f32.mrb[0].mxu0
      %v216 = vadd.f32 %v129, %v215
      %v217 = vpop.f32.mrb[0].mxu0
      %218 = vmatprep.mubr.bf16.mxu0 0
      %219 = vmatmul.mubr.bf16.gmra.mrb[0].mxu0 %v165
      %v220 = vpop.f32.mrb[0].mxu0
      %v221 = vadd.f32 %v129, %v220
      %v222 = vpop.f32.mrb[0].mxu0
      %v223 = vpop.f32.mrb[0].mxu0
      %v224 = vadd.f32 %v129, %v223
      %v225 = vpop.f32.mrb[0].mxu0
      %226 = vmatprep.mubr.bf16.mxu0 0
      %227 = vmatmul.mubr.bf16.gmra.mrb[0].mxu0 %v168
      %v228 = vpop.f32.mrb[0].mxu0
      %v229 = vadd.f32 %v129, %v228
      %v230 = vpop.f32.mrb[0].mxu0
      %v231 = vpop.f32.mrb[0].mxu0
      %v232 = vadd.f32 %v129, %v231
      %v233 = vpop.f32.mrb[0].mxu0
      %234 = vdwg.mxu0
      %vm235 = vcmask 261120
      %236 = vst.msk [vmem:[#allocation3] sm:$0xff] %vm235, %v205
      %237 = vst.msk [vmem:[#allocation3 + $0x8] sm:$0xff] %vm235, %v208
      %238 = vst.msk [vmem:[#allocation3 + $0x10] sm:$0xff] %vm235, %v213
      %239 = vst.msk [vmem:[#allocation3 + $0x18] sm:$0xff] %vm235, %v216
      %240 = vst.msk [vmem:[#allocation3 + $0x20] sm:$0xff] %vm235, %v221
      %241 = vst.msk [vmem:[#allocation3 + $0x28] sm:$0xff] %vm235, %v224
      %242 = vst.msk [vmem:[#allocation3 + $0x30] sm:$0xff] %vm235, %v229
      %243 = vst.msk [vmem:[#allocation3 + $0x38] sm:$0xff] %vm235, %v232
      %252 = vrot.lane.b32.xlu0 %v205, 96
      %v253 = vpop.permute.xlu0 %252
      %254 = vrot.lane.b32.xlu0 %v208, 96
      %v255 = vpop.permute.xlu0 %254
      %256 = vrot.lane.b32.xlu0 %v213, 96
      %v257 = vpop.permute.xlu0 %256
      %258 = vrot.lane.b32.xlu0 %v216, 96
      %v259 = vpop.permute.xlu0 %258
      %260 = vrot.lane.b32.xlu0 %v221, 96
      %v261 = vpop.permute.xlu0 %260
      %262 = vrot.lane.b32.xlu0 %v224, 96
      %v263 = vpop.permute.xlu0 %262
      %264 = vrot.lane.b32.xlu0 %v229, 96
      %v265 = vpop.permute.xlu0 %264
      %266 = vrot.lane.b32.xlu0 %v232, 96
      %v267 = vpop.permute.xlu0 %266
      %276 = vst.msk [vmem:[#allocation4] sm:$0xff] %vm235, %v253
      %277 = vst.msk [vmem:[#allocation4 + $0x8] sm:$0xff] %vm235, %v255
      %278 = vst.msk [vmem:[#allocation4 + $0x10] sm:$0xff] %vm235, %v257
      %279 = vst.msk [vmem:[#allocation4 + $0x18] sm:$0xff] %vm235, %v259
      %280 = vst.msk [vmem:[#allocation4 + $0x20] sm:$0xff] %vm235, %v261
      %281 = vst.msk [vmem:[#allocation4 + $0x28] sm:$0xff] %vm235, %v263
      %282 = vst.msk [vmem:[#allocation4 + $0x30] sm:$0xff] %vm235, %v265
      %283 = vst.msk [vmem:[#allocation4 + $0x38] sm:$0xff] %vm235, %v267
      %284 = vrot.lane.b32.xlu0 %v205, 64
      %v285 = vpop.permute.xlu0 %284
      %286 = vrot.lane.b32.xlu0 %v208, 64
      %v287 = vpop.permute.xlu0 %286
      %288 = vrot.lane.b32.xlu0 %v213, 64
      %v289 = vpop.permute.xlu0 %288
      %290 = vrot.lane.b32.xlu0 %v216, 64
      %v291 = vpop.permute.xlu0 %290
      %292 = vrot.lane.b32.xlu0 %v221, 64
      %v293 = vpop.permute.xlu0 %292
      %294 = vrot.lane.b32.xlu0 %v224, 64
      %v295 = vpop.permute.xlu0 %294
      %296 = vrot.lane.b32.xlu0 %v229, 64
      %v297 = vpop.permute.xlu0 %296
      %298 = vrot.lane.b32.xlu0 %v232, 64
      %v299 = vpop.permute.xlu0 %298
      %308 = vst.msk [vmem:[#allocation5] sm:$0xff] %vm235, %v285
      %309 = vst.msk [vmem:[#allocation5 + $0x8] sm:$0xff] %vm235, %v287
      %310 = vst.msk [vmem:[#allocation5 + $0x10] sm:$0xff] %vm235, %v289
      %311 = vst.msk [vmem:[#allocation5 + $0x18] sm:$0xff] %vm235, %v291
      %312 = vst.msk [vmem:[#allocation5 + $0x20] sm:$0xff] %vm235, %v293
      %313 = vst.msk [vmem:[#allocation5 + $0x28] sm:$0xff] %vm235, %v295
      %314 = vst.msk [vmem:[#allocation5 + $0x30] sm:$0xff] %vm235, %v297
      %315 = vst.msk [vmem:[#allocation5 + $0x38] sm:$0xff] %vm235, %v299
      %v316 = vld [vmem:[%s4] sm:$0xff]
      %v317 = vld [vmem:[%s4 + $0x8] sm:$0xff]
      %v318 = vld [vmem:[%s4 + $0x10] sm:$0xff]
      %v319 = vld [vmem:[%s4 + $0x18] sm:$0xff]
      %v320 = vld [vmem:[%s5] sm:$0xff]
      %v321 = vld [vmem:[%s5 + $0x8] sm:$0xff]
      %v322 = vld [vmem:[%s5 + $0x10] sm:$0xff]
      %v323 = vld [vmem:[%s5 + $0x18] sm:$0xff]
      %v324 = vld [vmem:[%s6] sm:$0xff]
      %v325 = vld [vmem:[%s6 + $0x8] sm:$0xff]
      %v326 = vld [vmem:[%s6 + $0x10] sm:$0xff]
      %v327 = vld [vmem:[%s6 + $0x18] sm:$0xff]
      %v328 = vld [vmem:[%s2] sm:$0xff]
      %v329 = vld [vmem:[%s8] sm:$0x1]
      %v331 = vlaneseq
      %v332 = vshrl.u32 %v331, 7
      %v333 = vsub.s32 0, %v332
      %v334 = vrot.slane %v329, %v333
      %s336 = smul.u32 0, 8
      %v337 = vld [vmem:[#allocation2] sm:$0xff]
      %v338 = vld [vmem:[#allocation3] sm:$0xff]
      %v339 = vld [vmem:[#allocation4] sm:$0xff]
      %v340 = vld [vmem:[#allocation5] sm:$0xff]
      %v342 = vsel %vm235, %v337, 0
      %344 = vmatprep.subr.mxu0 0.0
      %345 = vmatpush1.msra.mxu0 %v316
      %346 = vmatprep.subr.mxu0 0.0
      %347 = vmatpush1.msra.mxu0 %v317
      %348 = vmatprep.subr.mxu0 0.0
      %349 = vmatpush1.msra.mxu0 %v318
      %350 = vmatprep.subr.mxu0 0.0
      %351 = vmatpush1.msra.mxu0 %v319
      %352 = vmatprep.subr.mxu0 0.0
      %353 = vmatpush1.msra.mxu0 0.0
      %354 = vmatprep.subr.mxu0 0.0
      %355 = vmatpush1.msra.mxu0 0.0
      %356 = vmatprep.subr.mxu0 0.0
      %357 = vmatpush1.msra.mxu0 0.0
      %358 = vmatprep.subr.mxu0 0.0
      %359 = vmatpush1.msra.mxu0 0.0
      %360 = vmatprep.subr.mxu0 0.0
      %361 = vmatpush1.msra.mxu0 0.0
      %362 = vmatprep.subr.mxu0 0.0
      %363 = vmatpush1.msra.mxu0 0.0
      %364 = vmatprep.subr.mxu0 0.0
      %365 = vmatpush1.msra.mxu0 0.0
      %366 = vmatprep.subr.mxu0 0.0
      %367 = vmatpush1.msra.mxu0 0.0
      %368 = vmatprep.subr.mxu0 0.0
      %369 = vmatpush1.msra.mxu0 0.0
      %370 = vmatprep.subr.mxu0 0.0
      %371 = vmatpush1.msra.mxu0 0.0
      %372 = vmatprep.subr.mxu0 0.0
      %373 = vmatpush1.msra.mxu0 0.0
      %374 = vmatprep.subr.mxu0 0.0
      %375 = vmatpush1.msra.mxu0 0.0
      %376 = vmatprep.subr.mxu0 0.0
      %377 = vmatpush1.msra.mxu0 0.0
      %378 = vmatprep.subr.mxu0 0.0
      %379 = vmatpush1.msra.mxu0 0.0
      %380 = vmatprep.subr.mxu0 0.0
      %381 = vmatpush1.msra.mxu0 0.0
      %382 = vmatprep.subr.mxu0 0.0
      %383 = vmatpush1.msra.mxu0 0.0
      %384 = vmatprep.subr.mxu0 0.0
      %385 = vmatpush1.msra.mxu0 0.0
      %386 = vmatprep.subr.mxu0 0.0
      %387 = vmatpush1.msra.mxu0 0.0
      %388 = vmatprep.subr.mxu0 0.0
      %389 = vmatpush1.msra.mxu0 0.0
      %390 = vmatprep.subr.mxu0 0.0
      %391 = vmatpush1.msra.mxu0 0.0
      %392 = vmatprep.subr.mxu0 0.0
      %393 = vmatpush1.msra.mxu0 0.0
      %394 = vmatprep.subr.mxu0 0.0
      %395 = vmatpush1.msra.mxu0 0.0
      %396 = vmatprep.subr.mxu0 0.0
      %397 = vmatpush1.msra.mxu0 0.0
      %398 = vmatprep.subr.mxu0 0.0
      %399 = vmatpush1.msra.mxu0 0.0
      %400 = vmatprep.subr.mxu0 0.0
      %401 = vmatpush1.msra.mxu0 0.0
      %402 = vmatprep.subr.mxu0 0.0
      %403 = vmatpush1.msra.mxu0 0.0
      %404 = vmatprep.subr.mxu0 0.0
      %405 = vmatpush1.msra.mxu0 0.0
      %406 = vmatprep.subr.mxu0 0.0
      %407 = vmatpush1.msra.mxu0 0.0
      %408 = vmatprep.mubr.f32.mxu0 0.0
      %409 = vmatmul.mubr.f32.gmra.mrb[0].mxu0 %v342
      %v410 = vpop.f32.mrb[0].mxu0
      %v411 = vadd.f32 0.0, %v410
      %v412 = vpop.f32.mrb[0].mxu0
      %413 = vdwg.mxu0
      %414 = vmatprep.subr.mxu0 0.0
      %415 = vmatpush1.msra.mxu0 %v320
      %416 = vmatprep.subr.mxu0 0.0
      %417 = vmatpush1.msra.mxu0 %v321
      %418 = vmatprep.subr.mxu0 0.0
      %419 = vmatpush1.msra.mxu0 %v322
      %420 = vmatprep.subr.mxu0 0.0
      %421 = vmatpush1.msra.mxu0 %v323
      %422 = vmatprep.subr.mxu0 0.0
      %423 = vmatpush1.msra.mxu0 0.0
      %424 = vmatprep.subr.mxu0 0.0
      %425 = vmatpush1.msra.mxu0 0.0
      %426 = vmatprep.subr.mxu0 0.0
      %427 = vmatpush1.msra.mxu0 0.0
      %428 = vmatprep.subr.mxu0 0.0
      %429 = vmatpush1.msra.mxu0 0.0
      %430 = vmatprep.subr.mxu0 0.0
      %431 = vmatpush1.msra.mxu0 0.0
      %432 = vmatprep.subr.mxu0 0.0
      %433 = vmatpush1.msra.mxu0 0.0
      %434 = vmatprep.subr.mxu0 0.0
      %435 = vmatpush1.msra.mxu0 0.0
      %436 = vmatprep.subr.mxu0 0.0
      %437 = vmatpush1.msra.mxu0 0.0
      %438 = vmatprep.subr.mxu0 0.0
      %439 = vmatpush1.msra.mxu0 0.0
      %440 = vmatprep.subr.mxu0 0.0
      %441 = vmatpush1.msra.mxu0 0.0
      %442 = vmatprep.subr.mxu0 0.0
      %443 = vmatpush1.msra.mxu0 0.0
      %444 = vmatprep.subr.mxu0 0.0
      %445 = vmatpush1.msra.mxu0 0.0
      %446 = vmatprep.subr.mxu0 0.0
      %447 = vmatpush1.msra.mxu0 0.0
      %448 = vmatprep.subr.mxu0 0.0
      %449 = vmatpush1.msra.mxu0 0.0
      %450 = vmatprep.subr.mxu0 0.0
      %451 = vmatpush1.msra.mxu0 0.0
      %452 = vmatprep.subr.mxu0 0.0
      %453 = vmatpush1.msra.mxu0 0.0
      %454 = vmatprep.subr.mxu0 0.0
      %455 = vmatpush1.msra.mxu0 0.0
      %456 = vmatprep.subr.mxu0 0.0
      %457 = vmatpush1.msra.mxu0 0.0
      %458 = vmatprep.subr.mxu0 0.0
      %459 = vmatpush1.msra.mxu0 0.0
      %460 = vmatprep.subr.mxu0 0.0
      %461 = vmatpush1.msra.mxu0 0.0
      %462 = vmatprep.subr.mxu0 0.0
      %463 = vmatpush1.msra.mxu0 0.0
      %464 = vmatprep.subr.mxu0 0.0
      %465 = vmatpush1.msra.mxu0 0.0
      %466 = vmatprep.subr.mxu0 0.0
      %467 = vmatpush1.msra.mxu0 0.0
      %468 = vmatprep.subr.mxu0 0.0
      %469 = vmatpush1.msra.mxu0 0.0
      %470 = vmatprep.subr.mxu0 0.0
      %471 = vmatpush1.msra.mxu0 0.0
      %472 = vmatprep.subr.mxu0 0.0
      %473 = vmatpush1.msra.mxu0 0.0
      %474 = vmatprep.subr.mxu0 0.0
      %475 = vmatpush1.msra.mxu0 0.0
      %476 = vmatprep.subr.mxu0 0.0
      %477 = vmatpush1.msra.mxu0 0.0
      %478 = vmatprep.mubr.f32.mxu0 0.0
      %479 = vmatmul.mubr.f32.gmra.mrb[0].mxu0 %v342
      %v480 = vpop.f32.mrb[0].mxu0
      %v481 = vadd.f32 0.0, %v480
      %v482 = vpop.f32.mrb[0].mxu0
      %483 = vdwg.mxu0
      %v484 = vadd.f32 %v338, %v411
      %v485 = vmul.f32 %v484, 0.5
      %v486 = vtanh.pop %v485
      %v487 = vadd.f32 %v486, 1.0
      %v488 = vmul.f32 %v487, 0.5
      %v489 = vadd.f32 %v339, %v481
      %v490 = vmul.f32 %v489, 0.5
      %v491 = vtanh.pop %v490
      %v492 = vadd.f32 %v491, 1.0
      %v493 = vmul.f32 %v492, 0.5
      %494 = vmatprep.subr.mxu0 0.0
      %495 = vmatpush1.msra.mxu0 %v324
      %496 = vmatprep.subr.mxu0 0.0
      %497 = vmatpush1.msra.mxu0 %v325
      %498 = vmatprep.subr.mxu0 0.0
      %499 = vmatpush1.msra.mxu0 %v326
      %500 = vmatprep.subr.mxu0 0.0
      %501 = vmatpush1.msra.mxu0 %v327
      %502 = vmatprep.subr.mxu0 0.0
      %503 = vmatpush1.msra.mxu0 0.0
      %504 = vmatprep.subr.mxu0 0.0
      %505 = vmatpush1.msra.mxu0 0.0
      %506 = vmatprep.subr.mxu0 0.0
      %507 = vmatpush1.msra.mxu0 0.0
      %508 = vmatprep.subr.mxu0 0.0
      %509 = vmatpush1.msra.mxu0 0.0
      %510 = vmatprep.subr.mxu0 0.0
      %511 = vmatpush1.msra.mxu0 0.0
      %512 = vmatprep.subr.mxu0 0.0
      %513 = vmatpush1.msra.mxu0 0.0
      %514 = vmatprep.subr.mxu0 0.0
      %515 = vmatpush1.msra.mxu0 0.0
      %516 = vmatprep.subr.mxu0 0.0
      %517 = vmatpush1.msra.mxu0 0.0
      %518 = vmatprep.subr.mxu0 0.0
      %519 = vmatpush1.msra.mxu0 0.0
      %520 = vmatprep.subr.mxu0 0.0
      %521 = vmatpush1.msra.mxu0 0.0
      %522 = vmatprep.subr.mxu0 0.0
      %523 = vmatpush1.msra.mxu0 0.0
      %524 = vmatprep.subr.mxu0 0.0
      %525 = vmatpush1.msra.mxu0 0.0
      %526 = vmatprep.subr.mxu0 0.0
      %527 = vmatpush1.msra.mxu0 0.0
      %528 = vmatprep.subr.mxu0 0.0
      %529 = vmatpush1.msra.mxu0 0.0
      %530 = vmatprep.subr.mxu0 0.0
      %531 = vmatpush1.msra.mxu0 0.0
      %532 = vmatprep.subr.mxu0 0.0
      %533 = vmatpush1.msra.mxu0 0.0
      %534 = vmatprep.subr.mxu0 0.0
      %535 = vmatpush1.msra.mxu0 0.0
      %536 = vmatprep.subr.mxu0 0.0
      %537 = vmatpush1.msra.mxu0 0.0
      %538 = vmatprep.subr.mxu0 0.0
      %539 = vmatpush1.msra.mxu0 0.0
      %540 = vmatprep.subr.mxu0 0.0
      %541 = vmatpush1.msra.mxu0 0.0
      %542 = vmatprep.subr.mxu0 0.0
      %543 = vmatpush1.msra.mxu0 0.0
      %544 = vmatprep.subr.mxu0 0.0
      %545 = vmatpush1.msra.mxu0 0.0
      %546 = vmatprep.subr.mxu0 0.0
      %547 = vmatpush1.msra.mxu0 0.0
      %548 = vmatprep.subr.mxu0 0.0
      %549 = vmatpush1.msra.mxu0 0.0
      %550 = vmatprep.subr.mxu0 0.0
      %551 = vmatpush1.msra.mxu0 0.0
      %552 = vmatprep.subr.mxu0 0.0
      %553 = vmatpush1.msra.mxu0 0.0
      %554 = vmatprep.subr.mxu0 0.0
      %555 = vmatpush1.msra.mxu0 0.0
      %556 = vmatprep.subr.mxu0 0.0
      %557 = vmatpush1.msra.mxu0 0.0
      %558 = vmatprep.mubr.f32.mxu0 0.0
      %559 = vmatmul.mubr.f32.gmra.mrb[0].mxu0 %v342
      %v560 = vpop.f32.mrb[0].mxu0
      %v561 = vadd.f32 %v334, %v560
      %v562 = vpop.f32.mrb[0].mxu0
      %563 = vdwg.mxu0
      %v564 = vmul.f32 %v488, %v561
      %v565 = vadd.f32 %v340, %v564
      %v566 = vtanh.pop %v565
      %v567 = vsub.f32 1.0, %v493
      %v568 = vmul.f32 %v567, %v566
      %v569 = vmul.f32 %v493, %v337
      %v570 = vadd.f32 %v568, %v569
      %v571 = vstv %s336
      %vm572 = vcmp.lt.s32.totalorder %v571, %v328
      %v573 = vsel %vm572, 1, 0
      %574 = vset.pattern.permute.xlu0 0
      %575 = vperm.xlu0 %574, %v573
      %v576 = vpop.permute.xlu0 %575
      %vm577 = vcmp.eq.s32.totalorder %v576, 1
      %v578 = vsel %vm577, %v570, %v337
      %s579 = scalar_lea.vmem [#allocation3], 8
      %v580 = vld [vmem:[%s579] sm:$0xff]
      %s581 = scalar_lea.vmem [#allocation4], 8
      %v582 = vld [vmem:[%s581] sm:$0xff]
      %s583 = scalar_lea.vmem [#allocation5], 8
      %v584 = vld [vmem:[%s583] sm:$0xff]
      %v586 = vsel %vm235, %v578, 0
      %588 = vmatprep.subr.mxu0 0.0
      %589 = vmatpush1.msra.mxu0 %v316
      %590 = vmatprep.subr.mxu0 0.0
      %591 = vmatpush1.msra.mxu0 %v317
      %592 = vmatprep.subr.mxu0 0.0
      %593 = vmatpush1.msra.mxu0 %v318
      %594 = vmatprep.subr.mxu0 0.0
      %595 = vmatpush1.msra.mxu0 %v319
      %596 = vmatprep.subr.mxu0 0.0
      %597 = vmatpush1.msra.mxu0 0.0
      %598 = vmatprep.subr.mxu0 0.0
      %599 = vmatpush1.msra.mxu0 0.0
      %600 = vmatprep.subr.mxu0 0.0
      %601 = vmatpush1.msra.mxu0 0.0
      %602 = vmatprep.subr.mxu0 0.0
      %603 = vmatpush1.msra.mxu0 0.0
      %604 = vmatprep.subr.mxu0 0.0
      %605 = vmatpush1.msra.mxu0 0.0
      %606 = vmatprep.subr.mxu0 0.0
      %607 = vmatpush1.msra.mxu0 0.0
      %608 = vmatprep.subr.mxu0 0.0
      %609 = vmatpush1.msra.mxu0 0.0
      %610 = vmatprep.subr.mxu0 0.0
      %611 = vmatpush1.msra.mxu0 0.0
      %612 = vmatprep.subr.mxu0 0.0
      %613 = vmatpush1.msra.mxu0 0.0
      %614 = vmatprep.subr.mxu0 0.0
      %615 = vmatpush1.msra.mxu0 0.0
      %616 = vmatprep.subr.mxu0 0.0
      %617 = vmatpush1.msra.mxu0 0.0
      %618 = vmatprep.subr.mxu0 0.0
      %619 = vmatpush1.msra.mxu0 0.0
      %620 = vmatprep.subr.mxu0 0.0
      %621 = vmatpush1.msra.mxu0 0.0
      %622 = vmatprep.subr.mxu0 0.0
      %623 = vmatpush1.msra.mxu0 0.0
      %624 = vmatprep.subr.mxu0 0.0
      %625 = vmatpush1.msra.mxu0 0.0
      %626 = vmatprep.subr.mxu0 0.0
      %627 = vmatpush1.msra.mxu0 0.0
      %628 = vmatprep.subr.mxu0 0.0
      %629 = vmatpush1.msra.mxu0 0.0
      %630 = vmatprep.subr.mxu0 0.0
      %631 = vmatpush1.msra.mxu0 0.0
      %632 = vmatprep.subr.mxu0 0.0
      %633 = vmatpush1.msra.mxu0 0.0
      %634 = vmatprep.subr.mxu0 0.0
      %635 = vmatpush1.msra.mxu0 0.0
      %636 = vmatprep.subr.mxu0 0.0
      %637 = vmatpush1.msra.mxu0 0.0
      %638 = vmatprep.subr.mxu0 0.0
      %639 = vmatpush1.msra.mxu0 0.0
      %640 = vmatprep.subr.mxu0 0.0
      %641 = vmatpush1.msra.mxu0 0.0
      %642 = vmatprep.subr.mxu0 0.0
      %643 = vmatpush1.msra.mxu0 0.0
      %644 = vmatprep.subr.mxu0 0.0
      %645 = vmatpush1.msra.mxu0 0.0
      %646 = vmatprep.subr.mxu0 0.0
      %647 = vmatpush1.msra.mxu0 0.0
      %648 = vmatprep.subr.mxu0 0.0
      %649 = vmatpush1.msra.mxu0 0.0
      %650 = vmatprep.subr.mxu0 0.0
      %651 = vmatpush1.msra.mxu0 0.0
      %652 = vmatprep.mubr.f32.mxu0 0.0
      %653 = vmatmul.mubr.f32.gmra.mrb[0].mxu0 %v586
      %v654 = vpop.f32.mrb[0].mxu0
      %v655 = vadd.f32 0.0, %v654
      %v656 = vpop.f32.mrb[0].mxu0
      %657 = vdwg.mxu0
      %658 = vmatprep.subr.mxu0 0.0
      %659 = vmatpush1.msra.mxu0 %v320
      %660 = vmatprep.subr.mxu0 0.0
      %661 = vmatpush1.msra.mxu0 %v321
      %662 = vmatprep.subr.mxu0 0.0
      %663 = vmatpush1.msra.mxu0 %v322
      %664 = vmatprep.subr.mxu0 0.0
      %665 = vmatpush1.msra.mxu0 %v323
      %666 = vmatprep.subr.mxu0 0.0
      %667 = vmatpush1.msra.mxu0 0.0
      %668 = vmatprep.subr.mxu0 0.0
      %669 = vmatpush1.msra.mxu0 0.0
      %670 = vmatprep.subr.mxu0 0.0
      %671 = vmatpush1.msra.mxu0 0.0
      %672 = vmatprep.subr.mxu0 0.0
      %673 = vmatpush1.msra.mxu0 0.0
      %674 = vmatprep.subr.mxu0 0.0
      %675 = vmatpush1.msra.mxu0 0.0
      %676 = vmatprep.subr.mxu0 0.0
      %677 = vmatpush1.msra.mxu0 0.0
      %678 = vmatprep.subr.mxu0 0.0
      %679 = vmatpush1.msra.mxu0 0.0
      %680 = vmatprep.subr.mxu0 0.0
      %681 = vmatpush1.msra.mxu0 0.0
      %682 = vmatprep.subr.mxu0 0.0
      %683 = vmatpush1.msra.mxu0 0.0
      %684 = vmatprep.subr.mxu0 0.0
      %685 = vmatpush1.msra.mxu0 0.0
      %686 = vmatprep.subr.mxu0 0.0
      %687 = vmatpush1.msra.mxu0 0.0
      %688 = vmatprep.subr.mxu0 0.0
      %689 = vmatpush1.msra.mxu0 0.0
      %690 = vmatprep.subr.mxu0 0.0
      %691 = vmatpush1.msra.mxu0 0.0
      %692 = vmatprep.subr.mxu0 0.0
      %693 = vmatpush1.msra.mxu0 0.0
      %694 = vmatprep.subr.mxu0 0.0
      %695 = vmatpush1.msra.mxu0 0.0
      %696 = vmatprep.subr.mxu0 0.0
      %697 = vmatpush1.msra.mxu0 0.0
      %698 = vmatprep.subr.mxu0 0.0
      %699 = vmatpush1.msra.mxu0 0.0
      %700 = vmatprep.subr.mxu0 0.0
      %701 = vmatpush1.msra.mxu0 0.0
      %702 = vmatprep.subr.mxu0 0.0
      %703 = vmatpush1.msra.mxu0 0.0
      %704 = vmatprep.subr.mxu0 0.0
      %705 = vmatpush1.msra.mxu0 0.0
      %706 = vmatprep.subr.mxu0 0.0
      %707 = vmatpush1.msra.mxu0 0.0
      %708 = vmatprep.subr.mxu0 0.0
      %709 = vmatpush1.msra.mxu0 0.0
      %710 = vmatprep.subr.mxu0 0.0
      %711 = vmatpush1.msra.mxu0 0.0
      %712 = vmatprep.subr.mxu0 0.0
      %713 = vmatpush1.msra.mxu0 0.0
      %714 = vmatprep.subr.mxu0 0.0
      %715 = vmatpush1.msra.mxu0 0.0
      %716 = vmatprep.subr.mxu0 0.0
      %717 = vmatpush1.msra.mxu0 0.0
      %718 = vmatprep.subr.mxu0 0.0
      %719 = vmatpush1.msra.mxu0 0.0
      %720 = vmatprep.subr.mxu0 0.0
      %721 = vmatpush1.msra.mxu0 0.0
      %722 = vmatprep.mubr.f32.mxu0 0.0
      %723 = vmatmul.mubr.f32.gmra.mrb[0].mxu0 %v586
      %v724 = vpop.f32.mrb[0].mxu0
      %v725 = vadd.f32 0.0, %v724
      %v726 = vpop.f32.mrb[0].mxu0
      %727 = vdwg.mxu0
      %v728 = vadd.f32 %v580, %v655
      %v729 = vmul.f32 %v728, 0.5
      %v730 = vtanh.pop %v729
      %v731 = vadd.f32 %v730, 1.0
      %v732 = vmul.f32 %v731, 0.5
      %v733 = vadd.f32 %v582, %v725
      %v734 = vmul.f32 %v733, 0.5
      %v735 = vtanh.pop %v734
      %v736 = vadd.f32 %v735, 1.0
      %v737 = vmul.f32 %v736, 0.5
      %738 = vmatprep.subr.mxu0 0.0
      %739 = vmatpush1.msra.mxu0 %v324
      %740 = vmatprep.subr.mxu0 0.0
      %741 = vmatpush1.msra.mxu0 %v325
      %742 = vmatprep.subr.mxu0 0.0
      %743 = vmatpush1.msra.mxu0 %v326
      %744 = vmatprep.subr.mxu0 0.0
      %745 = vmatpush1.msra.mxu0 %v327
      %746 = vmatprep.subr.mxu0 0.0
      %747 = vmatpush1.msra.mxu0 0.0
      %748 = vmatprep.subr.mxu0 0.0
      %749 = vmatpush1.msra.mxu0 0.0
      %750 = vmatprep.subr.mxu0 0.0
      %751 = vmatpush1.msra.mxu0 0.0
      %752 = vmatprep.subr.mxu0 0.0
      %753 = vmatpush1.msra.mxu0 0.0
      %754 = vmatprep.subr.mxu0 0.0
      %755 = vmatpush1.msra.mxu0 0.0
      %756 = vmatprep.subr.mxu0 0.0
      %757 = vmatpush1.msra.mxu0 0.0
      %758 = vmatprep.subr.mxu0 0.0
      %759 = vmatpush1.msra.mxu0 0.0
      %760 = vmatprep.subr.mxu0 0.0
      %761 = vmatpush1.msra.mxu0 0.0
      %762 = vmatprep.subr.mxu0 0.0
      %763 = vmatpush1.msra.mxu0 0.0
      %764 = vmatprep.subr.mxu0 0.0
      %765 = vmatpush1.msra.mxu0 0.0
      %766 = vmatprep.subr.mxu0 0.0
      %767 = vmatpush1.msra.mxu0 0.0
      %768 = vmatprep.subr.mxu0 0.0
      %769 = vmatpush1.msra.mxu0 0.0
      %770 = vmatprep.subr.mxu0 0.0
      %771 = vmatpush1.msra.mxu0 0.0
      %772 = vmatprep.subr.mxu0 0.0
      %773 = vmatpush1.msra.mxu0 0.0
      %774 = vmatprep.subr.mxu0 0.0
      %775 = vmatpush1.msra.mxu0 0.0
      %776 = vmatprep.subr.mxu0 0.0
      %777 = vmatpush1.msra.mxu0 0.0
      %778 = vmatprep.subr.mxu0 0.0
      %779 = vmatpush1.msra.mxu0 0.0
      %780 = vmatprep.subr.mxu0 0.0
      %781 = vmatpush1.msra.mxu0 0.0
      %782 = vmatprep.subr.mxu0 0.0
      %783 = vmatpush1.msra.mxu0 0.0
      %784 = vmatprep.subr.mxu0 0.0
      %785 = vmatpush1.msra.mxu0 0.0
      %786 = vmatprep.subr.mxu0 0.0
      %787 = vmatpush1.msra.mxu0 0.0
      %788 = vmatprep.subr.mxu0 0.0
      %789 = vmatpush1.msra.mxu0 0.0
      %790 = vmatprep.subr.mxu0 0.0
      %791 = vmatpush1.msra.mxu0 0.0
      %792 = vmatprep.subr.mxu0 0.0
      %793 = vmatpush1.msra.mxu0 0.0
      %794 = vmatprep.subr.mxu0 0.0
      %795 = vmatpush1.msra.mxu0 0.0
      %796 = vmatprep.subr.mxu0 0.0
      %797 = vmatpush1.msra.mxu0 0.0
      %798 = vmatprep.subr.mxu0 0.0
      %799 = vmatpush1.msra.mxu0 0.0
      %800 = vmatprep.subr.mxu0 0.0
      %801 = vmatpush1.msra.mxu0 0.0
      %802 = vmatprep.mubr.f32.mxu0 0.0
      %803 = vmatmul.mubr.f32.gmra.mrb[0].mxu0 %v586
      %v804 = vpop.f32.mrb[0].mxu0
      %v805 = vadd.f32 %v334, %v804
      %v806 = vpop.f32.mrb[0].mxu0
      %807 = vdwg.mxu0
      %v808 = vmul.f32 %v732, %v805
      %v809 = vadd.f32 %v584, %v808
      %v810 = vtanh.pop %v809
      %v811 = vsub.f32 1.0, %v737
      %v812 = vmul.f32 %v811, %v810
      %v813 = vmul.f32 %v737, %v578
      %v814 = vadd.f32 %v812, %v813
      %s815 = sadd.s32 %s336, 1
      %v816 = vstv %s815
      %vm817 = vcmp.lt.s32.totalorder %v816, %v328
      %v818 = vsel %vm817, 1, 0
      %819 = vset.pattern.permute.xlu0 0
      %820 = vperm.xlu0 %819, %v818
      %v821 = vpop.permute.xlu0 %820
      %vm822 = vcmp.eq.s32.totalorder %v821, 1
      %v823 = vsel %vm822, %v814, %v578
      %s824 = scalar_lea.vmem [#allocation3], 16
      %v825 = vld [vmem:[%s824] sm:$0xff]
      %s826 = scalar_lea.vmem [#allocation4], 16
      %v827 = vld [vmem:[%s826] sm:$0xff]
      %s828 = scalar_lea.vmem [#allocation5], 16
      %v829 = vld [vmem:[%s828] sm:$0xff]
      %v831 = vsel %vm235, %v823, 0
      %833 = vmatprep.subr.mxu0 0.0
      %834 = vmatpush1.msra.mxu0 %v316
      %835 = vmatprep.subr.mxu0 0.0
      %836 = vmatpush1.msra.mxu0 %v317
      %837 = vmatprep.subr.mxu0 0.0
      %838 = vmatpush1.msra.mxu0 %v318
      %839 = vmatprep.subr.mxu0 0.0
      %840 = vmatpush1.msra.mxu0 %v319
      %841 = vmatprep.subr.mxu0 0.0
      %842 = vmatpush1.msra.mxu0 0.0
      %843 = vmatprep.subr.mxu0 0.0
      %844 = vmatpush1.msra.mxu0 0.0
      %845 = vmatprep.subr.mxu0 0.0
      %846 = vmatpush1.msra.mxu0 0.0
      %847 = vmatprep.subr.mxu0 0.0
      %848 = vmatpush1.msra.mxu0 0.0
      %849 = vmatprep.subr.mxu0 0.0
      %850 = vmatpush1.msra.mxu0 0.0
      %851 = vmatprep.subr.mxu0 0.0
      %852 = vmatpush1.msra.mxu0 0.0
      %853 = vmatprep.subr.mxu0 0.0
      %854 = vmatpush1.msra.mxu0 0.0
      %855 = vmatprep.subr.mxu0 0.0
      %856 = vmatpush1.msra.mxu0 0.0
      %857 = vmatprep.subr.mxu0 0.0
      %858 = vmatpush1.msra.mxu0 0.0
      %859 = vmatprep.subr.mxu0 0.0
      %860 = vmatpush1.msra.mxu0 0.0
      %861 = vmatprep.subr.mxu0 0.0
      %862 = vmatpush1.msra.mxu0 0.0
      %863 = vmatprep.subr.mxu0 0.0
      %864 = vmatpush1.msra.mxu0 0.0
      %865 = vmatprep.subr.mxu0 0.0
      %866 = vmatpush1.msra.mxu0 0.0
      %867 = vmatprep.subr.mxu0 0.0
      %868 = vmatpush1.msra.mxu0 0.0
      %869 = vmatprep.subr.mxu0 0.0
      %870 = vmatpush1.msra.mxu0 0.0
      %871 = vmatprep.subr.mxu0 0.0
      %872 = vmatpush1.msra.mxu0 0.0
      %873 = vmatprep.subr.mxu0 0.0
      %874 = vmatpush1.msra.mxu0 0.0
      %875 = vmatprep.subr.mxu0 0.0
      %876 = vmatpush1.msra.mxu0 0.0
      %877 = vmatprep.subr.mxu0 0.0
      %878 = vmatpush1.msra.mxu0 0.0
      %879 = vmatprep.subr.mxu0 0.0
      %880 = vmatpush1.msra.mxu0 0.0
      %881 = vmatprep.subr.mxu0 0.0
      %882 = vmatpush1.msra.mxu0 0.0
      %883 = vmatprep.subr.mxu0 0.0
      %884 = vmatpush1.msra.mxu0 0.0
      %885 = vmatprep.subr.mxu0 0.0
      %886 = vmatpush1.msra.mxu0 0.0
      %887 = vmatprep.subr.mxu0 0.0
      %888 = vmatpush1.msra.mxu0 0.0
      %889 = vmatprep.subr.mxu0 0.0
      %890 = vmatpush1.msra.mxu0 0.0
      %891 = vmatprep.subr.mxu0 0.0
      %892 = vmatpush1.msra.mxu0 0.0
      %893 = vmatprep.subr.mxu0 0.0
      %894 = vmatpush1.msra.mxu0 0.0
      %895 = vmatprep.subr.mxu0 0.0
      %896 = vmatpush1.msra.mxu0 0.0
      %897 = vmatprep.mubr.f32.mxu0 0.0
      %898 = vmatmul.mubr.f32.gmra.mrb[0].mxu0 %v831
      %v899 = vpop.f32.mrb[0].mxu0
      %v900 = vadd.f32 0.0, %v899
      %v901 = vpop.f32.mrb[0].mxu0
      %902 = vdwg.mxu0
      %903 = vmatprep.subr.mxu0 0.0
      %904 = vmatpush1.msra.mxu0 %v320
      %905 = vmatprep.subr.mxu0 0.0
      %906 = vmatpush1.msra.mxu0 %v321
      %907 = vmatprep.subr.mxu0 0.0
      %908 = vmatpush1.msra.mxu0 %v322
      %909 = vmatprep.subr.mxu0 0.0
      %910 = vmatpush1.msra.mxu0 %v323
      %911 = vmatprep.subr.mxu0 0.0
      %912 = vmatpush1.msra.mxu0 0.0
      %913 = vmatprep.subr.mxu0 0.0
      %914 = vmatpush1.msra.mxu0 0.0
      %915 = vmatprep.subr.mxu0 0.0
      %916 = vmatpush1.msra.mxu0 0.0
      %917 = vmatprep.subr.mxu0 0.0
      %918 = vmatpush1.msra.mxu0 0.0
      %919 = vmatprep.subr.mxu0 0.0
      %920 = vmatpush1.msra.mxu0 0.0
      %921 = vmatprep.subr.mxu0 0.0
      %922 = vmatpush1.msra.mxu0 0.0
      %923 = vmatprep.subr.mxu0 0.0
      %924 = vmatpush1.msra.mxu0 0.0
      %925 = vmatprep.subr.mxu0 0.0
      %926 = vmatpush1.msra.mxu0 0.0
      %927 = vmatprep.subr.mxu0 0.0
      %928 = vmatpush1.msra.mxu0 0.0
      %929 = vmatprep.subr.mxu0 0.0
      %930 = vmatpush1.msra.mxu0 0.0
      %931 = vmatprep.subr.mxu0 0.0
      %932 = vmatpush1.msra.mxu0 0.0
      %933 = vmatprep.subr.mxu0 0.0
      %934 = vmatpush1.msra.mxu0 0.0
      %935 = vmatprep.subr.mxu0 0.0
      %936 = vmatpush1.msra.mxu0 0.0
      %937 = vmatprep.subr.mxu0 0.0
      %938 = vmatpush1.msra.mxu0 0.0
      %939 = vmatprep.subr.mxu0 0.0
      %940 = vmatpush1.msra.mxu0 0.0
      %941 = vmatprep.subr.mxu0 0.0
      %942 = vmatpush1.msra.mxu0 0.0
      %943 = vmatprep.subr.mxu0 0.0
      %944 = vmatpush1.msra.mxu0 0.0
      %945 = vmatprep.subr.mxu0 0.0
      %946 = vmatpush1.msra.mxu0 0.0
      %947 = vmatprep.subr.mxu0 0.0
      %948 = vmatpush1.msra.mxu0 0.0
      %949 = vmatprep.subr.mxu0 0.0
      %950 = vmatpush1.msra.mxu0 0.0
      %951 = vmatprep.subr.mxu0 0.0
      %952 = vmatpush1.msra.mxu0 0.0
      %953 = vmatprep.subr.mxu0 0.0
      %954 = vmatpush1.msra.mxu0 0.0
      %955 = vmatprep.subr.mxu0 0.0
      %956 = vmatpush1.msra.mxu0 0.0
      %957 = vmatprep.subr.mxu0 0.0
      %958 = vmatpush1.msra.mxu0 0.0
      %959 = vmatprep.subr.mxu0 0.0
      %960 = vmatpush1.msra.mxu0 0.0
      %961 = vmatprep.subr.mxu0 0.0
      %962 = vmatpush1.msra.mxu0 0.0
      %963 = vmatprep.subr.mxu0 0.0
      %964 = vmatpush1.msra.mxu0 0.0
      %965 = vmatprep.subr.mxu0 0.0
      %966 = vmatpush1.msra.mxu0 0.0
      %967 = vmatprep.mubr.f32.mxu0 0.0
      %968 = vmatmul.mubr.f32.gmra.mrb[0].mxu0 %v831
      %v969 = vpop.f32.mrb[0].mxu0
      %v970 = vadd.f32 0.0, %v969
      %v971 = vpop.f32.mrb[0].mxu0
      %972 = vdwg.mxu0
      %v973 = vadd.f32 %v825, %v900
      %v974 = vmul.f32 %v973, 0.5
      %v975 = vtanh.pop %v974
      %v976 = vadd.f32 %v975, 1.0
      %v977 = vmul.f32 %v976, 0.5
      %v978 = vadd.f32 %v827, %v970
      %v979 = vmul.f32 %v978, 0.5
      %v980 = vtanh.pop %v979
      %v981 = vadd.f32 %v980, 1.0
      %v982 = vmul.f32 %v981, 0.5
      %983 = vmatprep.subr.mxu0 0.0
      %984 = vmatpush1.msra.mxu0 %v324
      %985 = vmatprep.subr.mxu0 0.0
      %986 = vmatpush1.msra.mxu0 %v325
      %987 = vmatprep.subr.mxu0 0.0
      %988 = vmatpush1.msra.mxu0 %v326
      %989 = vmatprep.subr.mxu0 0.0
      %990 = vmatpush1.msra.mxu0 %v327
      %991 = vmatprep.subr.mxu0 0.0
      %992 = vmatpush1.msra.mxu0 0.0
      %993 = vmatprep.subr.mxu0 0.0
      %994 = vmatpush1.msra.mxu0 0.0
      %995 = vmatprep.subr.mxu0 0.0
      %996 = vmatpush1.msra.mxu0 0.0
      %997 = vmatprep.subr.mxu0 0.0
      %998 = vmatpush1.msra.mxu0 0.0
      %999 = vmatprep.subr.mxu0 0.0
      %1000 = vmatpush1.msra.mxu0 0.0
      %1001 = vmatprep.subr.mxu0 0.0
      %1002 = vmatpush1.msra.mxu0 0.0
      %1003 = vmatprep.subr.mxu0 0.0
      %1004 = vmatpush1.msra.mxu0 0.0
      %1005 = vmatprep.subr.mxu0 0.0
      %1006 = vmatpush1.msra.mxu0 0.0
      %1007 = vmatprep.subr.mxu0 0.0
      %1008 = vmatpush1.msra.mxu0 0.0
      %1009 = vmatprep.subr.mxu0 0.0
      %1010 = vmatpush1.msra.mxu0 0.0
      %1011 = vmatprep.subr.mxu0 0.0
      %1012 = vmatpush1.msra.mxu0 0.0
      %1013 = vmatprep.subr.mxu0 0.0
      %1014 = vmatpush1.msra.mxu0 0.0
      %1015 = vmatprep.subr.mxu0 0.0
      %1016 = vmatpush1.msra.mxu0 0.0
      %1017 = vmatprep.subr.mxu0 0.0
      %1018 = vmatpush1.msra.mxu0 0.0
      %1019 = vmatprep.subr.mxu0 0.0
      %1020 = vmatpush1.msra.mxu0 0.0
      %1021 = vmatprep.subr.mxu0 0.0
      %1022 = vmatpush1.msra.mxu0 0.0
      %1023 = vmatprep.subr.mxu0 0.0
      %1024 = vmatpush1.msra.mxu0 0.0
      %1025 = vmatprep.subr.mxu0 0.0
      %1026 = vmatpush1.msra.mxu0 0.0
      %1027 = vmatprep.subr.mxu0 0.0
      %1028 = vmatpush1.msra.mxu0 0.0
      %1029 = vmatprep.subr.mxu0 0.0
      %1030 = vmatpush1.msra.mxu0 0.0
      %1031 = vmatprep.subr.mxu0 0.0
      %1032 = vmatpush1.msra.mxu0 0.0
      %1033 = vmatprep.subr.mxu0 0.0
      %1034 = vmatpush1.msra.mxu0 0.0
      %1035 = vmatprep.subr.mxu0 0.0
      %1036 = vmatpush1.msra.mxu0 0.0
      %1037 = vmatprep.subr.mxu0 0.0
      %1038 = vmatpush1.msra.mxu0 0.0
      %1039 = vmatprep.subr.mxu0 0.0
      %1040 = vmatpush1.msra.mxu0 0.0
      %1041 = vmatprep.subr.mxu0 0.0
      %1042 = vmatpush1.msra.mxu0 0.0
      %1043 = vmatprep.subr.mxu0 0.0
      %1044 = vmatpush1.msra.mxu0 0.0
      %1045 = vmatprep.subr.mxu0 0.0
      %1046 = vmatpush1.msra.mxu0 0.0
      %1047 = vmatprep.mubr.f32.mxu0 0.0
      %1048 = vmatmul.mubr.f32.gmra.mrb[0].mxu0 %v831
      %v1049 = vpop.f32.mrb[0].mxu0
      %v1050 = vadd.f32 %v334, %v1049
      %v1051 = vpop.f32.mrb[0].mxu0
      %1052 = vdwg.mxu0
      %v1053 = vmul.f32 %v977, %v1050
      %v1054 = vadd.f32 %v829, %v1053
      %v1055 = vtanh.pop %v1054
      %v1056 = vsub.f32 1.0, %v982
      %v1057 = vmul.f32 %v1056, %v1055
      %v1058 = vmul.f32 %v982, %v823
      %v1059 = vadd.f32 %v1057, %v1058
      %s1060 = sadd.s32 %s336, 2
      %v1061 = vstv %s1060
      %vm1062 = vcmp.lt.s32.totalorder %v1061, %v328
      %v1063 = vsel %vm1062, 1, 0
      %1064 = vset.pattern.permute.xlu0 0
      %1065 = vperm.xlu0 %1064, %v1063
      %v1066 = vpop.permute.xlu0 %1065
      %vm1067 = vcmp.eq.s32.totalorder %v1066, 1
      %v1068 = vsel %vm1067, %v1059, %v823
      %s1069 = scalar_lea.vmem [#allocation3], 24
      %v1070 = vld [vmem:[%s1069] sm:$0xff]
      %s1071 = scalar_lea.vmem [#allocation4], 24
      %v1072 = vld [vmem:[%s1071] sm:$0xff]
      %s1073 = scalar_lea.vmem [#allocation5], 24
      %v1074 = vld [vmem:[%s1073] sm:$0xff]
      %v1076 = vsel %vm235, %v1068, 0
      %1078 = vmatprep.subr.mxu0 0.0
      %1079 = vmatpush1.msra.mxu0 %v316
      %1080 = vmatprep.subr.mxu0 0.0
      %1081 = vmatpush1.msra.mxu0 %v317
      %1082 = vmatprep.subr.mxu0 0.0
      %1083 = vmatpush1.msra.mxu0 %v318
      %1084 = vmatprep.subr.mxu0 0.0
      %1085 = vmatpush1.msra.mxu0 %v319
      %1086 = vmatprep.subr.mxu0 0.0
      %1087 = vmatpush1.msra.mxu0 0.0
      %1088 = vmatprep.subr.mxu0 0.0
      %1089 = vmatpush1.msra.mxu0 0.0
      %1090 = vmatprep.subr.mxu0 0.0
      %1091 = vmatpush1.msra.mxu0 0.0
      %1092 = vmatprep.subr.mxu0 0.0
      %1093 = vmatpush1.msra.mxu0 0.0
      %1094 = vmatprep.subr.mxu0 0.0
      %1095 = vmatpush1.msra.mxu0 0.0
      %1096 = vmatprep.subr.mxu0 0.0
      %1097 = vmatpush1.msra.mxu0 0.0
      %1098 = vmatprep.subr.mxu0 0.0
      %1099 = vmatpush1.msra.mxu0 0.0
      %1100 = vmatprep.subr.mxu0 0.0
      %1101 = vmatpush1.msra.mxu0 0.0
      %1102 = vmatprep.subr.mxu0 0.0
      %1103 = vmatpush1.msra.mxu0 0.0
      %1104 = vmatprep.subr.mxu0 0.0
      %1105 = vmatpush1.msra.mxu0 0.0
      %1106 = vmatprep.subr.mxu0 0.0
      %1107 = vmatpush1.msra.mxu0 0.0
      %1108 = vmatprep.subr.mxu0 0.0
      %1109 = vmatpush1.msra.mxu0 0.0
      %1110 = vmatprep.subr.mxu0 0.0
      %1111 = vmatpush1.msra.mxu0 0.0
      %1112 = vmatprep.subr.mxu0 0.0
      %1113 = vmatpush1.msra.mxu0 0.0
      %1114 = vmatprep.subr.mxu0 0.0
      %1115 = vmatpush1.msra.mxu0 0.0
      %1116 = vmatprep.subr.mxu0 0.0
      %1117 = vmatpush1.msra.mxu0 0.0
      %1118 = vmatprep.subr.mxu0 0.0
      %1119 = vmatpush1.msra.mxu0 0.0
      %1120 = vmatprep.subr.mxu0 0.0
      %1121 = vmatpush1.msra.mxu0 0.0
      %1122 = vmatprep.subr.mxu0 0.0
      %1123 = vmatpush1.msra.mxu0 0.0
      %1124 = vmatprep.subr.mxu0 0.0
      %1125 = vmatpush1.msra.mxu0 0.0
      %1126 = vmatprep.subr.mxu0 0.0
      %1127 = vmatpush1.msra.mxu0 0.0
      %1128 = vmatprep.subr.mxu0 0.0
      %1129 = vmatpush1.msra.mxu0 0.0
      %1130 = vmatprep.subr.mxu0 0.0
      %1131 = vmatpush1.msra.mxu0 0.0
      %1132 = vmatprep.subr.mxu0 0.0
      %1133 = vmatpush1.msra.mxu0 0.0
      %1134 = vmatprep.subr.mxu0 0.0
      %1135 = vmatpush1.msra.mxu0 0.0
      %1136 = vmatprep.subr.mxu0 0.0
      %1137 = vmatpush1.msra.mxu0 0.0
      %1138 = vmatprep.subr.mxu0 0.0
      %1139 = vmatpush1.msra.mxu0 0.0
      %1140 = vmatprep.subr.mxu0 0.0
      %1141 = vmatpush1.msra.mxu0 0.0
      %1142 = vmatprep.mubr.f32.mxu0 0.0
      %1143 = vmatmul.mubr.f32.gmra.mrb[0].mxu0 %v1076
      %v1144 = vpop.f32.mrb[0].mxu0
      %v1145 = vadd.f32 0.0, %v1144
      %v1146 = vpop.f32.mrb[0].mxu0
      %1147 = vdwg.mxu0
      %1148 = vmatprep.subr.mxu0 0.0
      %1149 = vmatpush1.msra.mxu0 %v320
      %1150 = vmatprep.subr.mxu0 0.0
      %1151 = vmatpush1.msra.mxu0 %v321
      %1152 = vmatprep.subr.mxu0 0.0
      %1153 = vmatpush1.msra.mxu0 %v322
      %1154 = vmatprep.subr.mxu0 0.0
      %1155 = vmatpush1.msra.mxu0 %v323
      %1156 = vmatprep.subr.mxu0 0.0
      %1157 = vmatpush1.msra.mxu0 0.0
      %1158 = vmatprep.subr.mxu0 0.0
      %1159 = vmatpush1.msra.mxu0 0.0
      %1160 = vmatprep.subr.mxu0 0.0
      %1161 = vmatpush1.msra.mxu0 0.0
      %1162 = vmatprep.subr.mxu0 0.0
      %1163 = vmatpush1.msra.mxu0 0.0
      %1164 = vmatprep.subr.mxu0 0.0
      %1165 = vmatpush1.msra.mxu0 0.0
      %1166 = vmatprep.subr.mxu0 0.0
      %1167 = vmatpush1.msra.mxu0 0.0
      %1168 = vmatprep.subr.mxu0 0.0
      %1169 = vmatpush1.msra.mxu0 0.0
      %1170 = vmatprep.subr.mxu0 0.0
      %1171 = vmatpush1.msra.mxu0 0.0
      %1172 = vmatprep.subr.mxu0 0.0
      %1173 = vmatpush1.msra.mxu0 0.0
      %1174 = vmatprep.subr.mxu0 0.0
      %1175 = vmatpush1.msra.mxu0 0.0
      %1176 = vmatprep.subr.mxu0 0.0
      %1177 = vmatpush1.msra.mxu0 0.0
      %1178 = vmatprep.subr.mxu0 0.0
      %1179 = vmatpush1.msra.mxu0 0.0
      %1180 = vmatprep.subr.mxu0 0.0
      %1181 = vmatpush1.msra.mxu0 0.0
      %1182 = vmatprep.subr.mxu0 0.0
      %1183 = vmatpush1.msra.mxu0 0.0
      %1184 = vmatprep.subr.mxu0 0.0
      %1185 = vmatpush1.msra.mxu0 0.0
      %1186 = vmatprep.subr.mxu0 0.0
      %1187 = vmatpush1.msra.mxu0 0.0
      %1188 = vmatprep.subr.mxu0 0.0
      %1189 = vmatpush1.msra.mxu0 0.0
      %1190 = vmatprep.subr.mxu0 0.0
      %1191 = vmatpush1.msra.mxu0 0.0
      %1192 = vmatprep.subr.mxu0 0.0
      %1193 = vmatpush1.msra.mxu0 0.0
      %1194 = vmatprep.subr.mxu0 0.0
      %1195 = vmatpush1.msra.mxu0 0.0
      %1196 = vmatprep.subr.mxu0 0.0
      %1197 = vmatpush1.msra.mxu0 0.0
      %1198 = vmatprep.subr.mxu0 0.0
      %1199 = vmatpush1.msra.mxu0 0.0
      %1200 = vmatprep.subr.mxu0 0.0
      %1201 = vmatpush1.msra.mxu0 0.0
      %1202 = vmatprep.subr.mxu0 0.0
      %1203 = vmatpush1.msra.mxu0 0.0
      %1204 = vmatprep.subr.mxu0 0.0
      %1205 = vmatpush1.msra.mxu0 0.0
      %1206 = vmatprep.subr.mxu0 0.0
      %1207 = vmatpush1.msra.mxu0 0.0
      %1208 = vmatprep.subr.mxu0 0.0
      %1209 = vmatpush1.msra.mxu0 0.0
      %1210 = vmatprep.subr.mxu0 0.0
      %1211 = vmatpush1.msra.mxu0 0.0
      %1212 = vmatprep.mubr.f32.mxu0 0.0
      %1213 = vmatmul.mubr.f32.gmra.mrb[0].mxu0 %v1076
      %v1214 = vpop.f32.mrb[0].mxu0
      %v1215 = vadd.f32 0.0, %v1214
      %v1216 = vpop.f32.mrb[0].mxu0
      %1217 = vdwg.mxu0
      %v1218 = vadd.f32 %v1070, %v1145
      %v1219 = vmul.f32 %v1218, 0.5
      %v1220 = vtanh.pop %v1219
      %v1221 = vadd.f32 %v1220, 1.0
      %v1222 = vmul.f32 %v1221, 0.5
      %v1223 = vadd.f32 %v1072, %v1215
      %v1224 = vmul.f32 %v1223, 0.5
      %v1225 = vtanh.pop %v1224
      %v1226 = vadd.f32 %v1225, 1.0
      %v1227 = vmul.f32 %v1226, 0.5
      %1228 = vmatprep.subr.mxu0 0.0
      %1229 = vmatpush1.msra.mxu0 %v324
      %1230 = vmatprep.subr.mxu0 0.0
      %1231 = vmatpush1.msra.mxu0 %v325
      %1232 = vmatprep.subr.mxu0 0.0
      %1233 = vmatpush1.msra.mxu0 %v326
      %1234 = vmatprep.subr.mxu0 0.0
      %1235 = vmatpush1.msra.mxu0 %v327
      %1236 = vmatprep.subr.mxu0 0.0
      %1237 = vmatpush1.msra.mxu0 0.0
      %1238 = vmatprep.subr.mxu0 0.0
      %1239 = vmatpush1.msra.mxu0 0.0
      %1240 = vmatprep.subr.mxu0 0.0
      %1241 = vmatpush1.msra.mxu0 0.0
      %1242 = vmatprep.subr.mxu0 0.0
      %1243 = vmatpush1.msra.mxu0 0.0
      %1244 = vmatprep.subr.mxu0 0.0
      %1245 = vmatpush1.msra.mxu0 0.0
      %1246 = vmatprep.subr.mxu0 0.0
      %1247 = vmatpush1.msra.mxu0 0.0
      %1248 = vmatprep.subr.mxu0 0.0
      %1249 = vmatpush1.msra.mxu0 0.0
      %1250 = vmatprep.subr.mxu0 0.0
      %1251 = vmatpush1.msra.mxu0 0.0
      %1252 = vmatprep.subr.mxu0 0.0
      %1253 = vmatpush1.msra.mxu0 0.0
      %1254 = vmatprep.subr.mxu0 0.0
      %1255 = vmatpush1.msra.mxu0 0.0
      %1256 = vmatprep.subr.mxu0 0.0
      %1257 = vmatpush1.msra.mxu0 0.0
      %1258 = vmatprep.subr.mxu0 0.0
      %1259 = vmatpush1.msra.mxu0 0.0
      %1260 = vmatprep.subr.mxu0 0.0
      %1261 = vmatpush1.msra.mxu0 0.0
      %1262 = vmatprep.subr.mxu0 0.0
      %1263 = vmatpush1.msra.mxu0 0.0
      %1264 = vmatprep.subr.mxu0 0.0
      %1265 = vmatpush1.msra.mxu0 0.0
      %1266 = vmatprep.subr.mxu0 0.0
      %1267 = vmatpush1.msra.mxu0 0.0
      %1268 = vmatprep.subr.mxu0 0.0
      %1269 = vmatpush1.msra.mxu0 0.0
      %1270 = vmatprep.subr.mxu0 0.0
      %1271 = vmatpush1.msra.mxu0 0.0
      %1272 = vmatprep.subr.mxu0 0.0
      %1273 = vmatpush1.msra.mxu0 0.0
      %1274 = vmatprep.subr.mxu0 0.0
      %1275 = vmatpush1.msra.mxu0 0.0
      %1276 = vmatprep.subr.mxu0 0.0
      %1277 = vmatpush1.msra.mxu0 0.0
      %1278 = vmatprep.subr.mxu0 0.0
      %1279 = vmatpush1.msra.mxu0 0.0
      %1280 = vmatprep.subr.mxu0 0.0
      %1281 = vmatpush1.msra.mxu0 0.0
      %1282 = vmatprep.subr.mxu0 0.0
      %1283 = vmatpush1.msra.mxu0 0.0
      %1284 = vmatprep.subr.mxu0 0.0
      %1285 = vmatpush1.msra.mxu0 0.0
      %1286 = vmatprep.subr.mxu0 0.0
      %1287 = vmatpush1.msra.mxu0 0.0
      %1288 = vmatprep.subr.mxu0 0.0
      %1289 = vmatpush1.msra.mxu0 0.0
      %1290 = vmatprep.subr.mxu0 0.0
      %1291 = vmatpush1.msra.mxu0 0.0
      %1292 = vmatprep.mubr.f32.mxu0 0.0
      %1293 = vmatmul.mubr.f32.gmra.mrb[0].mxu0 %v1076
      %v1294 = vpop.f32.mrb[0].mxu0
      %v1295 = vadd.f32 %v334, %v1294
      %v1296 = vpop.f32.mrb[0].mxu0
      %1297 = vdwg.mxu0
      %v1298 = vmul.f32 %v1222, %v1295
      %v1299 = vadd.f32 %v1074, %v1298
      %v1300 = vtanh.pop %v1299
      %v1301 = vsub.f32 1.0, %v1227
      %v1302 = vmul.f32 %v1301, %v1300
      %v1303 = vmul.f32 %v1227, %v1068
      %v1304 = vadd.f32 %v1302, %v1303
      %s1305 = sadd.s32 %s336, 3
      %v1306 = vstv %s1305
      %vm1307 = vcmp.lt.s32.totalorder %v1306, %v328
      %v1308 = vsel %vm1307, 1, 0
      %1309 = vset.pattern.permute.xlu0 0
      %1310 = vperm.xlu0 %1309, %v1308
      %v1311 = vpop.permute.xlu0 %1310
      %vm1312 = vcmp.eq.s32.totalorder %v1311, 1
      %v1313 = vsel %vm1312, %v1304, %v1068
      %s1314 = scalar_lea.vmem [#allocation3], 32
      %v1315 = vld [vmem:[%s1314] sm:$0xff]
      %s1316 = scalar_lea.vmem [#allocation4], 32
      %v1317 = vld [vmem:[%s1316] sm:$0xff]
      %s1318 = scalar_lea.vmem [#allocation5], 32
      %v1319 = vld [vmem:[%s1318] sm:$0xff]
      %v1321 = vsel %vm235, %v1313, 0
      %1323 = vmatprep.subr.mxu0 0.0
      %1324 = vmatpush1.msra.mxu0 %v316
      %1325 = vmatprep.subr.mxu0 0.0
      %1326 = vmatpush1.msra.mxu0 %v317
      %1327 = vmatprep.subr.mxu0 0.0
      %1328 = vmatpush1.msra.mxu0 %v318
      %1329 = vmatprep.subr.mxu0 0.0
      %1330 = vmatpush1.msra.mxu0 %v319
      %1331 = vmatprep.subr.mxu0 0.0
      %1332 = vmatpush1.msra.mxu0 0.0
      %1333 = vmatprep.subr.mxu0 0.0
      %1334 = vmatpush1.msra.mxu0 0.0
      %1335 = vmatprep.subr.mxu0 0.0
      %1336 = vmatpush1.msra.mxu0 0.0
      %1337 = vmatprep.subr.mxu0 0.0
      %1338 = vmatpush1.msra.mxu0 0.0
      %1339 = vmatprep.subr.mxu0 0.0
      %1340 = vmatpush1.msra.mxu0 0.0
      %1341 = vmatprep.subr.mxu0 0.0
      %1342 = vmatpush1.msra.mxu0 0.0
      %1343 = vmatprep.subr.mxu0 0.0
      %1344 = vmatpush1.msra.mxu0 0.0
      %1345 = vmatprep.subr.mxu0 0.0
      %1346 = vmatpush1.msra.mxu0 0.0
      %1347 = vmatprep.subr.mxu0 0.0
      %1348 = vmatpush1.msra.mxu0 0.0
      %1349 = vmatprep.subr.mxu0 0.0
      %1350 = vmatpush1.msra.mxu0 0.0
      %1351 = vmatprep.subr.mxu0 0.0
      %1352 = vmatpush1.msra.mxu0 0.0
      %1353 = vmatprep.subr.mxu0 0.0
      %1354 = vmatpush1.msra.mxu0 0.0
      %1355 = vmatprep.subr.mxu0 0.0
      %1356 = vmatpush1.msra.mxu0 0.0
      %1357 = vmatprep.subr.mxu0 0.0
      %1358 = vmatpush1.msra.mxu0 0.0
      %1359 = vmatprep.subr.mxu0 0.0
      %1360 = vmatpush1.msra.mxu0 0.0
      %1361 = vmatprep.subr.mxu0 0.0
      %1362 = vmatpush1.msra.mxu0 0.0
      %1363 = vmatprep.subr.mxu0 0.0
      %1364 = vmatpush1.msra.mxu0 0.0
      %1365 = vmatprep.subr.mxu0 0.0
      %1366 = vmatpush1.msra.mxu0 0.0
      %1367 = vmatprep.subr.mxu0 0.0
      %1368 = vmatpush1.msra.mxu0 0.0
      %1369 = vmatprep.subr.mxu0 0.0
      %1370 = vmatpush1.msra.mxu0 0.0
      %1371 = vmatprep.subr.mxu0 0.0
      %1372 = vmatpush1.msra.mxu0 0.0
      %1373 = vmatprep.subr.mxu0 0.0
      %1374 = vmatpush1.msra.mxu0 0.0
      %1375 = vmatprep.subr.mxu0 0.0
      %1376 = vmatpush1.msra.mxu0 0.0
      %1377 = vmatprep.subr.mxu0 0.0
      %1378 = vmatpush1.msra.mxu0 0.0
      %1379 = vmatprep.subr.mxu0 0.0
      %1380 = vmatpush1.msra.mxu0 0.0
      %1381 = vmatprep.subr.mxu0 0.0
      %1382 = vmatpush1.msra.mxu0 0.0
      %1383 = vmatprep.subr.mxu0 0.0
      %1384 = vmatpush1.msra.mxu0 0.0
      %1385 = vmatprep.subr.mxu0 0.0
      %1386 = vmatpush1.msra.mxu0 0.0
      %1387 = vmatprep.mubr.f32.mxu0 0.0
      %1388 = vmatmul.mubr.f32.gmra.mrb[0].mxu0 %v1321
      %v1389 = vpop.f32.mrb[0].mxu0
      %v1390 = vadd.f32 0.0, %v1389
      %v1391 = vpop.f32.mrb[0].mxu0
      %1392 = vdwg.mxu0
      %1393 = vmatprep.subr.mxu0 0.0
      %1394 = vmatpush1.msra.mxu0 %v320
      %1395 = vmatprep.subr.mxu0 0.0
      %1396 = vmatpush1.msra.mxu0 %v321
      %1397 = vmatprep.subr.mxu0 0.0
      %1398 = vmatpush1.msra.mxu0 %v322
      %1399 = vmatprep.subr.mxu0 0.0
      %1400 = vmatpush1.msra.mxu0 %v323
      %1401 = vmatprep.subr.mxu0 0.0
      %1402 = vmatpush1.msra.mxu0 0.0
      %1403 = vmatprep.subr.mxu0 0.0
      %1404 = vmatpush1.msra.mxu0 0.0
      %1405 = vmatprep.subr.mxu0 0.0
      %1406 = vmatpush1.msra.mxu0 0.0
      %1407 = vmatprep.subr.mxu0 0.0
      %1408 = vmatpush1.msra.mxu0 0.0
      %1409 = vmatprep.subr.mxu0 0.0
      %1410 = vmatpush1.msra.mxu0 0.0
      %1411 = vmatprep.subr.mxu0 0.0
      %1412 = vmatpush1.msra.mxu0 0.0
      %1413 = vmatprep.subr.mxu0 0.0
      %1414 = vmatpush1.msra.mxu0 0.0
      %1415 = vmatprep.subr.mxu0 0.0
      %1416 = vmatpush1.msra.mxu0 0.0
      %1417 = vmatprep.subr.mxu0 0.0
      %1418 = vmatpush1.msra.mxu0 0.0
      %1419 = vmatprep.subr.mxu0 0.0
      %1420 = vmatpush1.msra.mxu0 0.0
      %1421 = vmatprep.subr.mxu0 0.0
      %1422 = vmatpush1.msra.mxu0 0.0
      %1423 = vmatprep.subr.mxu0 0.0
      %1424 = vmatpush1.msra.mxu0 0.0
      %1425 = vmatprep.subr.mxu0 0.0
      %1426 = vmatpush1.msra.mxu0 0.0
      %1427 = vmatprep.subr.mxu0 0.0
      %1428 = vmatpush1.msra.mxu0 0.0
      %1429 = vmatprep.subr.mxu0 0.0
      %1430 = vmatpush1.msra.mxu0 0.0
      %1431 = vmatprep.subr.mxu0 0.0
      %1432 = vmatpush1.msra.mxu0 0.0
      %1433 = vmatprep.subr.mxu0 0.0
      %1434 = vmatpush1.msra.mxu0 0.0
      %1435 = vmatprep.subr.mxu0 0.0
      %1436 = vmatpush1.msra.mxu0 0.0
      %1437 = vmatprep.subr.mxu0 0.0
      %1438 = vmatpush1.msra.mxu0 0.0
      %1439 = vmatprep.subr.mxu0 0.0
      %1440 = vmatpush1.msra.mxu0 0.0
      %1441 = vmatprep.subr.mxu0 0.0
      %1442 = vmatpush1.msra.mxu0 0.0
      %1443 = vmatprep.subr.mxu0 0.0
      %1444 = vmatpush1.msra.mxu0 0.0
      %1445 = vmatprep.subr.mxu0 0.0
      %1446 = vmatpush1.msra.mxu0 0.0
      %1447 = vmatprep.subr.mxu0 0.0
      %1448 = vmatpush1.msra.mxu0 0.0
      %1449 = vmatprep.subr.mxu0 0.0
      %1450 = vmatpush1.msra.mxu0 0.0
      %1451 = vmatprep.subr.mxu0 0.0
      %1452 = vmatpush1.msra.mxu0 0.0
      %1453 = vmatprep.subr.mxu0 0.0
      %1454 = vmatpush1.msra.mxu0 0.0
      %1455 = vmatprep.subr.mxu0 0.0
      %1456 = vmatpush1.msra.mxu0 0.0
      %1457 = vmatprep.mubr.f32.mxu0 0.0
      %1458 = vmatmul.mubr.f32.gmra.mrb[0].mxu0 %v1321
      %v1459 = vpop.f32.mrb[0].mxu0
      %v1460 = vadd.f32 0.0, %v1459
      %v1461 = vpop.f32.mrb[0].mxu0
      %1462 = vdwg.mxu0
      %v1463 = vadd.f32 %v1315, %v1390
      %v1464 = vmul.f32 %v1463, 0.5
      %v1465 = vtanh.pop %v1464
      %v1466 = vadd.f32 %v1465, 1.0
      %v1467 = vmul.f32 %v1466, 0.5
      %v1468 = vadd.f32 %v1317, %v1460
      %v1469 = vmul.f32 %v1468, 0.5
      %v1470 = vtanh.pop %v1469
      %v1471 = vadd.f32 %v1470, 1.0
      %v1472 = vmul.f32 %v1471, 0.5
      %1473 = vmatprep.subr.mxu0 0.0
      %1474 = vmatpush1.msra.mxu0 %v324
      %1475 = vmatprep.subr.mxu0 0.0
      %1476 = vmatpush1.msra.mxu0 %v325
      %1477 = vmatprep.subr.mxu0 0.0
      %1478 = vmatpush1.msra.mxu0 %v326
      %1479 = vmatprep.subr.mxu0 0.0
      %1480 = vmatpush1.msra.mxu0 %v327
      %1481 = vmatprep.subr.mxu0 0.0
      %1482 = vmatpush1.msra.mxu0 0.0
      %1483 = vmatprep.subr.mxu0 0.0
      %1484 = vmatpush1.msra.mxu0 0.0
      %1485 = vmatprep.subr.mxu0 0.0
      %1486 = vmatpush1.msra.mxu0 0.0
      %1487 = vmatprep.subr.mxu0 0.0
      %1488 = vmatpush1.msra.mxu0 0.0
      %1489 = vmatprep.subr.mxu0 0.0
      %1490 = vmatpush1.msra.mxu0 0.0
      %1491 = vmatprep.subr.mxu0 0.0
      %1492 = vmatpush1.msra.mxu0 0.0
      %1493 = vmatprep.subr.mxu0 0.0
      %1494 = vmatpush1.msra.mxu0 0.0
      %1495 = vmatprep.subr.mxu0 0.0
      %1496 = vmatpush1.msra.mxu0 0.0
      %1497 = vmatprep.subr.mxu0 0.0
      %1498 = vmatpush1.msra.mxu0 0.0
      %1499 = vmatprep.subr.mxu0 0.0
      %1500 = vmatpush1.msra.mxu0 0.0
      %1501 = vmatprep.subr.mxu0 0.0
      %1502 = vmatpush1.msra.mxu0 0.0
      %1503 = vmatprep.subr.mxu0 0.0
      %1504 = vmatpush1.msra.mxu0 0.0
      %1505 = vmatprep.subr.mxu0 0.0
      %1506 = vmatpush1.msra.mxu0 0.0
      %1507 = vmatprep.subr.mxu0 0.0
      %1508 = vmatpush1.msra.mxu0 0.0
      %1509 = vmatprep.subr.mxu0 0.0
      %1510 = vmatpush1.msra.mxu0 0.0
      %1511 = vmatprep.subr.mxu0 0.0
      %1512 = vmatpush1.msra.mxu0 0.0
      %1513 = vmatprep.subr.mxu0 0.0
      %1514 = vmatpush1.msra.mxu0 0.0
      %1515 = vmatprep.subr.mxu0 0.0
      %1516 = vmatpush1.msra.mxu0 0.0
      %1517 = vmatprep.subr.mxu0 0.0
      %1518 = vmatpush1.msra.mxu0 0.0
      %1519 = vmatprep.subr.mxu0 0.0
      %1520 = vmatpush1.msra.mxu0 0.0
      %1521 = vmatprep.subr.mxu0 0.0
      %1522 = vmatpush1.msra.mxu0 0.0
      %1523 = vmatprep.subr.mxu0 0.0
      %1524 = vmatpush1.msra.mxu0 0.0
      %1525 = vmatprep.subr.mxu0 0.0
      %1526 = vmatpush1.msra.mxu0 0.0
      %1527 = vmatprep.subr.mxu0 0.0
      %1528 = vmatpush1.msra.mxu0 0.0
      %1529 = vmatprep.subr.mxu0 0.0
      %1530 = vmatpush1.msra.mxu0 0.0
      %1531 = vmatprep.subr.mxu0 0.0
      %1532 = vmatpush1.msra.mxu0 0.0
      %1533 = vmatprep.subr.mxu0 0.0
      %1534 = vmatpush1.msra.mxu0 0.0
      %1535 = vmatprep.subr.mxu0 0.0
      %1536 = vmatpush1.msra.mxu0 0.0
      %1537 = vmatprep.mubr.f32.mxu0 0.0
      %1538 = vmatmul.mubr.f32.gmra.mrb[0].mxu0 %v1321
      %v1539 = vpop.f32.mrb[0].mxu0
      %v1540 = vadd.f32 %v334, %v1539
      %v1541 = vpop.f32.mrb[0].mxu0
      %1542 = vdwg.mxu0
      %v1543 = vmul.f32 %v1467, %v1540
      %v1544 = vadd.f32 %v1319, %v1543
      %v1545 = vtanh.pop %v1544
      %v1546 = vsub.f32 1.0, %v1472
      %v1547 = vmul.f32 %v1546, %v1545
      %v1548 = vmul.f32 %v1472, %v1313
      %v1549 = vadd.f32 %v1547, %v1548
      %s1550 = sadd.s32 %s336, 4
      %v1551 = vstv %s1550
      %vm1552 = vcmp.lt.s32.totalorder %v1551, %v328
      %v1553 = vsel %vm1552, 1, 0
      %1554 = vset.pattern.permute.xlu0 0
      %1555 = vperm.xlu0 %1554, %v1553
      %v1556 = vpop.permute.xlu0 %1555
      %vm1557 = vcmp.eq.s32.totalorder %v1556, 1
      %v1558 = vsel %vm1557, %v1549, %v1313
      %s1559 = scalar_lea.vmem [#allocation3], 40
      %v1560 = vld [vmem:[%s1559] sm:$0xff]
      %s1561 = scalar_lea.vmem [#allocation4], 40
      %v1562 = vld [vmem:[%s1561] sm:$0xff]
      %s1563 = scalar_lea.vmem [#allocation5], 40
      %v1564 = vld [vmem:[%s1563] sm:$0xff]
      %v1566 = vsel %vm235, %v1558, 0
      %1568 = vmatprep.subr.mxu0 0.0
      %1569 = vmatpush1.msra.mxu0 %v316
      %1570 = vmatprep.subr.mxu0 0.0
      %1571 = vmatpush1.msra.mxu0 %v317
      %1572 = vmatprep.subr.mxu0 0.0
      %1573 = vmatpush1.msra.mxu0 %v318
      %1574 = vmatprep.subr.mxu0 0.0
      %1575 = vmatpush1.msra.mxu0 %v319
      %1576 = vmatprep.subr.mxu0 0.0
      %1577 = vmatpush1.msra.mxu0 0.0
      %1578 = vmatprep.subr.mxu0 0.0
      %1579 = vmatpush1.msra.mxu0 0.0
      %1580 = vmatprep.subr.mxu0 0.0
      %1581 = vmatpush1.msra.mxu0 0.0
      %1582 = vmatprep.subr.mxu0 0.0
      %1583 = vmatpush1.msra.mxu0 0.0
      %1584 = vmatprep.subr.mxu0 0.0
      %1585 = vmatpush1.msra.mxu0 0.0
      %1586 = vmatprep.subr.mxu0 0.0
      %1587 = vmatpush1.msra.mxu0 0.0
      %1588 = vmatprep.subr.mxu0 0.0
      %1589 = vmatpush1.msra.mxu0 0.0
      %1590 = vmatprep.subr.mxu0 0.0
      %1591 = vmatpush1.msra.mxu0 0.0
      %1592 = vmatprep.subr.mxu0 0.0
      %1593 = vmatpush1.msra.mxu0 0.0
      %1594 = vmatprep.subr.mxu0 0.0
      %1595 = vmatpush1.msra.mxu0 0.0
      %1596 = vmatprep.subr.mxu0 0.0
      %1597 = vmatpush1.msra.mxu0 0.0
      %1598 = vmatprep.subr.mxu0 0.0
      %1599 = vmatpush1.msra.mxu0 0.0
      %1600 = vmatprep.subr.mxu0 0.0
      %1601 = vmatpush1.msra.mxu0 0.0
      %1602 = vmatprep.subr.mxu0 0.0
      %1603 = vmatpush1.msra.mxu0 0.0
      %1604 = vmatprep.subr.mxu0 0.0
      %1605 = vmatpush1.msra.mxu0 0.0
      %1606 = vmatprep.subr.mxu0 0.0
      %1607 = vmatpush1.msra.mxu0 0.0
      %1608 = vmatprep.subr.mxu0 0.0
      %1609 = vmatpush1.msra.mxu0 0.0
      %1610 = vmatprep.subr.mxu0 0.0
      %1611 = vmatpush1.msra.mxu0 0.0
      %1612 = vmatprep.subr.mxu0 0.0
      %1613 = vmatpush1.msra.mxu0 0.0
      %1614 = vmatprep.subr.mxu0 0.0
      %1615 = vmatpush1.msra.mxu0 0.0
      %1616 = vmatprep.subr.mxu0 0.0
      %1617 = vmatpush1.msra.mxu0 0.0
      %1618 = vmatprep.subr.mxu0 0.0
      %1619 = vmatpush1.msra.mxu0 0.0
      %1620 = vmatprep.subr.mxu0 0.0
      %1621 = vmatpush1.msra.mxu0 0.0
      %1622 = vmatprep.subr.mxu0 0.0
      %1623 = vmatpush1.msra.mxu0 0.0
      %1624 = vmatprep.subr.mxu0 0.0
      %1625 = vmatpush1.msra.mxu0 0.0
      %1626 = vmatprep.subr.mxu0 0.0
      %1627 = vmatpush1.msra.mxu0 0.0
      %1628 = vmatprep.subr.mxu0 0.0
      %1629 = vmatpush1.msra.mxu0 0.0
      %1630 = vmatprep.subr.mxu0 0.0
      %1631 = vmatpush1.msra.mxu0 0.0
      %1632 = vmatprep.mubr.f32.mxu0 0.0
      %1633 = vmatmul.mubr.f32.gmra.mrb[0].mxu0 %v1566
      %v1634 = vpop.f32.mrb[0].mxu0
      %v1635 = vadd.f32 0.0, %v1634
      %v1636 = vpop.f32.mrb[0].mxu0
      %1637 = vdwg.mxu0
      %1638 = vmatprep.subr.mxu0 0.0
      %1639 = vmatpush1.msra.mxu0 %v320
      %1640 = vmatprep.subr.mxu0 0.0
      %1641 = vmatpush1.msra.mxu0 %v321
      %1642 = vmatprep.subr.mxu0 0.0
      %1643 = vmatpush1.msra.mxu0 %v322
      %1644 = vmatprep.subr.mxu0 0.0
      %1645 = vmatpush1.msra.mxu0 %v323
      %1646 = vmatprep.subr.mxu0 0.0
      %1647 = vmatpush1.msra.mxu0 0.0
      %1648 = vmatprep.subr.mxu0 0.0
      %1649 = vmatpush1.msra.mxu0 0.0
      %1650 = vmatprep.subr.mxu0 0.0
      %1651 = vmatpush1.msra.mxu0 0.0
      %1652 = vmatprep.subr.mxu0 0.0
      %1653 = vmatpush1.msra.mxu0 0.0
      %1654 = vmatprep.subr.mxu0 0.0
      %1655 = vmatpush1.msra.mxu0 0.0
      %1656 = vmatprep.subr.mxu0 0.0
      %1657 = vmatpush1.msra.mxu0 0.0
      %1658 = vmatprep.subr.mxu0 0.0
      %1659 = vmatpush1.msra.mxu0 0.0
      %1660 = vmatprep.subr.mxu0 0.0
      %1661 = vmatpush1.msra.mxu0 0.0
      %1662 = vmatprep.subr.mxu0 0.0
      %1663 = vmatpush1.msra.mxu0 0.0
      %1664 = vmatprep.subr.mxu0 0.0
      %1665 = vmatpush1.msra.mxu0 0.0
      %1666 = vmatprep.subr.mxu0 0.0
      %1667 = vmatpush1.msra.mxu0 0.0
      %1668 = vmatprep.subr.mxu0 0.0
      %1669 = vmatpush1.msra.mxu0 0.0
      %1670 = vmatprep.subr.mxu0 0.0
      %1671 = vmatpush1.msra.mxu0 0.0
      %1672 = vmatprep.subr.mxu0 0.0
      %1673 = vmatpush1.msra.mxu0 0.0
      %1674 = vmatprep.subr.mxu0 0.0
      %1675 = vmatpush1.msra.mxu0 0.0
      %1676 = vmatprep.subr.mxu0 0.0
      %1677 = vmatpush1.msra.mxu0 0.0
      %1678 = vmatprep.subr.mxu0 0.0
      %1679 = vmatpush1.msra.mxu0 0.0
      %1680 = vmatprep.subr.mxu0 0.0
      %1681 = vmatpush1.msra.mxu0 0.0
      %1682 = vmatprep.subr.mxu0 0.0
      %1683 = vmatpush1.msra.mxu0 0.0
      %1684 = vmatprep.subr.mxu0 0.0
      %1685 = vmatpush1.msra.mxu0 0.0
      %1686 = vmatprep.subr.mxu0 0.0
      %1687 = vmatpush1.msra.mxu0 0.0
      %1688 = vmatprep.subr.mxu0 0.0
      %1689 = vmatpush1.msra.mxu0 0.0
      %1690 = vmatprep.subr.mxu0 0.0
      %1691 = vmatpush1.msra.mxu0 0.0
      %1692 = vmatprep.subr.mxu0 0.0
      %1693 = vmatpush1.msra.mxu0 0.0
      %1694 = vmatprep.subr.mxu0 0.0
      %1695 = vmatpush1.msra.mxu0 0.0
      %1696 = vmatprep.subr.mxu0 0.0
      %1697 = vmatpush1.msra.mxu0 0.0
      %1698 = vmatprep.subr.mxu0 0.0
      %1699 = vmatpush1.msra.mxu0 0.0
      %1700 = vmatprep.subr.mxu0 0.0
      %1701 = vmatpush1.msra.mxu0 0.0
      %1702 = vmatprep.mubr.f32.mxu0 0.0
      %1703 = vmatmul.mubr.f32.gmra.mrb[0].mxu0 %v1566
      %v1704 = vpop.f32.mrb[0].mxu0
      %v1705 = vadd.f32 0.0, %v1704
      %v1706 = vpop.f32.mrb[0].mxu0
      %1707 = vdwg.mxu0
      %v1708 = vadd.f32 %v1560, %v1635
      %v1709 = vmul.f32 %v1708, 0.5
      %v1710 = vtanh.pop %v1709
      %v1711 = vadd.f32 %v1710, 1.0
      %v1712 = vmul.f32 %v1711, 0.5
      %v1713 = vadd.f32 %v1562, %v1705
      %v1714 = vmul.f32 %v1713, 0.5
      %v1715 = vtanh.pop %v1714
      %v1716 = vadd.f32 %v1715, 1.0
      %v1717 = vmul.f32 %v1716, 0.5
      %1718 = vmatprep.subr.mxu0 0.0
      %1719 = vmatpush1.msra.mxu0 %v324
      %1720 = vmatprep.subr.mxu0 0.0
      %1721 = vmatpush1.msra.mxu0 %v325
      %1722 = vmatprep.subr.mxu0 0.0
      %1723 = vmatpush1.msra.mxu0 %v326
      %1724 = vmatprep.subr.mxu0 0.0
      %1725 = vmatpush1.msra.mxu0 %v327
      %1726 = vmatprep.subr.mxu0 0.0
      %1727 = vmatpush1.msra.mxu0 0.0
      %1728 = vmatprep.subr.mxu0 0.0
      %1729 = vmatpush1.msra.mxu0 0.0
      %1730 = vmatprep.subr.mxu0 0.0
      %1731 = vmatpush1.msra.mxu0 0.0
      %1732 = vmatprep.subr.mxu0 0.0
      %1733 = vmatpush1.msra.mxu0 0.0
      %1734 = vmatprep.subr.mxu0 0.0
      %1735 = vmatpush1.msra.mxu0 0.0
      %1736 = vmatprep.subr.mxu0 0.0
      %1737 = vmatpush1.msra.mxu0 0.0
      %1738 = vmatprep.subr.mxu0 0.0
      %1739 = vmatpush1.msra.mxu0 0.0
      %1740 = vmatprep.subr.mxu0 0.0
      %1741 = vmatpush1.msra.mxu0 0.0
      %1742 = vmatprep.subr.mxu0 0.0
      %1743 = vmatpush1.msra.mxu0 0.0
      %1744 = vmatprep.subr.mxu0 0.0
      %1745 = vmatpush1.msra.mxu0 0.0
      %1746 = vmatprep.subr.mxu0 0.0
      %1747 = vmatpush1.msra.mxu0 0.0
      %1748 = vmatprep.subr.mxu0 0.0
      %1749 = vmatpush1.msra.mxu0 0.0
      %1750 = vmatprep.subr.mxu0 0.0
      %1751 = vmatpush1.msra.mxu0 0.0
      %1752 = vmatprep.subr.mxu0 0.0
      %1753 = vmatpush1.msra.mxu0 0.0
      %1754 = vmatprep.subr.mxu0 0.0
      %1755 = vmatpush1.msra.mxu0 0.0
      %1756 = vmatprep.subr.mxu0 0.0
      %1757 = vmatpush1.msra.mxu0 0.0
      %1758 = vmatprep.subr.mxu0 0.0
      %1759 = vmatpush1.msra.mxu0 0.0
      %1760 = vmatprep.subr.mxu0 0.0
      %1761 = vmatpush1.msra.mxu0 0.0
      %1762 = vmatprep.subr.mxu0 0.0
      %1763 = vmatpush1.msra.mxu0 0.0
      %1764 = vmatprep.subr.mxu0 0.0
      %1765 = vmatpush1.msra.mxu0 0.0
      %1766 = vmatprep.subr.mxu0 0.0
      %1767 = vmatpush1.msra.mxu0 0.0
      %1768 = vmatprep.subr.mxu0 0.0
      %1769 = vmatpush1.msra.mxu0 0.0
      %1770 = vmatprep.subr.mxu0 0.0
      %1771 = vmatpush1.msra.mxu0 0.0
      %1772 = vmatprep.subr.mxu0 0.0
      %1773 = vmatpush1.msra.mxu0 0.0
      %1774 = vmatprep.subr.mxu0 0.0
      %1775 = vmatpush1.msra.mxu0 0.0
      %1776 = vmatprep.subr.mxu0 0.0
      %1777 = vmatpush1.msra.mxu0 0.0
      %1778 = vmatprep.subr.mxu0 0.0
      %1779 = vmatpush1.msra.mxu0 0.0
      %1780 = vmatprep.subr.mxu0 0.0
      %1781 = vmatpush1.msra.mxu0 0.0
      %1782 = vmatprep.mubr.f32.mxu0 0.0
      %1783 = vmatmul.mubr.f32.gmra.mrb[0].mxu0 %v1566
      %v1784 = vpop.f32.mrb[0].mxu0
      %v1785 = vadd.f32 %v334, %v1784
      %v1786 = vpop.f32.mrb[0].mxu0
      %1787 = vdwg.mxu0
      %v1788 = vmul.f32 %v1712, %v1785
      %v1789 = vadd.f32 %v1564, %v1788
      %v1790 = vtanh.pop %v1789
      %v1791 = vsub.f32 1.0, %v1717
      %v1792 = vmul.f32 %v1791, %v1790
      %v1793 = vmul.f32 %v1717, %v1558
      %v1794 = vadd.f32 %v1792, %v1793
      %s1795 = sadd.s32 %s336, 5
      %v1796 = vstv %s1795
      %vm1797 = vcmp.lt.s32.totalorder %v1796, %v328
      %v1798 = vsel %vm1797, 1, 0
      %1799 = vset.pattern.permute.xlu0 0
      %1800 = vperm.xlu0 %1799, %v1798
      %v1801 = vpop.permute.xlu0 %1800
      %vm1802 = vcmp.eq.s32.totalorder %v1801, 1
      %v1803 = vsel %vm1802, %v1794, %v1558
      %s1804 = scalar_lea.vmem [#allocation3], 48
      %v1805 = vld [vmem:[%s1804] sm:$0xff]
      %s1806 = scalar_lea.vmem [#allocation4], 48
      %v1807 = vld [vmem:[%s1806] sm:$0xff]
      %s1808 = scalar_lea.vmem [#allocation5], 48
      %v1809 = vld [vmem:[%s1808] sm:$0xff]
      %v1811 = vsel %vm235, %v1803, 0
      %1813 = vmatprep.subr.mxu0 0.0
      %1814 = vmatpush1.msra.mxu0 %v316
      %1815 = vmatprep.subr.mxu0 0.0
      %1816 = vmatpush1.msra.mxu0 %v317
      %1817 = vmatprep.subr.mxu0 0.0
      %1818 = vmatpush1.msra.mxu0 %v318
      %1819 = vmatprep.subr.mxu0 0.0
      %1820 = vmatpush1.msra.mxu0 %v319
      %1821 = vmatprep.subr.mxu0 0.0
      %1822 = vmatpush1.msra.mxu0 0.0
      %1823 = vmatprep.subr.mxu0 0.0
      %1824 = vmatpush1.msra.mxu0 0.0
      %1825 = vmatprep.subr.mxu0 0.0
      %1826 = vmatpush1.msra.mxu0 0.0
      %1827 = vmatprep.subr.mxu0 0.0
      %1828 = vmatpush1.msra.mxu0 0.0
      %1829 = vmatprep.subr.mxu0 0.0
      %1830 = vmatpush1.msra.mxu0 0.0
      %1831 = vmatprep.subr.mxu0 0.0
      %1832 = vmatpush1.msra.mxu0 0.0
      %1833 = vmatprep.subr.mxu0 0.0
      %1834 = vmatpush1.msra.mxu0 0.0
      %1835 = vmatprep.subr.mxu0 0.0
      %1836 = vmatpush1.msra.mxu0 0.0
      %1837 = vmatprep.subr.mxu0 0.0
      %1838 = vmatpush1.msra.mxu0 0.0
      %1839 = vmatprep.subr.mxu0 0.0
      %1840 = vmatpush1.msra.mxu0 0.0
      %1841 = vmatprep.subr.mxu0 0.0
      %1842 = vmatpush1.msra.mxu0 0.0
      %1843 = vmatprep.subr.mxu0 0.0
      %1844 = vmatpush1.msra.mxu0 0.0
      %1845 = vmatprep.subr.mxu0 0.0
      %1846 = vmatpush1.msra.mxu0 0.0
      %1847 = vmatprep.subr.mxu0 0.0
      %1848 = vmatpush1.msra.mxu0 0.0
      %1849 = vmatprep.subr.mxu0 0.0
      %1850 = vmatpush1.msra.mxu0 0.0
      %1851 = vmatprep.subr.mxu0 0.0
      %1852 = vmatpush1.msra.mxu0 0.0
      %1853 = vmatprep.subr.mxu0 0.0
      %1854 = vmatpush1.msra.mxu0 0.0
      %1855 = vmatprep.subr.mxu0 0.0
      %1856 = vmatpush1.msra.mxu0 0.0
      %1857 = vmatprep.subr.mxu0 0.0
      %1858 = vmatpush1.msra.mxu0 0.0
      %1859 = vmatprep.subr.mxu0 0.0
      %1860 = vmatpush1.msra.mxu0 0.0
      %1861 = vmatprep.subr.mxu0 0.0
      %1862 = vmatpush1.msra.mxu0 0.0
      %1863 = vmatprep.subr.mxu0 0.0
      %1864 = vmatpush1.msra.mxu0 0.0
      %1865 = vmatprep.subr.mxu0 0.0
      %1866 = vmatpush1.msra.mxu0 0.0
      %1867 = vmatprep.subr.mxu0 0.0
      %1868 = vmatpush1.msra.mxu0 0.0
      %1869 = vmatprep.subr.mxu0 0.0
      %1870 = vmatpush1.msra.mxu0 0.0
      %1871 = vmatprep.subr.mxu0 0.0
      %1872 = vmatpush1.msra.mxu0 0.0
      %1873 = vmatprep.subr.mxu0 0.0
      %1874 = vmatpush1.msra.mxu0 0.0
      %1875 = vmatprep.subr.mxu0 0.0
      %1876 = vmatpush1.msra.mxu0 0.0
      %1877 = vmatprep.mubr.f32.mxu0 0.0
      %1878 = vmatmul.mubr.f32.gmra.mrb[0].mxu0 %v1811
      %v1879 = vpop.f32.mrb[0].mxu0
      %v1880 = vadd.f32 0.0, %v1879
      %v1881 = vpop.f32.mrb[0].mxu0
      %1882 = vdwg.mxu0
      %1883 = vmatprep.subr.mxu0 0.0
      %1884 = vmatpush1.msra.mxu0 %v320
      %1885 = vmatprep.subr.mxu0 0.0
      %1886 = vmatpush1.msra.mxu0 %v321
      %1887 = vmatprep.subr.mxu0 0.0
      %1888 = vmatpush1.msra.mxu0 %v322
      %1889 = vmatprep.subr.mxu0 0.0
      %1890 = vmatpush1.msra.mxu0 %v323
      %1891 = vmatprep.subr.mxu0 0.0
      %1892 = vmatpush1.msra.mxu0 0.0
      %1893 = vmatprep.subr.mxu0 0.0
      %1894 = vmatpush1.msra.mxu0 0.0
      %1895 = vmatprep.subr.mxu0 0.0
      %1896 = vmatpush1.msra.mxu0 0.0
      %1897 = vmatprep.subr.mxu0 0.0
      %1898 = vmatpush1.msra.mxu0 0.0
      %1899 = vmatprep.subr.mxu0 0.0
      %1900 = vmatpush1.msra.mxu0 0.0
      %1901 = vmatprep.subr.mxu0 0.0
      %1902 = vmatpush1.msra.mxu0 0.0
      %1903 = vmatprep.subr.mxu0 0.0
      %1904 = vmatpush1.msra.mxu0 0.0
      %1905 = vmatprep.subr.mxu0 0.0
      %1906 = vmatpush1.msra.mxu0 0.0
      %1907 = vmatprep.subr.mxu0 0.0
      %1908 = vmatpush1.msra.mxu0 0.0
      %1909 = vmatprep.subr.mxu0 0.0
      %1910 = vmatpush1.msra.mxu0 0.0
      %1911 = vmatprep.subr.mxu0 0.0
      %1912 = vmatpush1.msra.mxu0 0.0
      %1913 = vmatprep.subr.mxu0 0.0
      %1914 = vmatpush1.msra.mxu0 0.0
      %1915 = vmatprep.subr.mxu0 0.0
      %1916 = vmatpush1.msra.mxu0 0.0
      %1917 = vmatprep.subr.mxu0 0.0
      %1918 = vmatpush1.msra.mxu0 0.0
      %1919 = vmatprep.subr.mxu0 0.0
      %1920 = vmatpush1.msra.mxu0 0.0
      %1921 = vmatprep.subr.mxu0 0.0
      %1922 = vmatpush1.msra.mxu0 0.0
      %1923 = vmatprep.subr.mxu0 0.0
      %1924 = vmatpush1.msra.mxu0 0.0
      %1925 = vmatprep.subr.mxu0 0.0
      %1926 = vmatpush1.msra.mxu0 0.0
      %1927 = vmatprep.subr.mxu0 0.0
      %1928 = vmatpush1.msra.mxu0 0.0
      %1929 = vmatprep.subr.mxu0 0.0
      %1930 = vmatpush1.msra.mxu0 0.0
      %1931 = vmatprep.subr.mxu0 0.0
      %1932 = vmatpush1.msra.mxu0 0.0
      %1933 = vmatprep.subr.mxu0 0.0
      %1934 = vmatpush1.msra.mxu0 0.0
      %1935 = vmatprep.subr.mxu0 0.0
      %1936 = vmatpush1.msra.mxu0 0.0
      %1937 = vmatprep.subr.mxu0 0.0
      %1938 = vmatpush1.msra.mxu0 0.0
      %1939 = vmatprep.subr.mxu0 0.0
      %1940 = vmatpush1.msra.mxu0 0.0
      %1941 = vmatprep.subr.mxu0 0.0
      %1942 = vmatpush1.msra.mxu0 0.0
      %1943 = vmatprep.subr.mxu0 0.0
      %1944 = vmatpush1.msra.mxu0 0.0
      %1945 = vmatprep.subr.mxu0 0.0
      %1946 = vmatpush1.msra.mxu0 0.0
      %1947 = vmatprep.mubr.f32.mxu0 0.0
      %1948 = vmatmul.mubr.f32.gmra.mrb[0].mxu0 %v1811
      %v1949 = vpop.f32.mrb[0].mxu0
      %v1950 = vadd.f32 0.0, %v1949
      %v1951 = vpop.f32.mrb[0].mxu0
      %1952 = vdwg.mxu0
      %v1953 = vadd.f32 %v1805, %v1880
      %v1954 = vmul.f32 %v1953, 0.5
      %v1955 = vtanh.pop %v1954
      %v1956 = vadd.f32 %v1955, 1.0
      %v1957 = vmul.f32 %v1956, 0.5
      %v1958 = vadd.f32 %v1807, %v1950
      %v1959 = vmul.f32 %v1958, 0.5
      %v1960 = vtanh.pop %v1959
      %v1961 = vadd.f32 %v1960, 1.0
      %v1962 = vmul.f32 %v1961, 0.5
      %1963 = vmatprep.subr.mxu0 0.0
      %1964 = vmatpush1.msra.mxu0 %v324
      %1965 = vmatprep.subr.mxu0 0.0
      %1966 = vmatpush1.msra.mxu0 %v325
      %1967 = vmatprep.subr.mxu0 0.0
      %1968 = vmatpush1.msra.mxu0 %v326
      %1969 = vmatprep.subr.mxu0 0.0
      %1970 = vmatpush1.msra.mxu0 %v327
      %1971 = vmatprep.subr.mxu0 0.0
      %1972 = vmatpush1.msra.mxu0 0.0
      %1973 = vmatprep.subr.mxu0 0.0
      %1974 = vmatpush1.msra.mxu0 0.0
      %1975 = vmatprep.subr.mxu0 0.0
      %1976 = vmatpush1.msra.mxu0 0.0
      %1977 = vmatprep.subr.mxu0 0.0
      %1978 = vmatpush1.msra.mxu0 0.0
      %1979 = vmatprep.subr.mxu0 0.0
      %1980 = vmatpush1.msra.mxu0 0.0
      %1981 = vmatprep.subr.mxu0 0.0
      %1982 = vmatpush1.msra.mxu0 0.0
      %1983 = vmatprep.subr.mxu0 0.0
      %1984 = vmatpush1.msra.mxu0 0.0
      %1985 = vmatprep.subr.mxu0 0.0
      %1986 = vmatpush1.msra.mxu0 0.0
      %1987 = vmatprep.subr.mxu0 0.0
      %1988 = vmatpush1.msra.mxu0 0.0
      %1989 = vmatprep.subr.mxu0 0.0
      %1990 = vmatpush1.msra.mxu0 0.0
      %1991 = vmatprep.subr.mxu0 0.0
      %1992 = vmatpush1.msra.mxu0 0.0
      %1993 = vmatprep.subr.mxu0 0.0
      %1994 = vmatpush1.msra.mxu0 0.0
      %1995 = vmatprep.subr.mxu0 0.0
      %1996 = vmatpush1.msra.mxu0 0.0
      %1997 = vmatprep.subr.mxu0 0.0
      %1998 = vmatpush1.msra.mxu0 0.0
      %1999 = vmatprep.subr.mxu0 0.0
      %2000 = vmatpush1.msra.mxu0 0.0
      %2001 = vmatprep.subr.mxu0 0.0
      %2002 = vmatpush1.msra.mxu0 0.0
      %2003 = vmatprep.subr.mxu0 0.0
      %2004 = vmatpush1.msra.mxu0 0.0
      %2005 = vmatprep.subr.mxu0 0.0
      %2006 = vmatpush1.msra.mxu0 0.0
      %2007 = vmatprep.subr.mxu0 0.0
      %2008 = vmatpush1.msra.mxu0 0.0
      %2009 = vmatprep.subr.mxu0 0.0
      %2010 = vmatpush1.msra.mxu0 0.0
      %2011 = vmatprep.subr.mxu0 0.0
      %2012 = vmatpush1.msra.mxu0 0.0
      %2013 = vmatprep.subr.mxu0 0.0
      %2014 = vmatpush1.msra.mxu0 0.0
      %2015 = vmatprep.subr.mxu0 0.0
      %2016 = vmatpush1.msra.mxu0 0.0
      %2017 = vmatprep.subr.mxu0 0.0
      %2018 = vmatpush1.msra.mxu0 0.0
      %2019 = vmatprep.subr.mxu0 0.0
      %2020 = vmatpush1.msra.mxu0 0.0
      %2021 = vmatprep.subr.mxu0 0.0
      %2022 = vmatpush1.msra.mxu0 0.0
      %2023 = vmatprep.subr.mxu0 0.0
      %2024 = vmatpush1.msra.mxu0 0.0
      %2025 = vmatprep.subr.mxu0 0.0
      %2026 = vmatpush1.msra.mxu0 0.0
      %2027 = vmatprep.mubr.f32.mxu0 0.0
      %2028 = vmatmul.mubr.f32.gmra.mrb[0].mxu0 %v1811
      %v2029 = vpop.f32.mrb[0].mxu0
      %v2030 = vadd.f32 %v334, %v2029
      %v2031 = vpop.f32.mrb[0].mxu0
      %2032 = vdwg.mxu0
      %v2033 = vmul.f32 %v1957, %v2030
      %v2034 = vadd.f32 %v1809, %v2033
      %v2035 = vtanh.pop %v2034
      %v2036 = vsub.f32 1.0, %v1962
      %v2037 = vmul.f32 %v2036, %v2035
      %v2038 = vmul.f32 %v1962, %v1803
      %v2039 = vadd.f32 %v2037, %v2038
      %s2040 = sadd.s32 %s336, 6
      %v2041 = vstv %s2040
      %vm2042 = vcmp.lt.s32.totalorder %v2041, %v328
      %v2043 = vsel %vm2042, 1, 0
      %2044 = vset.pattern.permute.xlu0 0
      %2045 = vperm.xlu0 %2044, %v2043
      %v2046 = vpop.permute.xlu0 %2045
      %vm2047 = vcmp.eq.s32.totalorder %v2046, 1
      %v2048 = vsel %vm2047, %v2039, %v1803
      %s2049 = scalar_lea.vmem [#allocation3], 56
      %v2050 = vld [vmem:[%s2049] sm:$0xff]
      %s2051 = scalar_lea.vmem [#allocation4], 56
      %v2052 = vld [vmem:[%s2051] sm:$0xff]
      %s2053 = scalar_lea.vmem [#allocation5], 56
      %v2054 = vld [vmem:[%s2053] sm:$0xff]
      %v2056 = vsel %vm235, %v2048, 0
      %2058 = vmatprep.subr.mxu0 0.0
      %2059 = vmatpush1.msra.mxu0 %v316
      %2060 = vmatprep.subr.mxu0 0.0
      %2061 = vmatpush1.msra.mxu0 %v317
      %2062 = vmatprep.subr.mxu0 0.0
      %2063 = vmatpush1.msra.mxu0 %v318
      %2064 = vmatprep.subr.mxu0 0.0
      %2065 = vmatpush1.msra.mxu0 %v319
      %2066 = vmatprep.subr.mxu0 0.0
      %2067 = vmatpush1.msra.mxu0 0.0
      %2068 = vmatprep.subr.mxu0 0.0
      %2069 = vmatpush1.msra.mxu0 0.0
      %2070 = vmatprep.subr.mxu0 0.0
      %2071 = vmatpush1.msra.mxu0 0.0
      %2072 = vmatprep.subr.mxu0 0.0
      %2073 = vmatpush1.msra.mxu0 0.0
      %2074 = vmatprep.subr.mxu0 0.0
      %2075 = vmatpush1.msra.mxu0 0.0
      %2076 = vmatprep.subr.mxu0 0.0
      %2077 = vmatpush1.msra.mxu0 0.0
      %2078 = vmatprep.subr.mxu0 0.0
      %2079 = vmatpush1.msra.mxu0 0.0
      %2080 = vmatprep.subr.mxu0 0.0
      %2081 = vmatpush1.msra.mxu0 0.0
      %2082 = vmatprep.subr.mxu0 0.0
      %2083 = vmatpush1.msra.mxu0 0.0
      %2084 = vmatprep.subr.mxu0 0.0
      %2085 = vmatpush1.msra.mxu0 0.0
      %2086 = vmatprep.subr.mxu0 0.0
      %2087 = vmatpush1.msra.mxu0 0.0
      %2088 = vmatprep.subr.mxu0 0.0
      %2089 = vmatpush1.msra.mxu0 0.0
      %2090 = vmatprep.subr.mxu0 0.0
      %2091 = vmatpush1.msra.mxu0 0.0
      %2092 = vmatprep.subr.mxu0 0.0
      %2093 = vmatpush1.msra.mxu0 0.0
      %2094 = vmatprep.subr.mxu0 0.0
      %2095 = vmatpush1.msra.mxu0 0.0
      %2096 = vmatprep.subr.mxu0 0.0
      %2097 = vmatpush1.msra.mxu0 0.0
      %2098 = vmatprep.subr.mxu0 0.0
      %2099 = vmatpush1.msra.mxu0 0.0
      %2100 = vmatprep.subr.mxu0 0.0
      %2101 = vmatpush1.msra.mxu0 0.0
      %2102 = vmatprep.subr.mxu0 0.0
      %2103 = vmatpush1.msra.mxu0 0.0
      %2104 = vmatprep.subr.mxu0 0.0
      %2105 = vmatpush1.msra.mxu0 0.0
      %2106 = vmatprep.subr.mxu0 0.0
      %2107 = vmatpush1.msra.mxu0 0.0
      %2108 = vmatprep.subr.mxu0 0.0
      %2109 = vmatpush1.msra.mxu0 0.0
      %2110 = vmatprep.subr.mxu0 0.0
      %2111 = vmatpush1.msra.mxu0 0.0
      %2112 = vmatprep.subr.mxu0 0.0
      %2113 = vmatpush1.msra.mxu0 0.0
      %2114 = vmatprep.subr.mxu0 0.0
      %2115 = vmatpush1.msra.mxu0 0.0
      %2116 = vmatprep.subr.mxu0 0.0
      %2117 = vmatpush1.msra.mxu0 0.0
      %2118 = vmatprep.subr.mxu0 0.0
      %2119 = vmatpush1.msra.mxu0 0.0
      %2120 = vmatprep.subr.mxu0 0.0
      %2121 = vmatpush1.msra.mxu0 0.0
      %2122 = vmatprep.mubr.f32.mxu0 0.0
      %2123 = vmatmul.mubr.f32.gmra.mrb[0].mxu0 %v2056
      %v2124 = vpop.f32.mrb[0].mxu0
      %v2125 = vadd.f32 0.0, %v2124
      %v2126 = vpop.f32.mrb[0].mxu0
      %2127 = vdwg.mxu0
      %2128 = vmatprep.subr.mxu0 0.0
      %2129 = vmatpush1.msra.mxu0 %v320
      %2130 = vmatprep.subr.mxu0 0.0
      %2131 = vmatpush1.msra.mxu0 %v321
      %2132 = vmatprep.subr.mxu0 0.0
      %2133 = vmatpush1.msra.mxu0 %v322
      %2134 = vmatprep.subr.mxu0 0.0
      %2135 = vmatpush1.msra.mxu0 %v323
      %2136 = vmatprep.subr.mxu0 0.0
      %2137 = vmatpush1.msra.mxu0 0.0
      %2138 = vmatprep.subr.mxu0 0.0
      %2139 = vmatpush1.msra.mxu0 0.0
      %2140 = vmatprep.subr.mxu0 0.0
      %2141 = vmatpush1.msra.mxu0 0.0
      %2142 = vmatprep.subr.mxu0 0.0
      %2143 = vmatpush1.msra.mxu0 0.0
      %2144 = vmatprep.subr.mxu0 0.0
      %2145 = vmatpush1.msra.mxu0 0.0
      %2146 = vmatprep.subr.mxu0 0.0
      %2147 = vmatpush1.msra.mxu0 0.0
      %2148 = vmatprep.subr.mxu0 0.0
      %2149 = vmatpush1.msra.mxu0 0.0
      %2150 = vmatprep.subr.mxu0 0.0
      %2151 = vmatpush1.msra.mxu0 0.0
      %2152 = vmatprep.subr.mxu0 0.0
      %2153 = vmatpush1.msra.mxu0 0.0
      %2154 = vmatprep.subr.mxu0 0.0
      %2155 = vmatpush1.msra.mxu0 0.0
      %2156 = vmatprep.subr.mxu0 0.0
      %2157 = vmatpush1.msra.mxu0 0.0
      %2158 = vmatprep.subr.mxu0 0.0
      %2159 = vmatpush1.msra.mxu0 0.0
      %2160 = vmatprep.subr.mxu0 0.0
      %2161 = vmatpush1.msra.mxu0 0.0
      %2162 = vmatprep.subr.mxu0 0.0
      %2163 = vmatpush1.msra.mxu0 0.0
      %2164 = vmatprep.subr.mxu0 0.0
      %2165 = vmatpush1.msra.mxu0 0.0
      %2166 = vmatprep.subr.mxu0 0.0
      %2167 = vmatpush1.msra.mxu0 0.0
      %2168 = vmatprep.subr.mxu0 0.0
      %2169 = vmatpush1.msra.mxu0 0.0
      %2170 = vmatprep.subr.mxu0 0.0
      %2171 = vmatpush1.msra.mxu0 0.0
      %2172 = vmatprep.subr.mxu0 0.0
      %2173 = vmatpush1.msra.mxu0 0.0
      %2174 = vmatprep.subr.mxu0 0.0
      %2175 = vmatpush1.msra.mxu0 0.0
      %2176 = vmatprep.subr.mxu0 0.0
      %2177 = vmatpush1.msra.mxu0 0.0
      %2178 = vmatprep.subr.mxu0 0.0
      %2179 = vmatpush1.msra.mxu0 0.0
      %2180 = vmatprep.subr.mxu0 0.0
      %2181 = vmatpush1.msra.mxu0 0.0
      %2182 = vmatprep.subr.mxu0 0.0
      %2183 = vmatpush1.msra.mxu0 0.0
      %2184 = vmatprep.subr.mxu0 0.0
      %2185 = vmatpush1.msra.mxu0 0.0
      %2186 = vmatprep.subr.mxu0 0.0
      %2187 = vmatpush1.msra.mxu0 0.0
      %2188 = vmatprep.subr.mxu0 0.0
      %2189 = vmatpush1.msra.mxu0 0.0
      %2190 = vmatprep.subr.mxu0 0.0
      %2191 = vmatpush1.msra.mxu0 0.0
      %2192 = vmatprep.mubr.f32.mxu0 0.0
      %2193 = vmatmul.mubr.f32.gmra.mrb[0].mxu0 %v2056
      %v2194 = vpop.f32.mrb[0].mxu0
      %v2195 = vadd.f32 0.0, %v2194
      %v2196 = vpop.f32.mrb[0].mxu0
      %2197 = vdwg.mxu0
      %v2198 = vadd.f32 %v2050, %v2125
      %v2199 = vmul.f32 %v2198, 0.5
      %v2200 = vtanh.pop %v2199
      %v2201 = vadd.f32 %v2200, 1.0
      %v2202 = vmul.f32 %v2201, 0.5
      %v2203 = vadd.f32 %v2052, %v2195
      %v2204 = vmul.f32 %v2203, 0.5
      %v2205 = vtanh.pop %v2204
      %v2206 = vadd.f32 %v2205, 1.0
      %v2207 = vmul.f32 %v2206, 0.5
      %2208 = vmatprep.subr.mxu0 0.0
      %2209 = vmatpush1.msra.mxu0 %v324
      %2210 = vmatprep.subr.mxu0 0.0
      %2211 = vmatpush1.msra.mxu0 %v325
      %2212 = vmatprep.subr.mxu0 0.0
      %2213 = vmatpush1.msra.mxu0 %v326
      %2214 = vmatprep.subr.mxu0 0.0
      %2215 = vmatpush1.msra.mxu0 %v327
      %2216 = vmatprep.subr.mxu0 0.0
      %2217 = vmatpush1.msra.mxu0 0.0
      %2218 = vmatprep.subr.mxu0 0.0
      %2219 = vmatpush1.msra.mxu0 0.0
      %2220 = vmatprep.subr.mxu0 0.0
      %2221 = vmatpush1.msra.mxu0 0.0
      %2222 = vmatprep.subr.mxu0 0.0
      %2223 = vmatpush1.msra.mxu0 0.0
      %2224 = vmatprep.subr.mxu0 0.0
      %2225 = vmatpush1.msra.mxu0 0.0
      %2226 = vmatprep.subr.mxu0 0.0
      %2227 = vmatpush1.msra.mxu0 0.0
      %2228 = vmatprep.subr.mxu0 0.0
      %2229 = vmatpush1.msra.mxu0 0.0
      %2230 = vmatprep.subr.mxu0 0.0
      %2231 = vmatpush1.msra.mxu0 0.0
      %2232 = vmatprep.subr.mxu0 0.0
      %2233 = vmatpush1.msra.mxu0 0.0
      %2234 = vmatprep.subr.mxu0 0.0
      %2235 = vmatpush1.msra.mxu0 0.0
      %2236 = vmatprep.subr.mxu0 0.0
      %2237 = vmatpush1.msra.mxu0 0.0
      %2238 = vmatprep.subr.mxu0 0.0
      %2239 = vmatpush1.msra.mxu0 0.0
      %2240 = vmatprep.subr.mxu0 0.0
      %2241 = vmatpush1.msra.mxu0 0.0
      %2242 = vmatprep.subr.mxu0 0.0
      %2243 = vmatpush1.msra.mxu0 0.0
      %2244 = vmatprep.subr.mxu0 0.0
      %2245 = vmatpush1.msra.mxu0 0.0
      %2246 = vmatprep.subr.mxu0 0.0
      %2247 = vmatpush1.msra.mxu0 0.0
      %2248 = vmatprep.subr.mxu0 0.0
      %2249 = vmatpush1.msra.mxu0 0.0
      %2250 = vmatprep.subr.mxu0 0.0
      %2251 = vmatpush1.msra.mxu0 0.0
      %2252 = vmatprep.subr.mxu0 0.0
      %2253 = vmatpush1.msra.mxu0 0.0
      %2254 = vmatprep.subr.mxu0 0.0
      %2255 = vmatpush1.msra.mxu0 0.0
      %2256 = vmatprep.subr.mxu0 0.0
      %2257 = vmatpush1.msra.mxu0 0.0
      %2258 = vmatprep.subr.mxu0 0.0
      %2259 = vmatpush1.msra.mxu0 0.0
      %2260 = vmatprep.subr.mxu0 0.0
      %2261 = vmatpush1.msra.mxu0 0.0
      %2262 = vmatprep.subr.mxu0 0.0
      %2263 = vmatpush1.msra.mxu0 0.0
      %2264 = vmatprep.subr.mxu0 0.0
      %2265 = vmatpush1.msra.mxu0 0.0
      %2266 = vmatprep.subr.mxu0 0.0
      %2267 = vmatpush1.msra.mxu0 0.0
      %2268 = vmatprep.subr.mxu0 0.0
      %2269 = vmatpush1.msra.mxu0 0.0
      %2270 = vmatprep.subr.mxu0 0.0
      %2271 = vmatpush1.msra.mxu0 0.0
      %2272 = vmatprep.mubr.f32.mxu0 0.0
      %2273 = vmatmul.mubr.f32.gmra.mrb[0].mxu0 %v2056
      %v2274 = vpop.f32.mrb[0].mxu0
      %v2275 = vadd.f32 %v334, %v2274
      %v2276 = vpop.f32.mrb[0].mxu0
      %2277 = vdwg.mxu0
      %v2278 = vmul.f32 %v2202, %v2275
      %v2279 = vadd.f32 %v2054, %v2278
      %v2280 = vtanh.pop %v2279
      %v2281 = vsub.f32 1.0, %v2207
      %v2282 = vmul.f32 %v2281, %v2280
      %v2283 = vmul.f32 %v2207, %v2048
      %v2284 = vadd.f32 %v2282, %v2283
      %s2285 = sadd.s32 %s336, 7
      %v2286 = vstv %s2285
      %vm2287 = vcmp.lt.s32.totalorder %v2286, %v328
      %v2288 = vsel %vm2287, 1, 0
      %2289 = vset.pattern.permute.xlu0 0
      %2290 = vperm.xlu0 %2289, %v2288
      %v2291 = vpop.permute.xlu0 %2290
      %vm2292 = vcmp.eq.s32.totalorder %v2291, 1
      %v2293 = vsel %vm2292, %v2284, %v2048
      %2294 = vst.msk [vmem:[#allocation2] sm:$0xff] %vm235, %v2293
    $region65: #{tpu_custom_call.1} parent=1 // pred_fallthru
      _
    // Predicated region
    $region66: #{tpu_custom_call.1} parent=1 // pred_check
      %p2295 = pneg %p103
    $region67: #{tpu_custom_call.1} parent=1 // pred_check_branch
      %2297 = sbr.rel (%p2295) target = $region69
    $region68: #{tpu_custom_call.1} parent=1 // pred_region
      %v2298 = vld [vmem:[#allocation2] sm:$0xff]
      %v2299 = vld [vmem:[%s9] sm:$0xff]
      %v2300 = vld [vmem:[%s9 + $0x8] sm:$0xff]
      %v2301 = vld [vmem:[%s9 + $0x10] sm:$0xff]
      %v2302 = vld [vmem:[%s9 + $0x18] sm:$0xff]
      %v2303 = vld [vmem:[#allocation11] sm:$0x1]
      %v2305 = vlaneseq
      %v2306 = vshrl.u32 %v2305, 7
      %v2307 = vsub.s32 0, %v2306
      %v2308 = vrot.slane %v2303, %v2307
      %vm2310 = vcmask 261120
      %v2312 = vsel %vm2310, %v2298, 0
      %2314 = vmatprep.subr.mxu0 0.0
      %2315 = vmatpush1.msra.mxu0 %v2299
      %2316 = vmatprep.subr.mxu0 0.0
      %2317 = vmatpush1.msra.mxu0 %v2300
      %2318 = vmatprep.subr.mxu0 0.0
      %2319 = vmatpush1.msra.mxu0 %v2301
      %2320 = vmatprep.subr.mxu0 0.0
      %2321 = vmatpush1.msra.mxu0 %v2302
      %2322 = vmatprep.subr.mxu0 0.0
      %2323 = vmatpush1.msra.mxu0 0.0
      %2324 = vmatprep.subr.mxu0 0.0
      %2325 = vmatpush1.msra.mxu0 0.0
      %2326 = vmatprep.subr.mxu0 0.0
      %2327 = vmatpush1.msra.mxu0 0.0
      %2328 = vmatprep.subr.mxu0 0.0
      %2329 = vmatpush1.msra.mxu0 0.0
      %2330 = vmatprep.subr.mxu0 0.0
      %2331 = vmatpush1.msra.mxu0 0.0
      %2332 = vmatprep.subr.mxu0 0.0
      %2333 = vmatpush1.msra.mxu0 0.0
      %2334 = vmatprep.subr.mxu0 0.0
      %2335 = vmatpush1.msra.mxu0 0.0
      %2336 = vmatprep.subr.mxu0 0.0
      %2337 = vmatpush1.msra.mxu0 0.0
      %2338 = vmatprep.subr.mxu0 0.0
      %2339 = vmatpush1.msra.mxu0 0.0
      %2340 = vmatprep.subr.mxu0 0.0
      %2341 = vmatpush1.msra.mxu0 0.0
      %2342 = vmatprep.subr.mxu0 0.0
      %2343 = vmatpush1.msra.mxu0 0.0
      %2344 = vmatprep.subr.mxu0 0.0
      %2345 = vmatpush1.msra.mxu0 0.0
      %2346 = vmatprep.subr.mxu0 0.0
      %2347 = vmatpush1.msra.mxu0 0.0
      %2348 = vmatprep.subr.mxu0 0.0
      %2349 = vmatpush1.msra.mxu0 0.0
      %2350 = vmatprep.subr.mxu0 0.0
      %2351 = vmatpush1.msra.mxu0 0.0
      %2352 = vmatprep.subr.mxu0 0.0
      %2353 = vmatpush1.msra.mxu0 0.0
      %2354 = vmatprep.subr.mxu0 0.0
      %2355 = vmatpush1.msra.mxu0 0.0
      %2356 = vmatprep.subr.mxu0 0.0
      %2357 = vmatpush1.msra.mxu0 0.0
      %2358 = vmatprep.subr.mxu0 0.0
      %2359 = vmatpush1.msra.mxu0 0.0
      %2360 = vmatprep.subr.mxu0 0.0
      %2361 = vmatpush1.msra.mxu0 0.0
      %2362 = vmatprep.subr.mxu0 0.0
      %2363 = vmatpush1.msra.mxu0 0.0
      %2364 = vmatprep.subr.mxu0 0.0
      %2365 = vmatpush1.msra.mxu0 0.0
      %2366 = vmatprep.subr.mxu0 0.0
      %2367 = vmatpush1.msra.mxu0 0.0
      %2368 = vmatprep.subr.mxu0 0.0
      %2369 = vmatpush1.msra.mxu0 0.0
      %2370 = vmatprep.subr.mxu0 0.0
      %2371 = vmatpush1.msra.mxu0 0.0
      %2372 = vmatprep.subr.mxu0 0.0
      %2373 = vmatpush1.msra.mxu0 0.0
      %2374 = vmatprep.subr.mxu0 0.0
      %2375 = vmatpush1.msra.mxu0 0.0
      %2376 = vmatprep.subr.mxu0 0.0
      %2377 = vmatpush1.msra.mxu0 0.0
      %2378 = vmatprep.mubr.f32.mxu0 0.0
      %2379 = vmatmul.mubr.f32.gmra.mrb[0].mxu0 %v2312
      %v2380 = vpop.f32.mrb[0].mxu0
      %v2381 = vadd.f32 %v2308, %v2380
      %v2382 = vpop.f32.mrb[0].mxu0
      %2383 = vdwg.mxu0
      %v2384 = vtanh.pop %v2381
      %v2385 = vld [vmem:[%s11] sm:$0xff]
      %v2386 = vld [vmem:[%s11 + $0x8] sm:$0xff]
      %v2387 = vld [vmem:[%s11 + $0x10] sm:$0xf]
      %v2388 = vld [vmem:[%s12] sm:$0x1]
      %v2390 = vlaneseq
      %v2391 = vshrl.u32 %v2390, 7
      %v2392 = vsub.s32 0, %v2391
      %v2393 = vrot.slane %v2388, %v2392
      %vm2395 = vcmask 162816
      %v2397 = vsel %vm2395, %v2384, 0
      %vm2399 = vcmask 1043456
      %v2401 = vsel %vm2399, %v2387, 0
      %2403 = vmatprep.subr.mxu0 0.0
      %2404 = vmatpush1.msra.mxu0 %v2385
      %2405 = vmatprep.subr.mxu0 0.0
      %2406 = vmatpush1.msra.mxu0 %v2386
      %2407 = vmatprep.subr.mxu0 0.0
      %2408 = vmatpush1.msra.mxu0 %v2401
      %2409 = vmatprep.subr.mxu0 0.0
      %2410 = vmatpush1.msra.mxu0 0.0
      %2411 = vmatprep.subr.mxu0 0.0
      %2412 = vmatpush1.msra.mxu0 0.0
      %2413 = vmatprep.subr.mxu0 0.0
      %2414 = vmatpush1.msra.mxu0 0.0
      %2415 = vmatprep.subr.mxu0 0.0
      %2416 = vmatpush1.msra.mxu0 0.0
      %2417 = vmatprep.subr.mxu0 0.0
      %2418 = vmatpush1.msra.mxu0 0.0
      %2419 = vmatprep.subr.mxu0 0.0
      %2420 = vmatpush1.msra.mxu0 0.0
      %2421 = vmatprep.subr.mxu0 0.0
      %2422 = vmatpush1.msra.mxu0 0.0
      %2423 = vmatprep.subr.mxu0 0.0
      %2424 = vmatpush1.msra.mxu0 0.0
      %2425 = vmatprep.subr.mxu0 0.0
      %2426 = vmatpush1.msra.mxu0 0.0
      %2427 = vmatprep.subr.mxu0 0.0
      %2428 = vmatpush1.msra.mxu0 0.0
      %2429 = vmatprep.subr.mxu0 0.0
      %2430 = vmatpush1.msra.mxu0 0.0
      %2431 = vmatprep.subr.mxu0 0.0
      %2432 = vmatpush1.msra.mxu0 0.0
      %2433 = vmatprep.subr.mxu0 0.0
      %2434 = vmatpush1.msra.mxu0 0.0
      %2435 = vmatprep.subr.mxu0 0.0
      %2436 = vmatpush1.msra.mxu0 0.0
      %2437 = vmatprep.subr.mxu0 0.0
      %2438 = vmatpush1.msra.mxu0 0.0
      %2439 = vmatprep.subr.mxu0 0.0
      %2440 = vmatpush1.msra.mxu0 0.0
      %2441 = vmatprep.subr.mxu0 0.0
      %2442 = vmatpush1.msra.mxu0 0.0
      %2443 = vmatprep.subr.mxu0 0.0
      %2444 = vmatpush1.msra.mxu0 0.0
      %2445 = vmatprep.subr.mxu0 0.0
      %2446 = vmatpush1.msra.mxu0 0.0
      %2447 = vmatprep.subr.mxu0 0.0
      %2448 = vmatpush1.msra.mxu0 0.0
      %2449 = vmatprep.subr.mxu0 0.0
      %2450 = vmatpush1.msra.mxu0 0.0
      %2451 = vmatprep.subr.mxu0 0.0
      %2452 = vmatpush1.msra.mxu0 0.0
      %2453 = vmatprep.subr.mxu0 0.0
      %2454 = vmatpush1.msra.mxu0 0.0
      %2455 = vmatprep.subr.mxu0 0.0
      %2456 = vmatpush1.msra.mxu0 0.0
      %2457 = vmatprep.subr.mxu0 0.0
      %2458 = vmatpush1.msra.mxu0 0.0
      %2459 = vmatprep.subr.mxu0 0.0
      %2460 = vmatpush1.msra.mxu0 0.0
      %2461 = vmatprep.subr.mxu0 0.0
      %2462 = vmatpush1.msra.mxu0 0.0
      %2463 = vmatprep.subr.mxu0 0.0
      %2464 = vmatpush1.msra.mxu0 0.0
      %2465 = vmatprep.subr.mxu0 0.0
      %2466 = vmatpush1.msra.mxu0 0.0
      %2467 = vmatprep.mubr.f32.mxu0 0.0
      %2468 = vmatmul.mubr.f32.gmra.mrb[0].mxu0 %v2397
      %v2469 = vpop.f32.mrb[0].mxu0
      %v2470 = vadd.f32 %v2393, %v2469
      %v2471 = vpop.f32.mrb[0].mxu0
      %2472 = vdwg.mxu0
      %vm2473 = vcmask 523264
      %2474 = vst.msk [vmem:[#allocation13] sm:$0xff] %vm2473, %v2470
    $region69: #{tpu_custom_call.1} parent=1 // pred_fallthru
      _
    // Predicated region
    $region70: #{tpu_custom_call.1} parent=1 // pred_check
      _
    $region71: #{tpu_custom_call.1} parent=1 // pred_check_branch
      %2476 = sbr.rel (0) target = $region73
    $region72: #{tpu_custom_call.1} parent=1 // pred_region
      %s2478 = ssub.s32 128, 128
      %2479 = vsyncadd [#allocation10], %s2478
      %s2481 = sshll.u32 [#allocation13], 4
      %s2482 = int_to_ptr.vmem [resolvable:$true] %s2481
      %2484 = dma.vmem_to_hbm [thread:$0]  %s2482, 128, %s13, [#allocation10]
    $region73: #{tpu_custom_call.1} parent=1 // pred_fallthru
      _
    // Predicated region
    $region74: #{tpu_custom_call.1} parent=1 // pred_check
      _
    $region75: #{tpu_custom_call.1} parent=1 // pred_check_branch
      %2486 = sbr.rel (0) target = $region77
    $region76: #{tpu_custom_call.1} parent=1 // pred_region
      %2487 = dma.done [#allocation10], 128
    $region77: #{tpu_custom_call.1} parent=1 // pred_fallthru
      _
    %2488 = vsyncpa [#allocation9], 1
    %2489 = vsyncpa [#allocation12], 1
    %2490 = vsyncpa [#allocation10], 1

</llo_original>
